<compile_context>
chip_gen: v7x
topology: tpu7x:2x2x1
jax: 0.10.0
libtpu: 0.0.40
codegen_flags: <defaults>
</compile_context>

<pallas_src>
import jax
import jax.numpy as jnp
from jax.experimental import pallas as pl
from jax.experimental.pallas import tpu as pltpu

# ----------------------------- config ---------------------------------------
BATCH = 2
SEQ = 8            # stands in for max_length=77 (small-shape test)
HIDDEN = 128
NUM_HEADS = 4
HEAD_DIM = HIDDEN // NUM_HEADS
FFN = 4 * HIDDEN
NUM_LAYERS = 2
VOCAB = 1000
LN_EPS = 1e-5
WEIGHT_DTYPE = jnp.bfloat16   # MXU weights/operands; accumulation is f32

# TODO(synk): at real CLIP-L (S=77) pad the sequence to 80 or 128 before the
# pallas_call and extend the additive mask, so the row axis stays a clean
# multiple of 8 sublanes.


# --------------------------- kernel helpers ----------------------------------
def _layer_norm(h, w, b):
    # h: (rows, D); w, b: (1, D).  One-pass stats: var = E[x^2] - mu^2.
    mu = jnp.mean(h, axis=-1, keepdims=True)
    ms = jnp.mean(h * h, axis=-1, keepdims=True)
    var = ms - mu * mu
    return (h - mu) * jax.lax.rsqrt(var + LN_EPS) * w + b


# --------------------------- fused stack kernel -------------------------------
def clip_stack_kernel(x_ref, mask_ref,
                      ln1w_ref, ln1b_ref, wqkv_ref, bqkv_ref, wo_ref, bo_ref,
                      ln2w_ref, ln2b_ref, w1_ref, b1_ref, w2_ref, b2_ref,
                      lnfw_ref, lnfb_ref,
                      out_ref, h_ref):
    l = pl.program_id(0)

    # Load the embedded tokens into the resident VMEM activation on layer 0.
    @pl.when(l == 0)
    def _():
        h_ref[...] = x_ref[...]

    x = h_ref[...]                                        # (B*S, D) f32
    rows = x.shape[0]

    # ---- pre-LN causal multi-head self-attention (HF CLIP ordering) ----
    h = _layer_norm(x, ln1w_ref[...], ln1b_ref[...])

    qkv = (jnp.dot(h.astype(WEIGHT_DTYPE), wqkv_ref[...],
                   preferred_element_type=jnp.float32) + bqkv_ref[...])
    q = qkv[:, :HIDDEN] * (HEAD_DIM ** -0.5)              # HF scales q after bias
    k = qkv[:, HIDDEN:2 * HIDDEN]
    v = qkv[:, 2 * HIDDEN:]

    def to_heads(t):                                      # (rows, D) -> (H, rows, dh)
        return jnp.swapaxes(t.reshape(rows, NUM_HEADS, HEAD_DIM), 0, 1)

    qh = to_heads(q).astype(WEIGHT_DTYPE)
    kh = to_heads(k).astype(WEIGHT_DTYPE)
    vh = to_heads(v).astype(WEIGHT_DTYPE)

    s = jnp.einsum('hqd,hkd->hqk', qh, kh,
                   preferred_element_type=jnp.float32)    # (H, rows, rows)
    s = s + mask_ref[...]                                 # block-diag causal additive mask
    s = s - jnp.max(s, axis=-1, keepdims=True)
    p = jnp.exp(s)
    p = p * pl.reciprocal(jnp.sum(p, axis=-1, keepdims=True), approx=True)

    o = jnp.einsum('hqk,hkd->hqd', p.astype(WEIGHT_DTYPE), vh,
                   preferred_element_type=jnp.float32)    # (H, rows, dh)
    o = jnp.swapaxes(o, 0, 1).reshape(rows, HIDDEN)

    attn = jnp.dot(o.astype(WEIGHT_DTYPE), wo_ref[...],
                   preferred_element_type=jnp.float32) + bo_ref[...]
    x = x + attn

    # ---- pre-LN MLP with quick_gelu (CLIP default) ----
    h2 = _layer_norm(x, ln2w_ref[...], ln2b_ref[...])
    f = jnp.dot(h2.astype(WEIGHT_DTYPE), w1_ref[...],
                preferred_element_type=jnp.float32) + b1_ref[...]
    f = f * jax.nn.sigmoid(1.702 * f)
    f = jnp.dot(f.astype(WEIGHT_DTYPE), w2_ref[...],
                preferred_element_type=jnp.float32) + b2_ref[...]
    x = x + f

    h_ref[...] = x                                        # carry to next layer

    # Fused final LayerNorm on the last layer; single lane-dense store.
    @pl.when(l == pl.num_programs(0) - 1)
    def _():
        out_ref[...] = _layer_norm(x, lnfw_ref[...], lnfb_ref[...])


# --------------------------- pallas_call wrapper ------------------------------
_STACK_ORDER = ("ln1_w", "ln1_b", "wqkv", "bqkv", "wo", "bo",
                "ln2_w", "ln2_b", "w1", "b1", "w2", "b2")


def _stack_spec(shape):
    # (L, ...) weight: squeeze the leading layer axis, stream block l per step.
    rest = tuple(shape[1:])
    zeros = (0,) * len(rest)
    return pl.BlockSpec((pl.Squeezed(),) + rest, lambda l, _z=zeros: (l,) + _z)


def _const_spec(shape):
    # Layer-invariant input (activation / mask / final LN params): full block.
    zeros = (0,) * len(shape)
    return pl.BlockSpec(tuple(shape), lambda l, _z=zeros: _z)


def clip_text_stack(x2d, mask, stack, final_ln_w, final_ln_b):
    rows, d = x2d.shape
    num_layers = stack["wqkv"].shape[0]

    args = [x2d, mask]
    in_specs = [_const_spec(x2d.shape), _const_spec(mask.shape)]
    for name in _STACK_ORDER:
        w = stack[name]
        args.append(w)
        in_specs.append(_stack_spec(w.shape))
    args += [final_ln_w, final_ln_b]
    in_specs += [_const_spec(final_ln_w.shape), _const_spec(final_ln_b.shape)]

    return pl.pallas_call(
        clip_stack_kernel,
        out_shape=jax.ShapeDtypeStruct((rows, d), jnp.float32),
        grid_spec=pltpu.PrefetchScalarGridSpec(
            num_scalar_prefetch=0,
            grid=(num_layers,),
            in_specs=in_specs,
            out_specs=pl.BlockSpec((rows, d), lambda l: (0, 0)),
            scratch_shapes=[pltpu.VMEM((rows, d), jnp.float32)]),
        compiler_params=pltpu.CompilerParams(
            # Layers are sequential (activation carried in VMEM scratch).
            dimension_semantics=("arbitrary",)),
    )(*args)


# --------------------------- model (glue + kernel) ----------------------------
def init_params(key):
    k_tok, k_pos, k_qkv, k_o, k_1, k_2 = jax.random.split(key, 6)
    L = NUM_LAYERS
    stack = {
        "ln1_w": jnp.ones((L, 1, HIDDEN), jnp.float32),
        "ln1_b": jnp.zeros((L, 1, HIDDEN), jnp.float32),
        # fused q/k/v projection: (D, 3D), stored bf16 for the MXU
        "wqkv": (jax.random.normal(k_qkv, (L, HIDDEN, 3 * HIDDEN), jnp.float32)
                 * 0.02).astype(WEIGHT_DTYPE),
        "bqkv": jnp.zeros((L, 1, 3 * HIDDEN), jnp.float32),
        "wo": (jax.random.normal(k_o, (L, HIDDEN, HIDDEN), jnp.float32)
               * 0.02).astype(WEIGHT_DTYPE),
        "bo": jnp.zeros((L, 1, HIDDEN), jnp.float32),
        "ln2_w": jnp.ones((L, 1, HIDDEN), jnp.float32),
        "ln2_b": jnp.zeros((L, 1, HIDDEN), jnp.float32),
        "w1": (jax.random.normal(k_1, (L, HIDDEN, FFN), jnp.float32)
               * 0.02).astype(WEIGHT_DTYPE),
        "b1": jnp.zeros((L, 1, FFN), jnp.float32),
        "w2": (jax.random.normal(k_2, (L, FFN, HIDDEN), jnp.float32)
               * 0.02).astype(WEIGHT_DTYPE),
        "b2": jnp.zeros((L, 1, HIDDEN), jnp.float32),
    }
    return {
        "tok_emb": jax.random.normal(k_tok, (VOCAB, HIDDEN), jnp.float32) * 0.02,
        "pos_emb": jax.random.normal(k_pos, (SEQ, HIDDEN), jnp.float32) * 0.01,
        "final_ln_w": jnp.ones((1, HIDDEN), jnp.float32),
        "final_ln_b": jnp.zeros((1, HIDDEN), jnp.float32),
        "stack": stack,
    }


def build_block_causal_mask(batch, seq):
    """Additive mask for batch folded into rows: causal within each batch
    element, -1e30 across batch elements."""
    pos = jnp.arange(seq, dtype=jnp.int32)
    bidx = jnp.arange(batch, dtype=jnp.int32)
    row_b = jnp.repeat(bidx, seq)            # (B*S,)
    row_p = jnp.tile(pos, batch)             # (B*S,)
    allowed = (row_b[:, None] == row_b[None, :]) & (row_p[None, :] <= row_p[:, None])
    return jnp.where(allowed, 0.0, -1e30).astype(jnp.float32)


@jax.jit
def frozen_clip_embedder_forward(tokens, params):
    """tokens: int32 [B, S] (tokenizer output) -> last_hidden_state [B, S, D]."""
    # TODO(synk): CLIPTokenizer text->token-id tokenization is host-side string
    # processing with no Pallas equivalent; forward starts from token ids,
    # matching `transformer(input_ids=tokens)`.
    B, S = tokens.shape
    x = jnp.take(params["tok_emb"], tokens, axis=0) + params["pos_emb"][None, :, :]
    x2d = x.reshape(B * S, HIDDEN).astype(jnp.float32)    # fold batch into rows
    mask = build_block_causal_mask(B, S)
    z = clip_text_stack(x2d, mask, params["stack"],
                        params["final_ln_w"], params["final_ln_b"])
    return z.reshape(B, S, HIDDEN)                        # == last_hidden_state


# --------------------------------- main ---------------------------------------
if __name__ == "__main__":
    key = jax.random.PRNGKey(0)
    pkey, tkey = jax.random.split(key)
    params = init_params(pkey)
    tokens = jax.random.randint(tkey, (BATCH, SEQ), 0, VOCAB, dtype=jnp.int32)

    z = frozen_clip_embedder_forward(tokens, params)
    z = jax.block_until_ready(z)
    assert z.shape == (BATCH, SEQ, HIDDEN) and z.dtype == jnp.float32
    assert bool(jnp.all(jnp.isfinite(z)))
    print("KERNEL_OK")
</pallas_src>

<mosaic_0001>
module attributes {stable_mosaic.version = 11 : i64} {
  func.func @clip_stack_kernel(%arg0: i32, %arg1: memref<16x128xf32, #tpu.memory_space<vmem>>, %arg2: memref<16x16xf32, #tpu.memory_space<vmem>>, %arg3: memref<1x1x128xf32, #tpu.memory_space<vmem>>, %arg4: memref<1x1x128xf32, #tpu.memory_space<vmem>>, %arg5: memref<1x128x384xbf16, #tpu.memory_space<vmem>>, %arg6: memref<1x1x384xf32, #tpu.memory_space<vmem>>, %arg7: memref<1x128x128xbf16, #tpu.memory_space<vmem>>, %arg8: memref<1x1x128xf32, #tpu.memory_space<vmem>>, %arg9: memref<1x1x128xf32, #tpu.memory_space<vmem>>, %arg10: memref<1x1x128xf32, #tpu.memory_space<vmem>>, %arg11: memref<1x128x512xbf16, #tpu.memory_space<vmem>>, %arg12: memref<1x1x512xf32, #tpu.memory_space<vmem>>, %arg13: memref<1x512x128xbf16, #tpu.memory_space<vmem>>, %arg14: memref<1x1x128xf32, #tpu.memory_space<vmem>>, %arg15: memref<1x128xf32, #tpu.memory_space<vmem>>, %arg16: memref<1x128xf32, #tpu.memory_space<vmem>>, %arg17: memref<16x128xf32, #tpu.memory_space<vmem>>, %arg18: memref<16x128xf32, #tpu.memory_space<vmem>>) attributes {dimension_semantics = [#tpu.dimension_semantics<arbitrary>], iteration_bounds = array<i64: 2>, scalar_prefetch = 0 : i64, scratch_operands = 1 : i64, tpu.core_type = #tpu.core_type<tc>, window_params = [{pipeline_mode = #tpu.pipeline_mode<synchronous>, transform_indices = @transform_0, window_bounds = array<i64: 16, 128>}, {pipeline_mode = #tpu.pipeline_mode<synchronous>, transform_indices = @transform_1, window_bounds = array<i64: 16, 16>}, {transform_indices = @transform_2, window_bounds = array<i64: 1, 1, 128>}, {transform_indices = @transform_3, window_bounds = array<i64: 1, 1, 128>}, {transform_indices = @transform_4, window_bounds = array<i64: 1, 128, 384>}, {transform_indices = @transform_5, window_bounds = array<i64: 1, 1, 384>}, {transform_indices = @transform_6, window_bounds = array<i64: 1, 128, 128>}, {transform_indices = @transform_7, window_bounds = array<i64: 1, 1, 128>}, {transform_indices = @transform_8, window_bounds = array<i64: 1, 1, 128>}, {transform_indices = @transform_9, window_bounds = array<i64: 1, 1, 128>}, {transform_indices = @transform_10, window_bounds = array<i64: 1, 128, 512>}, {transform_indices = @transform_11, window_bounds = array<i64: 1, 1, 512>}, {transform_indices = @transform_12, window_bounds = array<i64: 1, 512, 128>}, {transform_indices = @transform_13, window_bounds = array<i64: 1, 1, 128>}, {pipeline_mode = #tpu.pipeline_mode<synchronous>, transform_indices = @transform_14, window_bounds = array<i64: 1, 128>}, {pipeline_mode = #tpu.pipeline_mode<synchronous>, transform_indices = @transform_15, window_bounds = array<i64: 1, 128>}, {pipeline_mode = #tpu.pipeline_mode<synchronous>, transform_indices = @transform_16, window_bounds = array<i64: 16, 128>}]} {
    %c0_i32 = arith.constant 0 : i32
    %0 = arith.cmpi eq, %arg0, %c0_i32 : i32
    %1 = arith.extui %0 : i1 to i32
    %c0_i32_0 = arith.constant 0 : i32
    %2 = arith.cmpi ne, %1, %c0_i32_0 : i32
    scf.if %2 {
      %c0_63 = arith.constant 0 : index
      %c0_64 = arith.constant 0 : index
      %135 = vector.load %arg1[%c0_63, %c0_64] : memref<16x128xf32, #tpu.memory_space<vmem>>, vector<16x128xf32>
      %c0_65 = arith.constant 0 : index
      %c0_66 = arith.constant 0 : index
      %136 = vector.load %arg18[%c0_65, %c0_66] : memref<16x128xf32, #tpu.memory_space<vmem>>, vector<16x128xf32>
      tpu.vector_store %arg18[%c0_65, %c0_66], %135 {strides = array<i32>} : memref<16x128xf32, #tpu.memory_space<vmem>>, vector<16x128xf32>,
    } else {
    }
    %c0 = arith.constant 0 : index
    %c0_1 = arith.constant 0 : index
    %3 = vector.load %arg18[%c0, %c0_1] : memref<16x128xf32, #tpu.memory_space<vmem>>, vector<16x128xf32>
    %c0_2 = arith.constant 0 : index
    %c0_3 = arith.constant 0 : index
    %c0_4 = arith.constant 0 : index
    %4 = vector.load %arg3[%c0_2, %c0_3, %c0_4] : memref<1x1x128xf32, #tpu.memory_space<vmem>>, vector<1x1x128xf32>
    %5 = vector.shape_cast %4 : vector<1x1x128xf32> to vector<1x128xf32>
    %c0_5 = arith.constant 0 : index
    %c0_6 = arith.constant 0 : index
    %c0_7 = arith.constant 0 : index
    %6 = vector.load %arg4[%c0_5, %c0_6, %c0_7] : memref<1x1x128xf32, #tpu.memory_space<vmem>>, vector<1x1x128xf32>
    %7 = vector.shape_cast %6 : vector<1x1x128xf32> to vector<1x128xf32>
    %cst = arith.constant dense<0.000000e+00> : vector<16xf32>
    %8 = vector.multi_reduction <add>, %3, %cst [1] : vector<16x128xf32> to vector<16xf32>
    %9 = vector.shape_cast %8 : vector<16xf32> to vector<16x1xf32>
    %cst_8 = arith.constant 1.280000e+02 : f32
    %10 = vector.broadcast %cst_8 : f32 to vector<16x1xf32>
    %11 = arith.divf %9, %10 : vector<16x1xf32>
    %12 = arith.mulf %3, %3 : vector<16x128xf32>
    %cst_9 = arith.constant dense<0.000000e+00> : vector<16xf32>
    %13 = vector.multi_reduction <add>, %12, %cst_9 [1] : vector<16x128xf32> to vector<16xf32>
    %14 = vector.shape_cast %13 : vector<16xf32> to vector<16x1xf32>
    %cst_10 = arith.constant 1.280000e+02 : f32
    %15 = vector.broadcast %cst_10 : f32 to vector<16x1xf32>
    %16 = arith.divf %14, %15 : vector<16x1xf32>
    %17 = arith.mulf %11, %11 : vector<16x1xf32>
    %18 = arith.subf %16, %17 : vector<16x1xf32>
    %19 = vector.broadcast %11 : vector<16x1xf32> to vector<16x128xf32>
    %20 = arith.subf %3, %19 : vector<16x128xf32>
    %cst_11 = arith.constant 9.99999974E-6 : f32
    %21 = vector.broadcast %cst_11 : f32 to vector<16x1xf32>
    %22 = arith.addf %18, %21 : vector<16x1xf32>
    %23 = math.rsqrt %22 : vector<16x1xf32>
    %24 = vector.broadcast %23 : vector<16x1xf32> to vector<16x128xf32>
    %25 = arith.mulf %20, %24 : vector<16x128xf32>
    %26 = vector.broadcast %5 : vector<1x128xf32> to vector<16x128xf32>
    %27 = arith.mulf %25, %26 : vector<16x128xf32>
    %28 = vector.broadcast %7 : vector<1x128xf32> to vector<16x128xf32>
    %29 = arith.addf %27, %28 : vector<16x128xf32>
    %30 = arith.truncf %29 : vector<16x128xf32> to vector<16x128xbf16>
    %c0_12 = arith.constant 0 : index
    %c0_13 = arith.constant 0 : index
    %c0_14 = arith.constant 0 : index
    %31 = vector.load %arg5[%c0_12, %c0_13, %c0_14] : memref<1x128x384xbf16, #tpu.memory_space<vmem>>, vector<1x128x384xbf16>
    %32 = vector.shape_cast %31 : vector<1x128x384xbf16> to vector<128x384xbf16>
    %cst_15 = arith.constant dense<0.000000e+00> : vector<16x384xf32>
    %33 = tpu.matmul %30, %32, %cst_15 {dimension_numbers = #tpu.dot_dimension_numbers<[1], [0], [0], [1], [0, 0, 1, 1], [], []>} : vector<16x128xbf16>, vector<128x384xbf16>, vector<16x384xf32> -> vector<16x384xf32>
    %c0_16 = arith.constant 0 : index
    %c0_17 = arith.constant 0 : index
    %c0_18 = arith.constant 0 : index
    %34 = vector.load %arg6[%c0_16, %c0_17, %c0_18] : memref<1x1x384xf32, #tpu.memory_space<vmem>>, vector<1x1x384xf32>
    %35 = vector.shape_cast %34 : vector<1x1x384xf32> to vector<1x384xf32>
    %36 = vector.broadcast %35 : vector<1x384xf32> to vector<16x384xf32>
    %37 = arith.addf %33, %36 : vector<16x384xf32>
    %38 = vector.extract_strided_slice %37 {offsets = [0, 0], sizes = [16, 128], strides = [1, 1]} : vector<16x384xf32> to vector<16x128xf32>
    %cst_19 = arith.constant 0.176776692 : f32
    %39 = vector.broadcast %cst_19 : f32 to vector<16x128xf32>
    %40 = arith.mulf %38, %39 : vector<16x128xf32>
    %41 = vector.extract_strided_slice %37 {offsets = [0, 128], sizes = [16, 128], strides = [1, 1]} : vector<16x384xf32> to vector<16x128xf32>
    %42 = vector.extract_strided_slice %37 {offsets = [0, 256], sizes = [16, 128], strides = [1, 1]} : vector<16x384xf32> to vector<16x128xf32>
    %43 = vector.shape_cast %40 : vector<16x128xf32> to vector<16x4x32xf32>
    %44 = tpu.transpose %43, [1, 0, 2] : vector<16x4x32xf32> -> vector<4x16x32xf32>
    %45 = arith.truncf %44 : vector<4x16x32xf32> to vector<4x16x32xbf16>
    %46 = vector.shape_cast %41 : vector<16x128xf32> to vector<16x4x32xf32>
    %47 = tpu.transpose %46, [1, 0, 2] : vector<16x4x32xf32> -> vector<4x16x32xf32>
    %48 = arith.truncf %47 : vector<4x16x32xf32> to vector<4x16x32xbf16>
    %49 = vector.shape_cast %42 : vector<16x128xf32> to vector<16x4x32xf32>
    %50 = tpu.transpose %49, [1, 0, 2] : vector<16x4x32xf32> -> vector<4x16x32xf32>
    %51 = arith.truncf %50 : vector<4x16x32xf32> to vector<4x16x32xbf16>
    "tpu.trace_start"() <{level = 10 : i32, message = "hqd,hkd->hqk"}> : () -> ()
    %cst_20 = arith.constant dense<0.000000e+00> : vector<4x16x16xf32>
    %52 = tpu.matmul %45, %48, %cst_20 {dimension_numbers = #tpu.dot_dimension_numbers<[2], [2], [1], [1], [0, 0, 0, 1, 1, 1], [0], [0]>} : vector<4x16x32xbf16>, vector<4x16x32xbf16>, vector<4x16x16xf32> -> vector<4x16x16xf32>
    "tpu.trace_stop"() : () -> ()
    %c0_21 = arith.constant 0 : index
    %c0_22 = arith.constant 0 : index
    %53 = vector.load %arg2[%c0_21, %c0_22] : memref<16x16xf32, #tpu.memory_space<vmem>>, vector<16x16xf32>
    %54 = vector.shape_cast %53 : vector<16x16xf32> to vector<1x16x16xf32>
    %55 = vector.broadcast %54 : vector<1x16x16xf32> to vector<4x16x16xf32>
    %56 = arith.addf %52, %55 : vector<4x16x16xf32>
    %cst_23 = arith.constant dense<0xFF800000> : vector<4x16xf32>
    %57 = vector.multi_reduction <maximumf>, %56, %cst_23 [2] : vector<4x16x16xf32> to vector<4x16xf32>
    %58 = vector.shape_cast %57 : vector<4x16xf32> to vector<4x16x1xf32>
    %59 = vector.broadcast %58 : vector<4x16x1xf32> to vector<4x16x16xf32>
    %60 = arith.subf %56, %59 : vector<4x16x16xf32>
    %61 = math.exp %60 : vector<4x16x16xf32>
    %cst_24 = arith.constant dense<0.000000e+00> : vector<4x16xf32>
    %62 = vector.multi_reduction <add>, %61, %cst_24 [2] : vector<4x16x16xf32> to vector<4x16xf32>
    %63 = vector.shape_cast %62 : vector<4x16xf32> to vector<4x16x1xf32>
    %64 = tpu.reciprocal %63 {approx = true} : vector<4x16x1xf32> -> vector<4x16x1xf32>
    %65 = vector.broadcast %64 : vector<4x16x1xf32> to vector<4x16x16xf32>
    %66 = arith.mulf %61, %65 : vector<4x16x16xf32>
    %67 = arith.truncf %66 : vector<4x16x16xf32> to vector<4x16x16xbf16>
    "tpu.trace_start"() <{level = 10 : i32, message = "hqk,hkd->hqd"}> : () -> ()
    %cst_25 = arith.constant dense<0.000000e+00> : vector<4x16x32xf32>
    %68 = tpu.matmul %67, %51, %cst_25 {dimension_numbers = #tpu.dot_dimension_numbers<[2], [1], [1], [2], [0, 0, 0, 1, 1, 2], [0], [0]>} : vector<4x16x16xbf16>, vector<4x16x32xbf16>, vector<4x16x32xf32> -> vector<4x16x32xf32>
    "tpu.trace_stop"() : () -> ()
    %69 = tpu.transpose %68, [1, 0, 2] : vector<4x16x32xf32> -> vector<16x4x32xf32>
    %70 = vector.shape_cast %69 : vector<16x4x32xf32> to vector<16x128xf32>
    %71 = arith.truncf %70 : vector<16x128xf32> to vector<16x128xbf16>
    %c0_26 = arith.constant 0 : index
    %c0_27 = arith.constant 0 : index
    %c0_28 = arith.constant 0 : index
    %72 = vector.load %arg7[%c0_26, %c0_27, %c0_28] : memref<1x128x128xbf16, #tpu.memory_space<vmem>>, vector<1x128x128xbf16>
    %73 = vector.shape_cast %72 : vector<1x128x128xbf16> to vector<128x128xbf16>
    %cst_29 = arith.constant dense<0.000000e+00> : vector<16x128xf32>
    %74 = tpu.matmul %71, %73, %cst_29 {dimension_numbers = #tpu.dot_dimension_numbers<[1], [0], [0], [1], [0, 0, 1, 1], [], []>} : vector<16x128xbf16>, vector<128x128xbf16>, vector<16x128xf32> -> vector<16x128xf32>
    %c0_30 = arith.constant 0 : index
    %c0_31 = arith.constant 0 : index
    %c0_32 = arith.constant 0 : index
    %75 = vector.load %arg8[%c0_30, %c0_31, %c0_32] : memref<1x1x128xf32, #tpu.memory_space<vmem>>, vector<1x1x128xf32>
    %76 = vector.shape_cast %75 : vector<1x1x128xf32> to vector<1x128xf32>
    %77 = vector.broadcast %76 : vector<1x128xf32> to vector<16x128xf32>
    %78 = arith.addf %74, %77 : vector<16x128xf32>
    %79 = arith.addf %3, %78 : vector<16x128xf32>
    %c0_33 = arith.constant 0 : index
    %c0_34 = arith.constant 0 : index
    %c0_35 = arith.constant 0 : index
    %80 = vector.load %arg9[%c0_33, %c0_34, %c0_35] : memref<1x1x128xf32, #tpu.memory_space<vmem>>, vector<1x1x128xf32>
    %81 = vector.shape_cast %80 : vector<1x1x128xf32> to vector<1x128xf32>
    %c0_36 = arith.constant 0 : index
    %c0_37 = arith.constant 0 : index
    %c0_38 = arith.constant 0 : index
    %82 = vector.load %arg10[%c0_36, %c0_37, %c0_38] : memref<1x1x128xf32, #tpu.memory_space<vmem>>, vector<1x1x128xf32>
    %83 = vector.shape_cast %82 : vector<1x1x128xf32> to vector<1x128xf32>
    %cst_39 = arith.constant dense<0.000000e+00> : vector<16xf32>
    %84 = vector.multi_reduction <add>, %79, %cst_39 [1] : vector<16x128xf32> to vector<16xf32>
    %85 = vector.shape_cast %84 : vector<16xf32> to vector<16x1xf32>
    %cst_40 = arith.constant 1.280000e+02 : f32
    %86 = vector.broadcast %cst_40 : f32 to vector<16x1xf32>
    %87 = arith.divf %85, %86 : vector<16x1xf32>
    %88 = arith.mulf %79, %79 : vector<16x128xf32>
    %cst_41 = arith.constant dense<0.000000e+00> : vector<16xf32>
    %89 = vector.multi_reduction <add>, %88, %cst_41 [1] : vector<16x128xf32> to vector<16xf32>
    %90 = vector.shape_cast %89 : vector<16xf32> to vector<16x1xf32>
    %cst_42 = arith.constant 1.280000e+02 : f32
    %91 = vector.broadcast %cst_42 : f32 to vector<16x1xf32>
    %92 = arith.divf %90, %91 : vector<16x1xf32>
    %93 = arith.mulf %87, %87 : vector<16x1xf32>
    %94 = arith.subf %92, %93 : vector<16x1xf32>
    %95 = vector.broadcast %87 : vector<16x1xf32> to vector<16x128xf32>
    %96 = arith.subf %79, %95 : vector<16x128xf32>
    %cst_43 = arith.constant 9.99999974E-6 : f32
    %97 = vector.broadcast %cst_43 : f32 to vector<16x1xf32>
    %98 = arith.addf %94, %97 : vector<16x1xf32>
    %99 = math.rsqrt %98 : vector<16x1xf32>
    %100 = vector.broadcast %99 : vector<16x1xf32> to vector<16x128xf32>
    %101 = arith.mulf %96, %100 : vector<16x128xf32>
    %102 = vector.broadcast %81 : vector<1x128xf32> to vector<16x128xf32>
    %103 = arith.mulf %101, %102 : vector<16x128xf32>
    %104 = vector.broadcast %83 : vector<1x128xf32> to vector<16x128xf32>
    %105 = arith.addf %103, %104 : vector<16x128xf32>
    %106 = arith.truncf %105 : vector<16x128xf32> to vector<16x128xbf16>
    %c0_44 = arith.constant 0 : index
    %c0_45 = arith.constant 0 : index
    %c0_46 = arith.constant 0 : index
    %107 = vector.load %arg11[%c0_44, %c0_45, %c0_46] : memref<1x128x512xbf16, #tpu.memory_space<vmem>>, vector<1x128x512xbf16>
    %108 = vector.shape_cast %107 : vector<1x128x512xbf16> to vector<128x512xbf16>
    %cst_47 = arith.constant dense<0.000000e+00> : vector<16x512xf32>
    %109 = tpu.matmul %106, %108, %cst_47 {dimension_numbers = #tpu.dot_dimension_numbers<[1], [0], [0], [1], [0, 0, 1, 1], [], []>} : vector<16x128xbf16>, vector<128x512xbf16>, vector<16x512xf32> -> vector<16x512xf32>
    %c0_48 = arith.constant 0 : index
    %c0_49 = arith.constant 0 : index
    %c0_50 = arith.constant 0 : index
    %110 = vector.load %arg12[%c0_48, %c0_49, %c0_50] : memref<1x1x512xf32, #tpu.memory_space<vmem>>, vector<1x1x512xf32>
    %111 = vector.shape_cast %110 : vector<1x1x512xf32> to vector<1x512xf32>
    %112 = vector.broadcast %111 : vector<1x512xf32> to vector<16x512xf32>
    %113 = arith.addf %109, %112 : vector<16x512xf32>
    %cst_51 = arith.constant 1.702000e+00 : f32
    %114 = vector.broadcast %cst_51 : f32 to vector<16x512xf32>
    %115 = arith.mulf %114, %113 : vector<16x512xf32>
    %116 = arith.negf %115 : vector<16x512xf32>
    %117 = math.exp %116 : vector<16x512xf32>
    %cst_52 = arith.constant 1.000000e+00 : f32
    %118 = vector.broadcast %cst_52 : f32 to vector<16x512xf32>
    %119 = arith.addf %118, %117 : vector<16x512xf32>
    %120 = arith.divf %118, %119 : vector<16x512xf32>
    %121 = arith.mulf %113, %120 : vector<16x512xf32>
    %122 = arith.truncf %121 : vector<16x512xf32> to vector<16x512xbf16>
    %c0_53 = arith.constant 0 : index
    %c0_54 = arith.constant 0 : index
    %c0_55 = arith.constant 0 : index
    %123 = vector.load %arg13[%c0_53, %c0_54, %c0_55] : memref<1x512x128xbf16, #tpu.memory_space<vmem>>, vector<1x512x128xbf16>
    %124 = vector.shape_cast %123 : vector<1x512x128xbf16> to vector<512x128xbf16>
    %cst_56 = arith.constant dense<0.000000e+00> : vector<16x128xf32>
    %125 = tpu.matmul %122, %124, %cst_56 {dimension_numbers = #tpu.dot_dimension_numbers<[1], [0], [0], [1], [0, 0, 1, 1], [], []>} : vector<16x512xbf16>, vector<512x128xbf16>, vector<16x128xf32> -> vector<16x128xf32>
    %c0_57 = arith.constant 0 : index
    %c0_58 = arith.constant 0 : index
    %c0_59 = arith.constant 0 : index
    %126 = vector.load %arg14[%c0_57, %c0_58, %c0_59] : memref<1x1x128xf32, #tpu.memory_space<vmem>>, vector<1x1x128xf32>
    %127 = vector.shape_cast %126 : vector<1x1x128xf32> to vector<1x128xf32>
    %128 = vector.broadcast %127 : vector<1x128xf32> to vector<16x128xf32>
    %129 = arith.addf %125, %128 : vector<16x128xf32>
    %130 = arith.addf %79, %129 : vector<16x128xf32>
    %c0_60 = arith.constant 0 : index
    %c0_61 = arith.constant 0 : index
    %131 = vector.load %arg18[%c0_60, %c0_61] : memref<16x128xf32, #tpu.memory_space<vmem>>, vector<16x128xf32>
    tpu.vector_store %arg18[%c0_60, %c0_61], %130 {strides = array<i32>} : memref<16x128xf32, #tpu.memory_space<vmem>>, vector<16x128xf32>,
    %c1_i32 = arith.constant 1 : i32
    %132 = arith.cmpi eq, %arg0, %c1_i32 : i32
    %133 = arith.extui %132 : i1 to i32
    %c0_i32_62 = arith.constant 0 : i32
    %134 = arith.cmpi ne, %133, %c0_i32_62 : i32
    scf.if %134 {
      %c0_63 = arith.constant 0 : index
      %c0_64 = arith.constant 0 : index
      %135 = vector.load %arg15[%c0_63, %c0_64] : memref<1x128xf32, #tpu.memory_space<vmem>>, vector<1x128xf32>
      %c0_65 = arith.constant 0 : index
      %c0_66 = arith.constant 0 : index
      %136 = vector.load %arg16[%c0_65, %c0_66] : memref<1x128xf32, #tpu.memory_space<vmem>>, vector<1x128xf32>
      %cst_67 = arith.constant dense<0.000000e+00> : vector<16xf32>
      %137 = vector.multi_reduction <add>, %130, %cst_67 [1] : vector<16x128xf32> to vector<16xf32>
      %138 = vector.shape_cast %137 : vector<16xf32> to vector<16x1xf32>
      %cst_68 = arith.constant 1.280000e+02 : f32
      %139 = vector.broadcast %cst_68 : f32 to vector<16x1xf32>
      %140 = arith.divf %138, %139 : vector<16x1xf32>
      %141 = arith.mulf %130, %130 : vector<16x128xf32>
      %cst_69 = arith.constant dense<0.000000e+00> : vector<16xf32>
      %142 = vector.multi_reduction <add>, %141, %cst_69 [1] : vector<16x128xf32> to vector<16xf32>
      %143 = vector.shape_cast %142 : vector<16xf32> to vector<16x1xf32>
      %cst_70 = arith.constant 1.280000e+02 : f32
      %144 = vector.broadcast %cst_70 : f32 to vector<16x1xf32>
      %145 = arith.divf %143, %144 : vector<16x1xf32>
      %146 = arith.mulf %140, %140 : vector<16x1xf32>
      %147 = arith.subf %145, %146 : vector<16x1xf32>
      %148 = vector.broadcast %140 : vector<16x1xf32> to vector<16x128xf32>
      %149 = arith.subf %130, %148 : vector<16x128xf32>
      %cst_71 = arith.constant 9.99999974E-6 : f32
      %150 = vector.broadcast %cst_71 : f32 to vector<16x1xf32>
      %151 = arith.addf %147, %150 : vector<16x1xf32>
      %152 = math.rsqrt %151 : vector<16x1xf32>
      %153 = vector.broadcast %152 : vector<16x1xf32> to vector<16x128xf32>
      %154 = arith.mulf %149, %153 : vector<16x128xf32>
      %155 = vector.broadcast %135 : vector<1x128xf32> to vector<16x128xf32>
      %156 = arith.mulf %154, %155 : vector<16x128xf32>
      %157 = vector.broadcast %136 : vector<1x128xf32> to vector<16x128xf32>
      %158 = arith.addf %156, %157 : vector<16x128xf32>
      %c0_72 = arith.constant 0 : index
      %c0_73 = arith.constant 0 : index
      %159 = vector.load %arg17[%c0_72, %c0_73] : memref<16x128xf32, #tpu.memory_space<vmem>>, vector<16x128xf32>
      tpu.vector_store %arg17[%c0_72, %c0_73], %158 {strides = array<i32>} : memref<16x128xf32, #tpu.memory_space<vmem>>, vector<16x128xf32>,
    } else {
    }
    return
  }
  func.func @transform_0(%arg0: i32) -> (i32, i32) {
    %c0_i32 = arith.constant 0 : i32
    %c0_i32_0 = arith.constant 0 : i32
    %c0_i32_1 = arith.constant 0 : i32
    return %c0_i32, %c0_i32_0 : i32, i32
  }
  func.func @transform_1(%arg0: i32) -> (i32, i32) {
    %c0_i32 = arith.constant 0 : i32
    %c0_i32_0 = arith.constant 0 : i32
    %c0_i32_1 = arith.constant 0 : i32
    return %c0_i32, %c0_i32_0 : i32, i32
  }
  func.func @transform_2(%arg0: i32) -> (i32, i32, i32) {
    %c0_i32 = arith.constant 0 : i32
    %c0_i32_0 = arith.constant 0 : i32
    %c0_i32_1 = arith.constant 0 : i32
    return %arg0, %c0_i32, %c0_i32_0 : i32, i32, i32
  }
  func.func @transform_3(%arg0: i32) -> (i32, i32, i32) {
    %c0_i32 = arith.constant 0 : i32
    %c0_i32_0 = arith.constant 0 : i32
    %c0_i32_1 = arith.constant 0 : i32
    return %arg0, %c0_i32, %c0_i32_0 : i32, i32, i32
  }
  func.func @transform_4(%arg0: i32) -> (i32, i32, i32) {
    %c0_i32 = arith.constant 0 : i32
    %c0_i32_0 = arith.constant 0 : i32
    %c0_i32_1 = arith.constant 0 : i32
    return %arg0, %c0_i32, %c0_i32_0 : i32, i32, i32
  }
  func.func @transform_5(%arg0: i32) -> (i32, i32, i32) {
    %c0_i32 = arith.constant 0 : i32
    %c0_i32_0 = arith.constant 0 : i32
    %c0_i32_1 = arith.constant 0 : i32
    return %arg0, %c0_i32, %c0_i32_0 : i32, i32, i32
  }
  func.func @transform_6(%arg0: i32) -> (i32, i32, i32) {
    %c0_i32 = arith.constant 0 : i32
    %c0_i32_0 = arith.constant 0 : i32
    %c0_i32_1 = arith.constant 0 : i32
    return %arg0, %c0_i32, %c0_i32_0 : i32, i32, i32
  }
  func.func @transform_7(%arg0: i32) -> (i32, i32, i32) {
    %c0_i32 = arith.constant 0 : i32
    %c0_i32_0 = arith.constant 0 : i32
    %c0_i32_1 = arith.constant 0 : i32
    return %arg0, %c0_i32, %c0_i32_0 : i32, i32, i32
  }
  func.func @transform_8(%arg0: i32) -> (i32, i32, i32) {
    %c0_i32 = arith.constant 0 : i32
    %c0_i32_0 = arith.constant 0 : i32
    %c0_i32_1 = arith.constant 0 : i32
    return %arg0, %c0_i32, %c0_i32_0 : i32, i32, i32
  }
  func.func @transform_9(%arg0: i32) -> (i32, i32, i32) {
    %c0_i32 = arith.constant 0 : i32
    %c0_i32_0 = arith.constant 0 : i32
    %c0_i32_1 = arith.constant 0 : i32
    return %arg0, %c0_i32, %c0_i32_0 : i32, i32, i32
  }
  func.func @transform_10(%arg0: i32) -> (i32, i32, i32) {
    %c0_i32 = arith.constant 0 : i32
    %c0_i32_0 = arith.constant 0 : i32
    %c0_i32_1 = arith.constant 0 : i32
    return %arg0, %c0_i32, %c0_i32_0 : i32, i32, i32
  }
  func.func @transform_11(%arg0: i32) -> (i32, i32, i32) {
    %c0_i32 = arith.constant 0 : i32
    %c0_i32_0 = arith.constant 0 : i32
    %c0_i32_1 = arith.constant 0 : i32
    return %arg0, %c0_i32, %c0_i32_0 : i32, i32, i32
  }
  func.func @transform_12(%arg0: i32) -> (i32, i32, i32) {
    %c0_i32 = arith.constant 0 : i32
    %c0_i32_0 = arith.constant 0 : i32
    %c0_i32_1 = arith.constant 0 : i32
    return %arg0, %c0_i32, %c0_i32_0 : i32, i32, i32
  }
  func.func @transform_13(%arg0: i32) -> (i32, i32, i32) {
    %c0_i32 = arith.constant 0 : i32
    %c0_i32_0 = arith.constant 0 : i32
    %c0_i32_1 = arith.constant 0 : i32
    return %arg0, %c0_i32, %c0_i32_0 : i32, i32, i32
  }
  func.func @transform_14(%arg0: i32) -> (i32, i32) {
    %c0_i32 = arith.constant 0 : i32
    %c0_i32_0 = arith.constant 0 : i32
    %c0_i32_1 = arith.constant 0 : i32
    return %c0_i32, %c0_i32_0 : i32, i32
  }
  func.func @transform_15(%arg0: i32) -> (i32, i32) {
    %c0_i32 = arith.constant 0 : i32
    %c0_i32_0 = arith.constant 0 : i32
    %c0_i32_1 = arith.constant 0 : i32
    return %c0_i32, %c0_i32_0 : i32, i32
  }
  func.func @transform_16(%arg0: i32) -> (i32, i32) {
    %c0_i32 = arith.constant 0 : i32
    %c0_i32_0 = arith.constant 0 : i32
    %c0_i32_1 = arith.constant 0 : i32
    return %c0_i32, %c0_i32_0 : i32, i32
  }
}

</mosaic_0001>

<llo_original>
// kernel: frozen_clip_embedder_forward.1
$region0: #{frozen_clip_embedder_forward.1}
  #allocation0 [shape = 'u32[]', space=smem, size = 0x4, offset = 0x4, fixed_abs, tag = 'smem constant byte address 0x4 - core index']
  #allocation1 [shape = 'u32[144,128]{1,0:T(1,128)}', space=vmem, size = 0x12000, scoped, tag = 'internal scratch']
  #allocation2 [shape = 'f32[16,128]{1,0:T(8,128)}', space=vmem, size = 0x2000, scoped, tag = 'scratch operand']
  %s0 = inlined_call_operand.vmem [shape: f32[16,128], index: 0, kind: input, shape index: {}]
  %s1 = inlined_call_operand.vmem [shape: f32[16,16], index: 1, kind: input, shape index: {}]
  %s2 = inlined_call_operand.vmem [shape: f32[2,1,128], index: 2, kind: input, shape index: {}]
  %s3 = inlined_call_operand.vmem [shape: f32[2,1,128], index: 3, kind: input, shape index: {}]
  %s4 = inlined_call_operand.hbm [shape: bf16[2,128,384], index: 4, kind: input, shape index: {}]
  %s5 = inlined_call_operand.vmem [shape: f32[2,1,384], index: 5, kind: input, shape index: {}]
  %s6 = inlined_call_operand.vmem [shape: bf16[2,128,128], index: 6, kind: input, shape index: {}]
  %s7 = inlined_call_operand.vmem [shape: f32[2,1,128], index: 7, kind: input, shape index: {}]
  %s8 = inlined_call_operand.vmem [shape: f32[2,1,128], index: 8, kind: input, shape index: {}]
  %s9 = inlined_call_operand.vmem [shape: f32[2,1,128], index: 9, kind: input, shape index: {}]
  %s10 = inlined_call_operand.hbm [shape: bf16[2,128,512], index: 10, kind: input, shape index: {}]
  %s11 = inlined_call_operand.vmem [shape: f32[2,1,512], index: 11, kind: input, shape index: {}]
  %s12 = inlined_call_operand.hbm [shape: bf16[2,512,128], index: 12, kind: input, shape index: {}]
  %s13 = inlined_call_operand.vmem [shape: f32[2,1,128], index: 13, kind: input, shape index: {}]
  %s14 = inlined_call_operand.vmem [shape: f32[1,128], index: 14, kind: input, shape index: {}]
  %s15 = inlined_call_operand.vmem [shape: f32[1,128], index: 15, kind: input, shape index: {}]
  %s16 = inlined_call_operand.hbm [shape: f32[16,128], index: 16, kind: output, shape index: {}]
  %s17 = sld [smem:[#allocation0]]
  $region117: #{frozen_clip_embedder_forward.1} parent=0
    _
  %s19 = ssub.s32 1, %s17
  %s20 = scalar_select 0, %s19, %s17
  $region1: #{frozen_clip_embedder_forward.1} parent=0
    #allocation3 [shape = 'u8[196608]{0}', space=vmem, size = 0x30000, scoped, tag = 'input window, operand 4']
    #allocation4 [shape = 's32[2]{0}', space=sflag, size = 0x8, scoped, tag = 'scoped memory for frozen_clip_embedder_forward.1']
    #allocation5 [shape = 's32[2]{0}', space=sflag, size = 0x8, scoped, tag = 'scoped memory for frozen_clip_embedder_forward.1']
    #allocation6 [shape = 'u8[262144]{0}', space=vmem, size = 0x40000, scoped, tag = 'input window, operand 10']
    #allocation7 [shape = 's32[2]{0}', space=sflag, size = 0x8, scoped, tag = 'scoped memory for frozen_clip_embedder_forward.1']
    #allocation8 [shape = 'u8[262144]{0}', space=vmem, size = 0x40000, scoped, tag = 'input window, operand 12']
    #allocation9 [shape = 'u8[8192]{0}', space=vmem, size = 0x2000, scoped, tag = 'output window, operand 0, single buffered']
    %21 = vsyncpa [#allocation4], 0
    %s22 = scalar_lea.sflag [#allocation4], 1
    %23 = vsyncpa %s22, 0
    %24 = vsyncpa [#allocation7], 0
    %s25 = scalar_lea.sflag [#allocation7], 1
    %26 = vsyncpa %s25, 0
    %27 = vsyncpa [#allocation5], 0
    loop: start=0, step=1, limit=4
    $region2: #{frozen_clip_embedder_forward.1} parent=1 // loop_pre_header
      _
    $region3: #{frozen_clip_embedder_forward.1} parent=1 // loop_header
      %s29 = sphi 0, %s33
      %p30 = scmp.ge.s32.totalorder %s29, 4
      %s37 = sphi 0, %s37
      %s39 = sphi 0, %s37
      %s40 = sphi 0, %s39
      %s54 = sphi 0, %s40
      %s58 = sphi 0, %s58
      %s60 = sphi 0, %s58
      %s61 = sphi 0, %s60
      %s75 = sphi 0, %s61
      %s81 = sphi 0, %s83
      %s84 = sphi 0, %s81
      %s85 = sphi 0, %s84
      %s101 = sphi 0, %s85
      %s107 = sphi 0, %s109
      %s110 = sphi 0, %s107
      %s111 = sphi 0, %s110
      %s127 = sphi 0, %s111
      %s133 = sphi 0, %s135
      %s136 = sphi 0, %s133
      %s137 = sphi 0, %s136
      %s153 = sphi 0, %s137
      %s159 = sphi 0, %s161
      %s162 = sphi 0, %s159
      %s163 = sphi 0, %s162
      %s179 = sphi 0, %s163
      %s185 = sphi 0, %s187
      %s188 = sphi 0, %s185
      %s189 = sphi 0, %s188
      %s205 = sphi 0, %s189
      %s211 = sphi 0, %s213
      %s214 = sphi 0, %s211
      %s215 = sphi 0, %s214
      %s231 = sphi 0, %s215
      %s237 = sphi 0, %s239
      %s240 = sphi 0, %s237
      %s241 = sphi 0, %s240
      %s257 = sphi 0, %s241
      %s263 = sphi 0, %s265
      %s266 = sphi 0, %s263
      %s267 = sphi 0, %s266
      %s283 = sphi 0, %s267
      %s289 = sphi 0, %s291
      %s292 = sphi 0, %s289
      %s293 = sphi 0, %s292
      %s309 = sphi 0, %s293
      %s315 = sphi 0, %s317
      %s318 = sphi 0, %s315
      %s319 = sphi 0, %s318
      %s335 = sphi 0, %s319
      %s341 = sphi 0, %s343
      %s344 = sphi 0, %s341
      %s345 = sphi 0, %s344
      %s361 = sphi 0, %s345
      %s367 = sphi 0, %s369
      %s370 = sphi 0, %s367
      %s371 = sphi 0, %s370
      %s387 = sphi 0, %s371
      %s391 = sphi 0, %s391
      %s393 = sphi 0, %s391
      %s394 = sphi 0, %s393
      %s408 = sphi 0, %s394
      %s412 = sphi 0, %s412
      %s414 = sphi 0, %s412
      %s415 = sphi 0, %s414
      %s429 = sphi 0, %s415
      %s433 = sphi 0, %s433
      %s435 = sphi 0, %s433
      %s436 = sphi 0, %s435
      %s450 = sphi 0, %s436
    $region4: #{frozen_clip_embedder_forward.1} parent=1 // loop_header_branch
      %32 = sbr.rel (%p30) target = $region8
    $region5: #{frozen_clip_embedder_forward.1} parent=1 // loop_body
      %s34 = ssub.s32 %s29, 1
      %s35 = ssub.s32 %s29, 2
      %s36 = sadd.s32 %s29, 1
      %s38 = sadd.s32 %s37, 1
      %p41 = scmp.eq.s32.totalorder %s29, 1
      %p42 = scmp.ne.s32.totalorder %s37, %s39
      %p43 = scmp.eq.s32.totalorder %s29, 0
      %p44 = por %p42, %p43
      %p45 = scmp.ne.s32.totalorder %s37, %s39
      %p46 = scmp.eq.s32.totalorder %s34, 1
      %p47 = por %p45, %p46
      %p48 = scmp.ne.s32.totalorder %s39, %s40
      %p49 = scmp.eq.s32.totalorder %s34, 0
      %p50 = por %p48, %p49
      %p51 = scmp.ne.s32.totalorder %s39, %s40
      %p52 = scmp.eq.s32.totalorder %s35, 1
      %p53 = por %p51, %p52
      %p55 = scmp.ne.s32.totalorder %s40, %s54
      %p56 = scmp.eq.s32.totalorder %s35, 0
      %p57 = por %p55, %p56
      %s59 = sadd.s32 %s58, 1
      %p62 = scmp.eq.s32.totalorder %s29, 1
      %p63 = scmp.ne.s32.totalorder %s58, %s60
      %p64 = scmp.eq.s32.totalorder %s29, 0
      %p65 = por %p63, %p64
      %p66 = scmp.ne.s32.totalorder %s58, %s60
      %p67 = scmp.eq.s32.totalorder %s34, 1
      %p68 = por %p66, %p67
      %p69 = scmp.ne.s32.totalorder %s60, %s61
      %p70 = scmp.eq.s32.totalorder %s34, 0
      %p71 = por %p69, %p70
      %p72 = scmp.ne.s32.totalorder %s60, %s61
      %p73 = scmp.eq.s32.totalorder %s35, 1
      %p74 = por %p72, %p73
      %p76 = scmp.ne.s32.totalorder %s61, %s75
      %p77 = scmp.eq.s32.totalorder %s35, 0
      %p78 = por %p76, %p77
      %s79 = ssub.s32 %s29, %s36
      %p80 = scmp.eq.s32.totalorder %s79, 0
      %s82 = sadd.s32 %s81, 1
      %s83 = scalar_select %p80, %s81, %s82
      %p86 = pneg %p80
      %p87 = scmp.eq.s32.totalorder %s29, 1
      %p88 = por %p86, %p87
      %p89 = scmp.ne.s32.totalorder %s81, %s84
      %p90 = scmp.eq.s32.totalorder %s29, 0
      %p91 = por %p89, %p90
      %p92 = scmp.ne.s32.totalorder %s81, %s84
      %p93 = scmp.eq.s32.totalorder %s34, 1
      %p94 = por %p92, %p93
      %p95 = scmp.ne.s32.totalorder %s84, %s85
      %p96 = scmp.eq.s32.totalorder %s34, 0
      %p97 = por %p95, %p96
      %p98 = scmp.ne.s32.totalorder %s84, %s85
      %p99 = scmp.eq.s32.totalorder %s35, 1
      %p100 = por %p98, %p99
      %p102 = scmp.ne.s32.totalorder %s85, %s101
      %p103 = scmp.eq.s32.totalorder %s35, 0
      %p104 = por %p102, %p103
      %s105 = ssub.s32 %s29, %s36
      %p106 = scmp.eq.s32.totalorder %s105, 0
      %s108 = sadd.s32 %s107, 1
      %s109 = scalar_select %p106, %s107, %s108
      %p112 = pneg %p106
      %p113 = scmp.eq.s32.totalorder %s29, 1
      %p114 = por %p112, %p113
      %p115 = scmp.ne.s32.totalorder %s107, %s110
      %p116 = scmp.eq.s32.totalorder %s29, 0
      %p117 = por %p115, %p116
      %p118 = scmp.ne.s32.totalorder %s107, %s110
      %p119 = scmp.eq.s32.totalorder %s34, 1
      %p120 = por %p118, %p119
      %p121 = scmp.ne.s32.totalorder %s110, %s111
      %p122 = scmp.eq.s32.totalorder %s34, 0
      %p123 = por %p121, %p122
      %p124 = scmp.ne.s32.totalorder %s110, %s111
      %p125 = scmp.eq.s32.totalorder %s35, 1
      %p126 = por %p124, %p125
      %p128 = scmp.ne.s32.totalorder %s111, %s127
      %p129 = scmp.eq.s32.totalorder %s35, 0
      %p130 = por %p128, %p129
      %s131 = ssub.s32 %s29, %s36
      %p132 = scmp.eq.s32.totalorder %s131, 0
      %s134 = sadd.s32 %s133, 1
      %s135 = scalar_select %p132, %s133, %s134
      %p138 = pneg %p132
      %p139 = scmp.eq.s32.totalorder %s29, 1
      %p140 = por %p138, %p139
      %p141 = scmp.ne.s32.totalorder %s133, %s136
      %p142 = scmp.eq.s32.totalorder %s29, 0
      %p143 = por %p141, %p142
      %p144 = scmp.ne.s32.totalorder %s133, %s136
      %p145 = scmp.eq.s32.totalorder %s34, 1
      %p146 = por %p144, %p145
      %p147 = scmp.ne.s32.totalorder %s136, %s137
      %p148 = scmp.eq.s32.totalorder %s34, 0
      %p149 = por %p147, %p148
      %p150 = scmp.ne.s32.totalorder %s136, %s137
      %p151 = scmp.eq.s32.totalorder %s35, 1
      %p152 = por %p150, %p151
      %p154 = scmp.ne.s32.totalorder %s137, %s153
      %p155 = scmp.eq.s32.totalorder %s35, 0
      %p156 = por %p154, %p155
      %s157 = ssub.s32 %s29, %s36
      %p158 = scmp.eq.s32.totalorder %s157, 0
      %s160 = sadd.s32 %s159, 1
      %s161 = scalar_select %p158, %s159, %s160
      %p164 = pneg %p158
      %p165 = scmp.eq.s32.totalorder %s29, 1
      %p166 = por %p164, %p165
      %p167 = scmp.ne.s32.totalorder %s159, %s162
      %p168 = scmp.eq.s32.totalorder %s29, 0
      %p169 = por %p167, %p168
      %p170 = scmp.ne.s32.totalorder %s159, %s162
      %p171 = scmp.eq.s32.totalorder %s34, 1
      %p172 = por %p170, %p171
      %p173 = scmp.ne.s32.totalorder %s162, %s163
      %p174 = scmp.eq.s32.totalorder %s34, 0
      %p175 = por %p173, %p174
      %p176 = scmp.ne.s32.totalorder %s162, %s163
      %p177 = scmp.eq.s32.totalorder %s35, 1
      %p178 = por %p176, %p177
      %p180 = scmp.ne.s32.totalorder %s163, %s179
      %p181 = scmp.eq.s32.totalorder %s35, 0
      %p182 = por %p180, %p181
      %s183 = ssub.s32 %s29, %s36
      %p184 = scmp.eq.s32.totalorder %s183, 0
      %s186 = sadd.s32 %s185, 1
      %s187 = scalar_select %p184, %s185, %s186
      %p190 = pneg %p184
      %p191 = scmp.eq.s32.totalorder %s29, 1
      %p192 = por %p190, %p191
      %p193 = scmp.ne.s32.totalorder %s185, %s188
      %p194 = scmp.eq.s32.totalorder %s29, 0
      %p195 = por %p193, %p194
      %p196 = scmp.ne.s32.totalorder %s185, %s188
      %p197 = scmp.eq.s32.totalorder %s34, 1
      %p198 = por %p196, %p197
      %p199 = scmp.ne.s32.totalorder %s188, %s189
      %p200 = scmp.eq.s32.totalorder %s34, 0
      %p201 = por %p199, %p200
      %p202 = scmp.ne.s32.totalorder %s188, %s189
      %p203 = scmp.eq.s32.totalorder %s35, 1
      %p204 = por %p202, %p203
      %p206 = scmp.ne.s32.totalorder %s189, %s205
      %p207 = scmp.eq.s32.totalorder %s35, 0
      %p208 = por %p206, %p207
      %s209 = ssub.s32 %s29, %s36
      %p210 = scmp.eq.s32.totalorder %s209, 0
      %s212 = sadd.s32 %s211, 1
      %s213 = scalar_select %p210, %s211, %s212
      %p216 = pneg %p210
      %p217 = scmp.eq.s32.totalorder %s29, 1
      %p218 = por %p216, %p217
      %p219 = scmp.ne.s32.totalorder %s211, %s214
      %p220 = scmp.eq.s32.totalorder %s29, 0
      %p221 = por %p219, %p220
      %p222 = scmp.ne.s32.totalorder %s211, %s214
      %p223 = scmp.eq.s32.totalorder %s34, 1
      %p224 = por %p222, %p223
      %p225 = scmp.ne.s32.totalorder %s214, %s215
      %p226 = scmp.eq.s32.totalorder %s34, 0
      %p227 = por %p225, %p226
      %p228 = scmp.ne.s32.totalorder %s214, %s215
      %p229 = scmp.eq.s32.totalorder %s35, 1
      %p230 = por %p228, %p229
      %p232 = scmp.ne.s32.totalorder %s215, %s231
      %p233 = scmp.eq.s32.totalorder %s35, 0
      %p234 = por %p232, %p233
      %s235 = ssub.s32 %s29, %s36
      %p236 = scmp.eq.s32.totalorder %s235, 0
      %s238 = sadd.s32 %s237, 1
      %s239 = scalar_select %p236, %s237, %s238
      %p242 = pneg %p236
      %p243 = scmp.eq.s32.totalorder %s29, 1
      %p244 = por %p242, %p243
      %p245 = scmp.ne.s32.totalorder %s237, %s240
      %p246 = scmp.eq.s32.totalorder %s29, 0
      %p247 = por %p245, %p246
      %p248 = scmp.ne.s32.totalorder %s237, %s240
      %p249 = scmp.eq.s32.totalorder %s34, 1
      %p250 = por %p248, %p249
      %p251 = scmp.ne.s32.totalorder %s240, %s241
      %p252 = scmp.eq.s32.totalorder %s34, 0
      %p253 = por %p251, %p252
      %p254 = scmp.ne.s32.totalorder %s240, %s241
      %p255 = scmp.eq.s32.totalorder %s35, 1
      %p256 = por %p254, %p255
      %p258 = scmp.ne.s32.totalorder %s241, %s257
      %p259 = scmp.eq.s32.totalorder %s35, 0
      %p260 = por %p258, %p259
      %s261 = ssub.s32 %s29, %s36
      %p262 = scmp.eq.s32.totalorder %s261, 0
      %s264 = sadd.s32 %s263, 1
      %s265 = scalar_select %p262, %s263, %s264
      %p268 = pneg %p262
      %p269 = scmp.eq.s32.totalorder %s29, 1
      %p270 = por %p268, %p269
      %p271 = scmp.ne.s32.totalorder %s263, %s266
      %p272 = scmp.eq.s32.totalorder %s29, 0
      %p273 = por %p271, %p272
      %p274 = scmp.ne.s32.totalorder %s263, %s266
      %p275 = scmp.eq.s32.totalorder %s34, 1
      %p276 = por %p274, %p275
      %p277 = scmp.ne.s32.totalorder %s266, %s267
      %p278 = scmp.eq.s32.totalorder %s34, 0
      %p279 = por %p277, %p278
      %p280 = scmp.ne.s32.totalorder %s266, %s267
      %p281 = scmp.eq.s32.totalorder %s35, 1
      %p282 = por %p280, %p281
      %p284 = scmp.ne.s32.totalorder %s267, %s283
      %p285 = scmp.eq.s32.totalorder %s35, 0
      %p286 = por %p284, %p285
      %s287 = ssub.s32 %s29, %s36
      %p288 = scmp.eq.s32.totalorder %s287, 0
      %s290 = sadd.s32 %s289, 1
      %s291 = scalar_select %p288, %s289, %s290
      %p294 = pneg %p288
      %p295 = scmp.eq.s32.totalorder %s29, 1
      %p296 = por %p294, %p295
      %p297 = scmp.ne.s32.totalorder %s289, %s292
      %p298 = scmp.eq.s32.totalorder %s29, 0
      %p299 = por %p297, %p298
      %p300 = scmp.ne.s32.totalorder %s289, %s292
      %p301 = scmp.eq.s32.totalorder %s34, 1
      %p302 = por %p300, %p301
      %p303 = scmp.ne.s32.totalorder %s292, %s293
      %p304 = scmp.eq.s32.totalorder %s34, 0
      %p305 = por %p303, %p304
      %p306 = scmp.ne.s32.totalorder %s292, %s293
      %p307 = scmp.eq.s32.totalorder %s35, 1
      %p308 = por %p306, %p307
      %p310 = scmp.ne.s32.totalorder %s293, %s309
      %p311 = scmp.eq.s32.totalorder %s35, 0
      %p312 = por %p310, %p311
      %s313 = ssub.s32 %s29, %s36
      %p314 = scmp.eq.s32.totalorder %s313, 0
      %s316 = sadd.s32 %s315, 1
      %s317 = scalar_select %p314, %s315, %s316
      %p320 = pneg %p314
      %p321 = scmp.eq.s32.totalorder %s29, 1
      %p322 = por %p320, %p321
      %p323 = scmp.ne.s32.totalorder %s315, %s318
      %p324 = scmp.eq.s32.totalorder %s29, 0
      %p325 = por %p323, %p324
      %p326 = scmp.ne.s32.totalorder %s315, %s318
      %p327 = scmp.eq.s32.totalorder %s34, 1
      %p328 = por %p326, %p327
      %p329 = scmp.ne.s32.totalorder %s318, %s319
      %p330 = scmp.eq.s32.totalorder %s34, 0
      %p331 = por %p329, %p330
      %p332 = scmp.ne.s32.totalorder %s318, %s319
      %p333 = scmp.eq.s32.totalorder %s35, 1
      %p334 = por %p332, %p333
      %p336 = scmp.ne.s32.totalorder %s319, %s335
      %p337 = scmp.eq.s32.totalorder %s35, 0
      %p338 = por %p336, %p337
      %s339 = ssub.s32 %s29, %s36
      %p340 = scmp.eq.s32.totalorder %s339, 0
      %s342 = sadd.s32 %s341, 1
      %s343 = scalar_select %p340, %s341, %s342
      %p346 = pneg %p340
      %p347 = scmp.eq.s32.totalorder %s29, 1
      %p348 = por %p346, %p347
      %p349 = scmp.ne.s32.totalorder %s341, %s344
      %p350 = scmp.eq.s32.totalorder %s29, 0
      %p351 = por %p349, %p350
      %p352 = scmp.ne.s32.totalorder %s341, %s344
      %p353 = scmp.eq.s32.totalorder %s34, 1
      %p354 = por %p352, %p353
      %p355 = scmp.ne.s32.totalorder %s344, %s345
      %p356 = scmp.eq.s32.totalorder %s34, 0
      %p357 = por %p355, %p356
      %p358 = scmp.ne.s32.totalorder %s344, %s345
      %p359 = scmp.eq.s32.totalorder %s35, 1
      %p360 = por %p358, %p359
      %p362 = scmp.ne.s32.totalorder %s345, %s361
      %p363 = scmp.eq.s32.totalorder %s35, 0
      %p364 = por %p362, %p363
      %s365 = ssub.s32 %s29, %s36
      %p366 = scmp.eq.s32.totalorder %s365, 0
      %s368 = sadd.s32 %s367, 1
      %s369 = scalar_select %p366, %s367, %s368
      %p372 = pneg %p366
      %p373 = scmp.eq.s32.totalorder %s29, 1
      %p374 = por %p372, %p373
      %p375 = scmp.ne.s32.totalorder %s367, %s370
      %p376 = scmp.eq.s32.totalorder %s29, 0
      %p377 = por %p375, %p376
      %p378 = scmp.ne.s32.totalorder %s367, %s370
      %p379 = scmp.eq.s32.totalorder %s34, 1
      %p380 = por %p378, %p379
      %p381 = scmp.ne.s32.totalorder %s370, %s371
      %p382 = scmp.eq.s32.totalorder %s34, 0
      %p383 = por %p381, %p382
      %p384 = scmp.ne.s32.totalorder %s370, %s371
      %p385 = scmp.eq.s32.totalorder %s35, 1
      %p386 = por %p384, %p385
      %p388 = scmp.ne.s32.totalorder %s371, %s387
      %p389 = scmp.eq.s32.totalorder %s35, 0
      %p390 = por %p388, %p389
      %s392 = sadd.s32 %s391, 1
      %p395 = scmp.eq.s32.totalorder %s29, 1
      %p396 = scmp.ne.s32.totalorder %s391, %s393
      %p397 = scmp.eq.s32.totalorder %s29, 0
      %p398 = por %p396, %p397
      %p399 = scmp.ne.s32.totalorder %s391, %s393
      %p400 = scmp.eq.s32.totalorder %s34, 1
      %p401 = por %p399, %p400
      %p402 = scmp.ne.s32.totalorder %s393, %s394
      %p403 = scmp.eq.s32.totalorder %s34, 0
      %p404 = por %p402, %p403
      %p405 = scmp.ne.s32.totalorder %s393, %s394
      %p406 = scmp.eq.s32.totalorder %s35, 1
      %p407 = por %p405, %p406
      %p409 = scmp.ne.s32.totalorder %s394, %s408
      %p410 = scmp.eq.s32.totalorder %s35, 0
      %p411 = por %p409, %p410
      %s413 = sadd.s32 %s412, 1
      %p416 = scmp.eq.s32.totalorder %s29, 1
      %p417 = scmp.ne.s32.totalorder %s412, %s414
      %p418 = scmp.eq.s32.totalorder %s29, 0
      %p419 = por %p417, %p418
      %p420 = scmp.ne.s32.totalorder %s412, %s414
      %p421 = scmp.eq.s32.totalorder %s34, 1
      %p422 = por %p420, %p421
      %p423 = scmp.ne.s32.totalorder %s414, %s415
      %p424 = scmp.eq.s32.totalorder %s34, 0
      %p425 = por %p423, %p424
      %p426 = scmp.ne.s32.totalorder %s414, %s415
      %p427 = scmp.eq.s32.totalorder %s35, 1
      %p428 = por %p426, %p427
      %p430 = scmp.ne.s32.totalorder %s415, %s429
      %p431 = scmp.eq.s32.totalorder %s35, 0
      %p432 = por %p430, %p431
      %s434 = sadd.s32 %s433, 1
      %p437 = scmp.eq.s32.totalorder %s29, 1
      %p438 = scmp.ne.s32.totalorder %s433, %s435
      %p439 = scmp.eq.s32.totalorder %s29, 0
      %p440 = por %p438, %p439
      %p441 = scmp.ne.s32.totalorder %s433, %s435
      %p442 = scmp.eq.s32.totalorder %s34, 1
      %p443 = por %p441, %p442
      %p444 = scmp.ne.s32.totalorder %s435, %s436
      %p445 = scmp.eq.s32.totalorder %s34, 0
      %p446 = por %p444, %p445
      %p447 = scmp.ne.s32.totalorder %s435, %s436
      %p448 = scmp.eq.s32.totalorder %s35, 1
      %p449 = por %p447, %p448
      %p451 = scmp.ne.s32.totalorder %s436, %s450
      %p452 = scmp.eq.s32.totalorder %s35, 0
      %p453 = por %p451, %p452
      %p454 = scmp.le.s32.totalorder 1, %s29
      %p455 = scmp.lt.s32.totalorder %s29, 3
      %p456 = pnand %p454, %p455
      %p457 = pneg %p456
      // Predicated region
      $region9: #{frozen_clip_embedder_forward.1} parent=5 // pred_check
        _
      $region10: #{frozen_clip_embedder_forward.1} parent=5 // pred_check_branch
        %459 = sbr.rel (%p456) target = $region12
      $region11: #{frozen_clip_embedder_forward.1} parent=5 // pred_region
        %s460 = ssub.s32 %s29, 1
        // Predicated region
        $region13: #{frozen_clip_embedder_forward.1} parent=11 // pred_check
          %p461 = pneg %p50
        $region14: #{frozen_clip_embedder_forward.1} parent=11 // pred_check_branch
          %463 = sbr.rel (%p461) target = $region16
        $region15: #{frozen_clip_embedder_forward.1} parent=11 // pred_region
          _
        $region16: #{frozen_clip_embedder_forward.1} parent=11 // pred_fallthru
          _
        // Predicated region
        $region17: #{frozen_clip_embedder_forward.1} parent=11 // pred_check
          %p464 = pneg %p71
        $region18: #{frozen_clip_embedder_forward.1} parent=11 // pred_check_branch
          %466 = sbr.rel (%p464) target = $region20
        $region19: #{frozen_clip_embedder_forward.1} parent=11 // pred_region
          _
        $region20: #{frozen_clip_embedder_forward.1} parent=11 // pred_fallthru
          _
        // Predicated region
        $region21: #{frozen_clip_embedder_forward.1} parent=11 // pred_check
          %p467 = pneg %p404
        $region22: #{frozen_clip_embedder_forward.1} parent=11 // pred_check_branch
          %469 = sbr.rel (%p467) target = $region24
        $region23: #{frozen_clip_embedder_forward.1} parent=11 // pred_region
          _
        $region24: #{frozen_clip_embedder_forward.1} parent=11 // pred_fallthru
          _
        // Predicated region
        $region25: #{frozen_clip_embedder_forward.1} parent=11 // pred_check
          %p470 = pneg %p425
        $region26: #{frozen_clip_embedder_forward.1} parent=11 // pred_check_branch
          %472 = sbr.rel (%p470) target = $region28
        $region27: #{frozen_clip_embedder_forward.1} parent=11 // pred_region
          _
        $region28: #{frozen_clip_embedder_forward.1} parent=11 // pred_fallthru
          _
      $region12: #{frozen_clip_embedder_forward.1} parent=5 // pred_fallthru
        _
      %p473 = scmp.lt.s32.totalorder %s29, 2
      // Predicated region
      $region29: #{frozen_clip_embedder_forward.1} parent=5 // pred_check
        %p474 = pneg %p473
      $region30: #{frozen_clip_embedder_forward.1} parent=5 // pred_check_branch
        %476 = sbr.rel (%p474) target = $region32
      $region31: #{frozen_clip_embedder_forward.1} parent=5 // pred_region
        // Predicated region
        $region33: #{frozen_clip_embedder_forward.1} parent=31 // pred_check
          %p477 = pneg %p91
        $region34: #{frozen_clip_embedder_forward.1} parent=31 // pred_check_branch
          %479 = sbr.rel (%p477) target = $region36
        $region35: #{frozen_clip_embedder_forward.1} parent=31 // pred_region
          %p480 = scmp.lt.s32.totalorder %s29, 1
          %s481 = scalar_select %p480, %s29, 1
          %s482 = scalar_lea.vmem %s2, %s481
        $region36: #{frozen_clip_embedder_forward.1} parent=31 // pred_fallthru
          _
        // Predicated region
        $region37: #{frozen_clip_embedder_forward.1} parent=31 // pred_check
          %p483 = pneg %p117
        $region38: #{frozen_clip_embedder_forward.1} parent=31 // pred_check_branch
          %485 = sbr.rel (%p483) target = $region40
        $region39: #{frozen_clip_embedder_forward.1} parent=31 // pred_region
          %p486 = scmp.lt.s32.totalorder %s29, 1
          %s487 = scalar_select %p486, %s29, 1
          %s488 = scalar_lea.vmem %s3, %s487
        $region40: #{frozen_clip_embedder_forward.1} parent=31 // pred_fallthru
          _
        // Predicated region
        $region41: #{frozen_clip_embedder_forward.1} parent=31 // pred_check
          %p489 = pneg %p143
        $region42: #{frozen_clip_embedder_forward.1} parent=31 // pred_check_branch
          %491 = sbr.rel (%p489) target = $region44
        $region43: #{frozen_clip_embedder_forward.1} parent=31 // pred_region
          %s492 = sand.u32 %s133, 1
          %s493 = scalar_lea.sflag [#allocation4], %s492
          %s494 = sand.u32 %s133, 1
          %s495 = smul.addr %s494, 192
          %s496 = scalar_lea.vmem [#allocation3], %s495
          %s498 = ssub.s32 3072, 3072
          %499 = vsyncadd %s493, %s498
          %s500 = smul.addr %s29, 48
          %s501 = smul.addr %s500, 64
          %s502 = scalar_lea.hbm %s4, %s501
          %s503 = sshll.u32 %s496, 4
          %s504 = int_to_ptr.vmem [resolvable:$true] %s503
          %509 = dma.hbm_to_vmem [thread:$0]  %s502, 3072, %s504, %s493, 192, 192, 12
        $region44: #{frozen_clip_embedder_forward.1} parent=31 // pred_fallthru
          _
        // Predicated region
        $region45: #{frozen_clip_embedder_forward.1} parent=31 // pred_check
          %p510 = pneg %p169
        $region46: #{frozen_clip_embedder_forward.1} parent=31 // pred_check_branch
          %512 = sbr.rel (%p510) target = $region48
        $region47: #{frozen_clip_embedder_forward.1} parent=31 // pred_region
          %p513 = scmp.lt.s32.totalorder %s29, 1
          %s514 = scalar_select %p513, %s29, 1
          %s515 = smul.addr %s514, 3
          %s516 = scalar_lea.vmem %s5, %s515
        $region48: #{frozen_clip_embedder_forward.1} parent=31 // pred_fallthru
          _
        // Predicated region
        $region49: #{frozen_clip_embedder_forward.1} parent=31 // pred_check
          %p517 = pneg %p195
        $region50: #{frozen_clip_embedder_forward.1} parent=31 // pred_check_branch
          %519 = sbr.rel (%p517) target = $region52
        $region51: #{frozen_clip_embedder_forward.1} parent=31 // pred_region
          %p520 = scmp.lt.s32.totalorder %s29, 1
          %s521 = scalar_select %p520, %s29, 1
          %s522 = smul.addr %s521, 16
          %s523 = smul.addr %s522, 4
          %s524 = scalar_lea.vmem %s6, %s523
        $region52: #{frozen_clip_embedder_forward.1} parent=31 // pred_fallthru
          _
        // Predicated region
        $region53: #{frozen_clip_embedder_forward.1} parent=31 // pred_check
          %p525 = pneg %p221
        $region54: #{frozen_clip_embedder_forward.1} parent=31 // pred_check_branch
          %527 = sbr.rel (%p525) target = $region56
        $region55: #{frozen_clip_embedder_forward.1} parent=31 // pred_region
          %p528 = scmp.lt.s32.totalorder %s29, 1
          %s529 = scalar_select %p528, %s29, 1
          %s530 = scalar_lea.vmem %s7, %s529
        $region56: #{frozen_clip_embedder_forward.1} parent=31 // pred_fallthru
          _
        // Predicated region
        $region57: #{frozen_clip_embedder_forward.1} parent=31 // pred_check
          %p531 = pneg %p247
        $region58: #{frozen_clip_embedder_forward.1} parent=31 // pred_check_branch
          %533 = sbr.rel (%p531) target = $region60
        $region59: #{frozen_clip_embedder_forward.1} parent=31 // pred_region
          %p534 = scmp.lt.s32.totalorder %s29, 1
          %s535 = scalar_select %p534, %s29, 1
          %s536 = scalar_lea.vmem %s8, %s535
        $region60: #{frozen_clip_embedder_forward.1} parent=31 // pred_fallthru
          _
        // Predicated region
        $region61: #{frozen_clip_embedder_forward.1} parent=31 // pred_check
          %p537 = pneg %p273
        $region62: #{frozen_clip_embedder_forward.1} parent=31 // pred_check_branch
          %539 = sbr.rel (%p537) target = $region64
        $region63: #{frozen_clip_embedder_forward.1} parent=31 // pred_region
          %p540 = scmp.lt.s32.totalorder %s29, 1
          %s541 = scalar_select %p540, %s29, 1
          %s542 = scalar_lea.vmem %s9, %s541
        $region64: #{frozen_clip_embedder_forward.1} parent=31 // pred_fallthru
          _
        // Predicated region
        $region65: #{frozen_clip_embedder_forward.1} parent=31 // pred_check
          %p543 = pneg %p299
        $region66: #{frozen_clip_embedder_forward.1} parent=31 // pred_check_branch
          %545 = sbr.rel (%p543) target = $region68
        $region67: #{frozen_clip_embedder_forward.1} parent=31 // pred_region
          %s546 = sand.u32 %s29, 1
          %s547 = scalar_lea.sflag [#allocation7], %s546
          %s548 = sand.u32 %s289, 1
          %s549 = smul.addr %s548, 256
          %s550 = scalar_lea.vmem [#allocation6], %s549
          %s552 = ssub.s32 4096, 4096
          %553 = vsyncadd %s547, %s552
          %s554 = smul.addr %s29, 64
          %s555 = smul.addr %s554, 64
          %s556 = scalar_lea.hbm %s10, %s555
          %s557 = sshll.u32 %s550, 4
          %s558 = int_to_ptr.vmem [resolvable:$true] %s557
          %563 = dma.hbm_to_vmem [thread:$0]  %s556, 4096, %s558, %s547, 256, 256, 16
        $region68: #{frozen_clip_embedder_forward.1} parent=31 // pred_fallthru
          _
        // Predicated region
        $region69: #{frozen_clip_embedder_forward.1} parent=31 // pred_check
          %p564 = pneg %p325
        $region70: #{frozen_clip_embedder_forward.1} parent=31 // pred_check_branch
          %566 = sbr.rel (%p564) target = $region72
        $region71: #{frozen_clip_embedder_forward.1} parent=31 // pred_region
          %p567 = scmp.lt.s32.totalorder %s29, 1
          %s568 = scalar_select %p567, %s29, 1
          %s569 = smul.addr %s568, 4
          %s570 = scalar_lea.vmem %s11, %s569
        $region72: #{frozen_clip_embedder_forward.1} parent=31 // pred_fallthru
          _
        // Predicated region
        $region73: #{frozen_clip_embedder_forward.1} parent=31 // pred_check
          %p571 = pneg %p351
        $region74: #{frozen_clip_embedder_forward.1} parent=31 // pred_check_branch
          %573 = sbr.rel (%p571) target = $region76
        $region75: #{frozen_clip_embedder_forward.1} parent=31 // pred_region
          %s574 = sand.u32 %s29, 1
          %s575 = scalar_lea.sflag [#allocation7], %s574
          %s576 = sand.u32 %s341, 1
          %s577 = smul.addr %s576, 256
          %s578 = scalar_lea.vmem [#allocation8], %s577
          %s580 = ssub.s32 4096, 4096
          %581 = vsyncadd %s575, %s580
          %s582 = smul.addr %s29, 64
          %s583 = smul.addr %s582, 64
          %s584 = scalar_lea.hbm %s12, %s583
          %s585 = sshll.u32 %s578, 4
          %s586 = int_to_ptr.vmem [resolvable:$true] %s585
          %591 = dma.hbm_to_vmem [thread:$0]  %s584, 4096, %s586, %s575, 64, 64, 4
        $region76: #{frozen_clip_embedder_forward.1} parent=31 // pred_fallthru
          _
        // Predicated region
        $region77: #{frozen_clip_embedder_forward.1} parent=31 // pred_check
          %p592 = pneg %p377
        $region78: #{frozen_clip_embedder_forward.1} parent=31 // pred_check_branch
          %594 = sbr.rel (%p592) target = $region80
        $region79: #{frozen_clip_embedder_forward.1} parent=31 // pred_region
          %p595 = scmp.lt.s32.totalorder %s29, 1
          %s596 = scalar_select %p595, %s29, 1
          %s597 = scalar_lea.vmem %s13, %s596
        $region80: #{frozen_clip_embedder_forward.1} parent=31 // pred_fallthru
          _
      $region32: #{frozen_clip_embedder_forward.1} parent=5 // pred_fallthru
        _
      %p598 = scmp.le.s32.totalorder 1, %s29
      %p599 = scmp.lt.s32.totalorder %s29, 3
      %p600 = pnand %p598, %p599
      %p601 = pneg %p600
      // Predicated region
      $region81: #{frozen_clip_embedder_forward.1} parent=5 // pred_check
        _
      $region82: #{frozen_clip_embedder_forward.1} parent=5 // pred_check_branch
        %603 = sbr.rel (%p600) target = $region84
      $region83: #{frozen_clip_embedder_forward.1} parent=5 // pred_region
        %s604 = ssub.s32 %s29, 1
        %s605 = sand.u32 %s136, 1
        %s606 = scalar_lea.sflag [#allocation4], %s605
        %s607 = sand.u32 %s136, 1
        %s608 = smul.addr %s607, 192
        %s609 = scalar_lea.vmem [#allocation3], %s608
        // Predicated region
        $region85: #{frozen_clip_embedder_forward.1} parent=83 // pred_check
          %p610 = pneg %p149
        $region86: #{frozen_clip_embedder_forward.1} parent=83 // pred_check_branch
          %612 = sbr.rel (%p610) target = $region88
        $region87: #{frozen_clip_embedder_forward.1} parent=83 // pred_region
          %613 = dma.done %s606, 3072
        $region88: #{frozen_clip_embedder_forward.1} parent=83 // pred_fallthru
          _
        %s614 = sand.u32 %s34, 1
        %s615 = scalar_lea.sflag [#allocation7], %s614
        %s616 = sand.u32 %s292, 1
        %s617 = smul.addr %s616, 256
        %s618 = scalar_lea.vmem [#allocation6], %s617
        // Predicated region
        $region89: #{frozen_clip_embedder_forward.1} parent=83 // pred_check
          %p619 = pneg %p305
        $region90: #{frozen_clip_embedder_forward.1} parent=83 // pred_check_branch
          %621 = sbr.rel (%p619) target = $region92
        $region91: #{frozen_clip_embedder_forward.1} parent=83 // pred_region
          %622 = dma.done %s615, 4096
        $region92: #{frozen_clip_embedder_forward.1} parent=83 // pred_fallthru
          _
        %s623 = sand.u32 %s34, 1
        %s624 = scalar_lea.sflag [#allocation7], %s623
        %s625 = sand.u32 %s344, 1
        %s626 = smul.addr %s625, 256
        %s627 = scalar_lea.vmem [#allocation8], %s626
        // Predicated region
        $region93: #{frozen_clip_embedder_forward.1} parent=83 // pred_check
          %p628 = pneg %p357
        $region94: #{frozen_clip_embedder_forward.1} parent=83 // pred_check_branch
          %630 = sbr.rel (%p628) target = $region96
        $region95: #{frozen_clip_embedder_forward.1} parent=83 // pred_region
          %631 = dma.done %s624, 4096
        $region96: #{frozen_clip_embedder_forward.1} parent=83 // pred_fallthru
          _
        %p632 = pneg %p50
        %p633 = pneg %p47
        %p634 = pneg %p71
        %p635 = pneg %p68
        %p636 = scmp.lt.s32.totalorder %s34, 1
        %s637 = scalar_select %p636, %s34, 1
        %s638 = scalar_lea.vmem %s2, %s637
        %p639 = pneg %p97
        %p640 = pneg %p94
        %p641 = scmp.lt.s32.totalorder %s34, 1
        %s642 = scalar_select %p641, %s34, 1
        %s643 = scalar_lea.vmem %s3, %s642
        %p644 = pneg %p123
        %p645 = pneg %p120
        %s646 = sand.u32 %s136, 1
        %s647 = scalar_lea.sflag [#allocation4], %s646
        %s648 = sand.u32 %s136, 1
        %s649 = smul.addr %s648, 192
        %s650 = scalar_lea.vmem [#allocation3], %s649
        %p651 = pneg %p149
        %p652 = pneg %p146
        %p653 = scmp.lt.s32.totalorder %s34, 1
        %s654 = scalar_select %p653, %s34, 1
        %s655 = smul.addr %s654, 3
        %s656 = scalar_lea.vmem %s5, %s655
        %p657 = pneg %p175
        %p658 = pneg %p172
        %p659 = scmp.lt.s32.totalorder %s34, 1
        %s660 = scalar_select %p659, %s34, 1
        %s661 = smul.addr %s660, 16
        %s662 = smul.addr %s661, 4
        %s663 = scalar_lea.vmem %s6, %s662
        %p664 = pneg %p201
        %p665 = pneg %p198
        %p666 = scmp.lt.s32.totalorder %s34, 1
        %s667 = scalar_select %p666, %s34, 1
        %s668 = scalar_lea.vmem %s7, %s667
        %p669 = pneg %p227
        %p670 = pneg %p224
        %p671 = scmp.lt.s32.totalorder %s34, 1
        %s672 = scalar_select %p671, %s34, 1
        %s673 = scalar_lea.vmem %s8, %s672
        %p674 = pneg %p253
        %p675 = pneg %p250
        %p676 = scmp.lt.s32.totalorder %s34, 1
        %s677 = scalar_select %p676, %s34, 1
        %s678 = scalar_lea.vmem %s9, %s677
        %p679 = pneg %p279
        %p680 = pneg %p276
        %s681 = sand.u32 %s34, 1
        %s682 = scalar_lea.sflag [#allocation7], %s681
        %s683 = sand.u32 %s292, 1
        %s684 = smul.addr %s683, 256
        %s685 = scalar_lea.vmem [#allocation6], %s684
        %p686 = pneg %p305
        %p687 = pneg %p302
        %p688 = scmp.lt.s32.totalorder %s34, 1
        %s689 = scalar_select %p688, %s34, 1
        %s690 = smul.addr %s689, 4
        %s691 = scalar_lea.vmem %s11, %s690
        %p692 = pneg %p331
        %p693 = pneg %p328
        %s694 = sand.u32 %s34, 1
        %s695 = scalar_lea.sflag [#allocation7], %s694
        %s696 = sand.u32 %s344, 1
        %s697 = smul.addr %s696, 256
        %s698 = scalar_lea.vmem [#allocation8], %s697
        %p699 = pneg %p357
        %p700 = pneg %p354
        %p701 = scmp.lt.s32.totalorder %s34, 1
        %s702 = scalar_select %p701, %s34, 1
        %s703 = scalar_lea.vmem %s13, %s702
        %p704 = pneg %p383
        %p705 = pneg %p380
        %p706 = pneg %p404
        %p707 = pneg %p401
        %p708 = pneg %p425
        %p709 = pneg %p422
        %p710 = pneg %p446
        %p711 = pneg %p443
        %p712 = scmp.lt.s32.totalorder %s34, 1
        %s713 = scalar_select %p712, %s34, 1
        %s714 = scalar_lea.vmem %s2, %s713
        %p715 = scmp.lt.s32.totalorder %s34, 1
        %s716 = scalar_select %p715, %s34, 1
        %s717 = scalar_lea.vmem %s3, %s716
        %p718 = scmp.lt.s32.totalorder %s34, 1
        %s719 = scalar_select %p718, %s34, 1
        %s720 = smul.addr %s719, 3
        %s721 = scalar_lea.vmem %s5, %s720
        %p722 = scmp.lt.s32.totalorder %s34, 1
        %s723 = scalar_select %p722, %s34, 1
        %s724 = smul.addr %s723, 16
        %s725 = smul.addr %s724, 4
        %s726 = scalar_lea.vmem %s6, %s725
        %p727 = scmp.lt.s32.totalorder %s34, 1
        %s728 = scalar_select %p727, %s34, 1
        %s729 = scalar_lea.vmem %s7, %s728
        %p730 = scmp.lt.s32.totalorder %s34, 1
        %s731 = scalar_select %p730, %s34, 1
        %s732 = scalar_lea.vmem %s8, %s731
        %p733 = scmp.lt.s32.totalorder %s34, 1
        %s734 = scalar_select %p733, %s34, 1
        %s735 = scalar_lea.vmem %s9, %s734
        %p736 = scmp.lt.s32.totalorder %s34, 1
        %s737 = scalar_select %p736, %s34, 1
        %s738 = smul.addr %s737, 4
        %s739 = scalar_lea.vmem %s11, %s738
        %p740 = scmp.lt.s32.totalorder %s34, 1
        %s741 = scalar_select %p740, %s34, 1
        %s742 = scalar_lea.vmem %s13, %s741
        %p744 = scmp.eq.s32.totalorder %s34, 0
        // Predicated region
        $region97: #{frozen_clip_embedder_forward.1} parent=83 // pred_check
          %p745 = pneg %p744
        $region98: #{frozen_clip_embedder_forward.1} parent=83 // pred_check_branch
          %747 = sbr.rel (%p745) target = $region100
        $region99: #{frozen_clip_embedder_forward.1} parent=83 // pred_region
          %v748 = vld [vmem:[%s0] sm:$0xff]
          %v749 = vld [vmem:[%s0 + $0x8] sm:$0xff]
          %750 = vst [vmem:[#allocation2] sm:$0xff] %v748
          %751 = vst [vmem:[#allocation2 + $0x8] sm:$0xff] %v749
        $region100: #{frozen_clip_embedder_forward.1} parent=83 // pred_fallthru
          _
        %v752 = vld [vmem:[#allocation2] sm:$0xff]
        %v753 = vld [vmem:[#allocation2 + $0x8] sm:$0xff]
        %v754 = vld [vmem:[%s714] sm:$0x1]
        %v755 = vld [vmem:[%s717] sm:$0x1]
        %756 = vadd.xlane.f32.xlu0 %v752
        %v757 = vpop.xlane.xlu0 %756
        %758 = vadd.xlane.f32.xlu0 %v753
        %v759 = vpop.xlane.xlu0 %758
        %v760 = vrcp.pop 128.0
        %v761 = vmul.f32 %v757, %v760
        %v762 = vmul.f32 %v759, %v760
        %v763 = vmul.f32 %v752, %v752
        %v764 = vmul.f32 %v753, %v753
        %765 = vadd.xlane.f32.xlu0 %v763
        %v766 = vpop.xlane.xlu0 %765
        %767 = vadd.xlane.f32.xlu0 %v764
        %v768 = vpop.xlane.xlu0 %767
        %v769 = vmul.f32 %v766, %v760
        %v770 = vmul.f32 %v768, %v760
        %v771 = vmul.f32 %v761, %v761
        %v772 = vmul.f32 %v762, %v762
        %v773 = vsub.f32 %v769, %v771
        %v774 = vsub.f32 %v770, %v772
        %v775 = vsub.f32 %v752, %v761
        %v776 = vsub.f32 %v753, %v762
        %v777 = vadd.f32 %v773, 1e-05
        %v778 = vadd.f32 %v774, 1e-05
        %v779 = vrsqrt.pop %v777
        %v780 = vrsqrt.pop %v778
        %v781 = vmul.f32 %v775, %v779
        %v782 = vmul.f32 %v776, %v780
        %v784 = vlaneseq
        %v785 = vshrl.u32 %v784, 7
        %v786 = vsub.s32 0, %v785
        %v787 = vrot.slane %v754, %v786
        %v789 = vmul.f32 %v781, %v787
        %v790 = vmul.f32 %v782, %v787
        %v792 = vlaneseq
        %v793 = vshrl.u32 %v792, 7
        %v794 = vsub.s32 0, %v793
        %v795 = vrot.slane %v755, %v794
        %v797 = vadd.f32 %v789, %v795
        %v798 = vadd.f32 %v790, %v795
        %v799 = vpack.c.bf16 %v798, %v797
        %v800 = vld [vmem:[%s609] sm:$0xff]
        %v801 = vld [vmem:[%s609 + $0x8] sm:$0xf]
        %v802 = vld [vmem:[%s609 + $0xc] sm:$0xff]
        %v803 = vld [vmem:[%s609 + $0x14] sm:$0xf]
        %v804 = vld [vmem:[%s609 + $0x18] sm:$0xff]
        %v805 = vld [vmem:[%s609 + $0x20] sm:$0xf]
        %v806 = vld [vmem:[%s609 + $0x24] sm:$0xff]
        %v807 = vld [vmem:[%s609 + $0x2c] sm:$0xf]
        %v808 = vld [vmem:[%s609 + $0x30] sm:$0xff]
        %v809 = vld [vmem:[%s609 + $0x38] sm:$0xf]
        %v810 = vld [vmem:[%s609 + $0x3c] sm:$0xff]
        %v811 = vld [vmem:[%s609 + $0x44] sm:$0xf]
        %v812 = vld [vmem:[%s609 + $0x48] sm:$0xff]
        %v813 = vld [vmem:[%s609 + $0x50] sm:$0xf]
        %v814 = vld [vmem:[%s609 + $0x54] sm:$0xff]
        %v815 = vld [vmem:[%s609 + $0x5c] sm:$0xf]
        %v816 = vld [vmem:[%s609 + $0x60] sm:$0xff]
        %v817 = vld [vmem:[%s609 + $0x68] sm:$0xf]
        %v818 = vld [vmem:[%s609 + $0x6c] sm:$0xff]
        %v819 = vld [vmem:[%s609 + $0x74] sm:$0xf]
        %v820 = vld [vmem:[%s609 + $0x78] sm:$0xff]
        %v821 = vld [vmem:[%s609 + $0x80] sm:$0xf]
        %v822 = vld [vmem:[%s609 + $0x84] sm:$0xff]
        %v823 = vld [vmem:[%s609 + $0x8c] sm:$0xf]
        %v824 = vld [vmem:[%s609 + $0x90] sm:$0xff]
        %v825 = vld [vmem:[%s609 + $0x98] sm:$0xf]
        %v826 = vld [vmem:[%s609 + $0x9c] sm:$0xff]
        %v827 = vld [vmem:[%s609 + $0xa4] sm:$0xf]
        %v828 = vld [vmem:[%s609 + $0xa8] sm:$0xff]
        %v829 = vld [vmem:[%s609 + $0xb0] sm:$0xf]
        %v830 = vld [vmem:[%s609 + $0xb4] sm:$0xff]
        %v831 = vld [vmem:[%s609 + $0xbc] sm:$0xf]
        %v832 = vld [vmem:[%s721] sm:$0x7]
        %v834 = vlaneseq
        %v835 = vshrl.u32 %v834, 7
        %v836 = vsub.s32 0, %v835
        %v837 = vrot.slane %v832, %v836
        %v838 = vlaneseq
        %v839 = vshrl.u32 %v838, 7
        %v840 = vsub.s32 1, %v839
        %v841 = vrot.slane %v832, %v840
        %v842 = vlaneseq
        %v843 = vshrl.u32 %v842, 7
        %v844 = vsub.s32 2, %v843
        %v845 = vrot.slane %v832, %v844
        %v881 = vunpack.c.l.b16 %v800
        %v882 = vunpack.c.h.b16 %v800
        %v883 = vunpack.c.l.b16 %v801
        %v884 = vunpack.c.l.b16 %v802
        %v885 = vunpack.c.h.b16 %v802
        %v886 = vunpack.c.l.b16 %v803
        %v887 = vunpack.c.l.b16 %v804
        %v888 = vunpack.c.h.b16 %v804
        %v889 = vunpack.c.l.b16 %v805
        %v890 = vunpack.c.l.b16 %v806
        %v891 = vunpack.c.h.b16 %v806
        %v892 = vunpack.c.l.b16 %v807
        %v893 = vunpack.c.l.b16 %v808
        %v894 = vunpack.c.h.b16 %v808
        %v895 = vunpack.c.l.b16 %v809
        %v896 = vunpack.c.l.b16 %v810
        %v897 = vunpack.c.h.b16 %v810
        %v898 = vunpack.c.l.b16 %v811
        %v899 = vunpack.c.l.b16 %v812
        %v900 = vunpack.c.h.b16 %v812
        %v901 = vunpack.c.l.b16 %v813
        %v902 = vunpack.c.l.b16 %v814
        %v903 = vunpack.c.h.b16 %v814
        %v904 = vunpack.c.l.b16 %v815
        %v905 = vunpack.c.l.b16 %v816
        %v906 = vunpack.c.h.b16 %v816
        %v907 = vunpack.c.l.b16 %v817
        %v908 = vunpack.c.l.b16 %v818
        %v909 = vunpack.c.h.b16 %v818
        %v910 = vunpack.c.l.b16 %v819
        %v911 = vunpack.c.l.b16 %v820
        %v912 = vunpack.c.h.b16 %v820
        %v913 = vunpack.c.l.b16 %v821
        %v914 = vunpack.c.l.b16 %v822
        %v915 = vunpack.c.h.b16 %v822
        %v916 = vunpack.c.l.b16 %v823
        %v917 = vunpack.c.l.b16 %v824
        %v918 = vunpack.c.h.b16 %v824
        %v919 = vunpack.c.l.b16 %v825
        %v920 = vunpack.c.l.b16 %v826
        %v921 = vunpack.c.h.b16 %v826
        %v922 = vunpack.c.l.b16 %v827
        %v923 = vunpack.c.l.b16 %v828
        %v924 = vunpack.c.h.b16 %v828
        %v925 = vunpack.c.l.b16 %v829
        %v926 = vunpack.c.l.b16 %v830
        %v927 = vunpack.c.h.b16 %v830
        %v928 = vunpack.c.l.b16 %v831
        %v929 = vpack.c.b16 %v884, %v881
        %v930 = vpack.c.b16 %v885, %v882
        %v931 = vpack.c.b16 %v886, %v883
        %v932 = vpack.c.b16 %v890, %v887
        %v933 = vpack.c.b16 %v891, %v888
        %v934 = vpack.c.b16 %v892, %v889
        %v935 = vpack.c.b16 %v896, %v893
        %v936 = vpack.c.b16 %v897, %v894
        %v937 = vpack.c.b16 %v898, %v895
        %v938 = vpack.c.b16 %v902, %v899
        %v939 = vpack.c.b16 %v903, %v900
        %v940 = vpack.c.b16 %v904, %v901
        %v941 = vpack.c.b16 %v908, %v905
        %v942 = vpack.c.b16 %v909, %v906
        %v943 = vpack.c.b16 %v910, %v907
        %v944 = vpack.c.b16 %v914, %v911
        %v945 = vpack.c.b16 %v915, %v912
        %v946 = vpack.c.b16 %v916, %v913
        %v947 = vpack.c.b16 %v920, %v917
        %v948 = vpack.c.b16 %v921, %v918
        %v949 = vpack.c.b16 %v922, %v919
        %v950 = vpack.c.b16 %v926, %v923
        %v951 = vpack.c.b16 %v927, %v924
        %v952 = vpack.c.b16 %v928, %v925
        %977 = vmatprep.subr.bf16.mxu0 %v930
        %978 = vmatpush1.bf16.msra.mxu0 %v929
        %979 = vmatprep.subr.bf16.mxu0 %v933
        %980 = vmatpush1.bf16.msra.mxu0 %v932
        %981 = vmatprep.subr.bf16.mxu0 %v936
        %982 = vmatpush1.bf16.msra.mxu0 %v935
        %983 = vmatprep.subr.bf16.mxu0 %v939
        %984 = vmatpush1.bf16.msra.mxu0 %v938
        %985 = vmatprep.subr.bf16.mxu0 %v942
        %986 = vmatpush1.bf16.msra.mxu0 %v941
        %987 = vmatprep.subr.bf16.mxu0 %v945
        %988 = vmatpush1.bf16.msra.mxu0 %v944
        %989 = vmatprep.subr.bf16.mxu0 %v948
        %990 = vmatpush1.bf16.msra.mxu0 %v947
        %991 = vmatprep.subr.bf16.mxu0 %v951
        %992 = vmatpush1.bf16.msra.mxu0 %v950
        %993 = vmatprep.subr.bf16.mxu0 0
        %994 = vmatpush1.bf16.msra.mxu0 0
        %995 = vmatprep.subr.bf16.mxu0 0
        %996 = vmatpush1.bf16.msra.mxu0 0
        %997 = vmatprep.subr.bf16.mxu0 0
        %998 = vmatpush1.bf16.msra.mxu0 0
        %999 = vmatprep.subr.bf16.mxu0 0
        %1000 = vmatpush1.bf16.msra.mxu0 0
        %1001 = vmatprep.subr.bf16.mxu0 0
        %1002 = vmatpush1.bf16.msra.mxu0 0
        %1003 = vmatprep.subr.bf16.mxu0 0
        %1004 = vmatpush1.bf16.msra.mxu0 0
        %1005 = vmatprep.subr.bf16.mxu0 0
        %1006 = vmatpush1.bf16.msra.mxu0 0
        %1007 = vmatprep.subr.bf16.mxu0 0
        %1008 = vmatpush1.bf16.msra.mxu0 0
        %1009 = vmatprep.mubr.bf16.mxu0 0
        %1010 = vmatmul.mubr.bf16.gmra.mrb[0].mxu0 %v799
        %v1011 = vpop.f32.mrb[0].mxu0
        %v1012 = vadd.f32 %v837, %v1011
        %v1013 = vpop.f32.mrb[0].mxu0
        %v1014 = vadd.f32 %v841, %v1013
        %v1015 = vpop.f32.mrb[0].mxu0
        %v1016 = vadd.f32 %v837, %v1015
        %v1017 = vpop.f32.mrb[0].mxu0
        %v1018 = vadd.f32 %v841, %v1017
        %1019 = vdwg.mxu0
        %1020 = vmatprep.subr.bf16.mxu0 0
        %1021 = vmatpush1.bf16.msra.mxu0 %v931
        %1022 = vmatprep.subr.bf16.mxu0 0
        %1023 = vmatpush1.bf16.msra.mxu0 %v934
        %1024 = vmatprep.subr.bf16.mxu0 0
        %1025 = vmatpush1.bf16.msra.mxu0 %v937
        %1026 = vmatprep.subr.bf16.mxu0 0
        %1027 = vmatpush1.bf16.msra.mxu0 %v940
        %1028 = vmatprep.subr.bf16.mxu0 0
        %1029 = vmatpush1.bf16.msra.mxu0 %v943
        %1030 = vmatprep.subr.bf16.mxu0 0
        %1031 = vmatpush1.bf16.msra.mxu0 %v946
        %1032 = vmatprep.subr.bf16.mxu0 0
        %1033 = vmatpush1.bf16.msra.mxu0 %v949
        %1034 = vmatprep.subr.bf16.mxu0 0
        %1035 = vmatpush1.bf16.msra.mxu0 %v952
        %1036 = vmatprep.subr.bf16.mxu0 0
        %1037 = vmatpush1.bf16.msra.mxu0 0
        %1038 = vmatprep.subr.bf16.mxu0 0
        %1039 = vmatpush1.bf16.msra.mxu0 0
        %1040 = vmatprep.subr.bf16.mxu0 0
        %1041 = vmatpush1.bf16.msra.mxu0 0
        %1042 = vmatprep.subr.bf16.mxu0 0
        %1043 = vmatpush1.bf16.msra.mxu0 0
        %1044 = vmatprep.subr.bf16.mxu0 0
        %1045 = vmatpush1.bf16.msra.mxu0 0
        %1046 = vmatprep.subr.bf16.mxu0 0
        %1047 = vmatpush1.bf16.msra.mxu0 0
        %1048 = vmatprep.subr.bf16.mxu0 0
        %1049 = vmatpush1.bf16.msra.mxu0 0
        %1050 = vmatprep.subr.bf16.mxu0 0
        %1051 = vmatpush1.bf16.msra.mxu0 0
        %1052 = vmatprep.mubr.bf16.mxu0 0
        %1053 = vmatmul.mubr.bf16.gmra.mrb[0].mxu0 %v799
        %v1054 = vpop.f32.mrb[0].mxu0
        %v1055 = vadd.f32 %v845, %v1054
        %v1056 = vpop.f32.mrb[0].mxu0
        %v1057 = vpop.f32.mrb[0].mxu0
        %v1058 = vadd.f32 %v845, %v1057
        %v1059 = vpop.f32.mrb[0].mxu0
        %1060 = vdwg.mxu0
        %v1061 = vmul.f32 %v1012, 0.17677669
        %v1062 = vmul.f32 %v1016, 0.17677669
        %1065 = vrot.lane.b32.xlu0 %v1061, 96
        %v1066 = vpop.permute.xlu0 %1065
        %1067 = vrot.lane.b32.xlu0 %v1062, 96
        %v1068 = vpop.permute.xlu0 %1067
        %1071 = vrot.lane.b32.xlu0 %v1061, 64
        %v1072 = vpop.permute.xlu0 %1071
        %1073 = vrot.lane.b32.xlu0 %v1062, 64
        %v1074 = vpop.permute.xlu0 %1073
        %1077 = vrot.lane.b32.xlu0 %v1061, 32
        %v1078 = vpop.permute.xlu0 %1077
        %1079 = vrot.lane.b32.xlu0 %v1062, 32
        %v1080 = vpop.permute.xlu0 %1079
        %v1083 = vcombine.low %v1061, %v1072
        %v1084 = vcombine.high %v1061, %v1072
        %v1086 = vunpack.c.l.s4 1983009808
        %v1087 = vunpack.c.0.s8 %v1086
        %v1088 = vlaneseq
        %v1089 = vshrl.u32 %v1088, 7
        %v1090 = vsub.s32 %v1087, %v1089
        %v1091 = vrot.slane %v1083, %v1090
        %v1093 = vunpack.c.l.s4 1983009808
        %v1094 = vunpack.c.0.s8 %v1093
        %v1095 = vlaneseq
        %v1096 = vshrl.u32 %v1095, 7
        %v1097 = vsub.s32 %v1094, %v1096
        %v1098 = vrot.slane %v1084, %v1097
        %v1099 = vcombine.low %v1066, %v1078
        %v1100 = vcombine.high %v1066, %v1078
        %v1102 = vunpack.c.l.s4 1983009808
        %v1103 = vunpack.c.0.s8 %v1102
        %v1104 = vlaneseq
        %v1105 = vshrl.u32 %v1104, 7
        %v1106 = vsub.s32 %v1103, %v1105
        %v1107 = vrot.slane %v1099, %v1106
        %v1109 = vunpack.c.l.s4 1983009808
        %v1110 = vunpack.c.0.s8 %v1109
        %v1111 = vlaneseq
        %v1112 = vshrl.u32 %v1111, 7
        %v1113 = vsub.s32 %v1110, %v1112
        %v1114 = vrot.slane %v1100, %v1113
        %v1115 = vcombine.low %v1091, %v1107
        %v1116 = vcombine.high %v1091, %v1107
        %v1118 = vunpack.c.l.s4 1934713408
        %v1119 = vunpack.c.0.s8 %v1118
        %v1120 = vlaneseq
        %v1121 = vshrl.u32 %v1120, 7
        %v1122 = vsub.s32 %v1119, %v1121
        %v1123 = vrot.slane %v1115, %v1122
        %v1125 = vunpack.c.l.s4 1934713408
        %v1126 = vunpack.c.0.s8 %v1125
        %v1127 = vlaneseq
        %v1128 = vshrl.u32 %v1127, 7
        %v1129 = vsub.s32 %v1126, %v1128
        %v1130 = vrot.slane %v1116, %v1129
        %v1131 = vcombine.low %v1098, %v1114
        %v1132 = vcombine.high %v1098, %v1114
        %v1134 = vunpack.c.l.s4 1934713408
        %v1135 = vunpack.c.0.s8 %v1134
        %v1136 = vlaneseq
        %v1137 = vshrl.u32 %v1136, 7
        %v1138 = vsub.s32 %v1135, %v1137
        %v1139 = vrot.slane %v1131, %v1138
        %v1141 = vunpack.c.l.s4 1934713408
        %v1142 = vunpack.c.0.s8 %v1141
        %v1143 = vlaneseq
        %v1144 = vshrl.u32 %v1143, 7
        %v1145 = vsub.s32 %v1142, %v1144
        %v1146 = vrot.slane %v1132, %v1145
        %v1147 = vcombine.high %v1123, 0.0
        %v1148 = vcombine.high %v1130, 0.0
        %v1149 = vcombine.high %v1139, 0.0
        %v1150 = vcombine.high %v1146, 0.0
        %v1151 = vcombine.low %v1062, %v1074
        %v1152 = vcombine.high %v1062, %v1074
        %v1154 = vunpack.c.l.s4 1983009808
        %v1155 = vunpack.c.0.s8 %v1154
        %v1156 = vlaneseq
        %v1157 = vshrl.u32 %v1156, 7
        %v1158 = vsub.s32 %v1155, %v1157
        %v1159 = vrot.slane %v1151, %v1158
        %v1161 = vunpack.c.l.s4 1983009808
        %v1162 = vunpack.c.0.s8 %v1161
        %v1163 = vlaneseq
        %v1164 = vshrl.u32 %v1163, 7
        %v1165 = vsub.s32 %v1162, %v1164
        %v1166 = vrot.slane %v1152, %v1165
        %v1167 = vcombine.low %v1068, %v1080
        %v1168 = vcombine.high %v1068, %v1080
        %v1170 = vunpack.c.l.s4 1983009808
        %v1171 = vunpack.c.0.s8 %v1170
        %v1172 = vlaneseq
        %v1173 = vshrl.u32 %v1172, 7
        %v1174 = vsub.s32 %v1171, %v1173
        %v1175 = vrot.slane %v1167, %v1174
        %v1177 = vunpack.c.l.s4 1983009808
        %v1178 = vunpack.c.0.s8 %v1177
        %v1179 = vlaneseq
        %v1180 = vshrl.u32 %v1179, 7
        %v1181 = vsub.s32 %v1178, %v1180
        %v1182 = vrot.slane %v1168, %v1181
        %v1183 = vcombine.low %v1159, %v1175
        %v1184 = vcombine.high %v1159, %v1175
        %v1186 = vunpack.c.l.s4 1934713408
        %v1187 = vunpack.c.0.s8 %v1186
        %v1188 = vlaneseq
        %v1189 = vshrl.u32 %v1188, 7
        %v1190 = vsub.s32 %v1187, %v1189
        %v1191 = vrot.slane %v1183, %v1190
        %v1193 = vunpack.c.l.s4 1934713408
        %v1194 = vunpack.c.0.s8 %v1193
        %v1195 = vlaneseq
        %v1196 = vshrl.u32 %v1195, 7
        %v1197 = vsub.s32 %v1194, %v1196
        %v1198 = vrot.slane %v1184, %v1197
        %v1199 = vcombine.low %v1166, %v1182
        %v1200 = vcombine.high %v1166, %v1182
        %v1202 = vunpack.c.l.s4 1934713408
        %v1203 = vunpack.c.0.s8 %v1202
        %v1204 = vlaneseq
        %v1205 = vshrl.u32 %v1204, 7
        %v1206 = vsub.s32 %v1203, %v1205
        %v1207 = vrot.slane %v1199, %v1206
        %v1209 = vunpack.c.l.s4 1934713408
        %v1210 = vunpack.c.0.s8 %v1209
        %v1211 = vlaneseq
        %v1212 = vshrl.u32 %v1211, 7
        %v1213 = vsub.s32 %v1210, %v1212
        %v1214 = vrot.slane %v1200, %v1213
        %v1215 = vcombine.high %v1191, 0.0
        %v1216 = vcombine.high %v1198, 0.0
        %v1217 = vcombine.high %v1207, 0.0
        %v1218 = vcombine.high %v1214, 0.0
        %v1219 = vcombine.low %v1123, %v1130
        %v1221 = vunpack.c.l.s4 1983009808
        %v1222 = vunpack.c.0.s8 %v1221
        %v1223 = vlaneseq
        %v1224 = vshrl.u32 %v1223, 7
        %v1225 = vsub.s32 %v1222, %v1224
        %v1226 = vrot.slane %v1219, %v1225
        %v1227 = vcombine.low %v1147, %v1148
        %v1229 = vunpack.c.l.s4 1983009808
        %v1230 = vunpack.c.0.s8 %v1229
        %v1231 = vlaneseq
        %v1232 = vshrl.u32 %v1231, 7
        %v1233 = vsub.s32 %v1230, %v1232
        %v1234 = vrot.slane %v1227, %v1233
        %v1235 = vcombine.low %v1139, %v1146
        %v1237 = vunpack.c.l.s4 1983009808
        %v1238 = vunpack.c.0.s8 %v1237
        %v1239 = vlaneseq
        %v1240 = vshrl.u32 %v1239, 7
        %v1241 = vsub.s32 %v1238, %v1240
        %v1242 = vrot.slane %v1235, %v1241
        %v1243 = vcombine.low %v1149, %v1150
        %v1245 = vunpack.c.l.s4 1983009808
        %v1246 = vunpack.c.0.s8 %v1245
        %v1247 = vlaneseq
        %v1248 = vshrl.u32 %v1247, 7
        %v1249 = vsub.s32 %v1246, %v1248
        %v1250 = vrot.slane %v1243, %v1249
        %v1251 = vcombine.low %v1226, %v1234
        %v1252 = vcombine.high %v1226, %v1234
        %v1254 = vunpack.c.l.s4 1934713408
        %v1255 = vunpack.c.0.s8 %v1254
        %v1256 = vlaneseq
        %v1257 = vshrl.u32 %v1256, 7
        %v1258 = vsub.s32 %v1255, %v1257
        %v1259 = vrot.slane %v1251, %v1258
        %v1261 = vunpack.c.l.s4 1934713408
        %v1262 = vunpack.c.0.s8 %v1261
        %v1263 = vlaneseq
        %v1264 = vshrl.u32 %v1263, 7
        %v1265 = vsub.s32 %v1262, %v1264
        %v1266 = vrot.slane %v1252, %v1265
        %v1267 = vcombine.low %v1242, %v1250
        %v1268 = vcombine.high %v1242, %v1250
        %v1270 = vunpack.c.l.s4 1934713408
        %v1271 = vunpack.c.0.s8 %v1270
        %v1272 = vlaneseq
        %v1273 = vshrl.u32 %v1272, 7
        %v1274 = vsub.s32 %v1271, %v1273
        %v1275 = vrot.slane %v1267, %v1274
        %v1277 = vunpack.c.l.s4 1934713408
        %v1278 = vunpack.c.0.s8 %v1277
        %v1279 = vlaneseq
        %v1280 = vshrl.u32 %v1279, 7
        %v1281 = vsub.s32 %v1278, %v1280
        %v1282 = vrot.slane %v1268, %v1281
        %v1283 = vcombine.low %v1259, %v1275
        %v1284 = vcombine.high %v1259, %v1275
        %v1285 = vcombine.low %v1266, %v1282
        %v1286 = vcombine.high %v1266, %v1282
        %v1287 = vcombine.low %v1191, %v1198
        %v1289 = vunpack.c.l.s4 1983009808
        %v1290 = vunpack.c.0.s8 %v1289
        %v1291 = vlaneseq
        %v1292 = vshrl.u32 %v1291, 7
        %v1293 = vsub.s32 %v1290, %v1292
        %v1294 = vrot.slane %v1287, %v1293
        %v1295 = vcombine.low %v1215, %v1216
        %v1297 = vunpack.c.l.s4 1983009808
        %v1298 = vunpack.c.0.s8 %v1297
        %v1299 = vlaneseq
        %v1300 = vshrl.u32 %v1299, 7
        %v1301 = vsub.s32 %v1298, %v1300
        %v1302 = vrot.slane %v1295, %v1301
        %v1303 = vcombine.low %v1207, %v1214
        %v1305 = vunpack.c.l.s4 1983009808
        %v1306 = vunpack.c.0.s8 %v1305
        %v1307 = vlaneseq
        %v1308 = vshrl.u32 %v1307, 7
        %v1309 = vsub.s32 %v1306, %v1308
        %v1310 = vrot.slane %v1303, %v1309
        %v1311 = vcombine.low %v1217, %v1218
        %v1313 = vunpack.c.l.s4 1983009808
        %v1314 = vunpack.c.0.s8 %v1313
        %v1315 = vlaneseq
        %v1316 = vshrl.u32 %v1315, 7
        %v1317 = vsub.s32 %v1314, %v1316
        %v1318 = vrot.slane %v1311, %v1317
        %v1319 = vcombine.low %v1294, %v1302
        %v1320 = vcombine.high %v1294, %v1302
        %v1322 = vunpack.c.l.s4 1934713408
        %v1323 = vunpack.c.0.s8 %v1322
        %v1324 = vlaneseq
        %v1325 = vshrl.u32 %v1324, 7
        %v1326 = vsub.s32 %v1323, %v1325
        %v1327 = vrot.slane %v1319, %v1326
        %v1329 = vunpack.c.l.s4 1934713408
        %v1330 = vunpack.c.0.s8 %v1329
        %v1331 = vlaneseq
        %v1332 = vshrl.u32 %v1331, 7
        %v1333 = vsub.s32 %v1330, %v1332
        %v1334 = vrot.slane %v1320, %v1333
        %v1335 = vcombine.low %v1310, %v1318
        %v1336 = vcombine.high %v1310, %v1318
        %v1338 = vunpack.c.l.s4 1934713408
        %v1339 = vunpack.c.0.s8 %v1338
        %v1340 = vlaneseq
        %v1341 = vshrl.u32 %v1340, 7
        %v1342 = vsub.s32 %v1339, %v1341
        %v1343 = vrot.slane %v1335, %v1342
        %v1345 = vunpack.c.l.s4 1934713408
        %v1346 = vunpack.c.0.s8 %v1345
        %v1347 = vlaneseq
        %v1348 = vshrl.u32 %v1347, 7
        %v1349 = vsub.s32 %v1346, %v1348
        %v1350 = vrot.slane %v1336, %v1349
        %v1351 = vcombine.low %v1327, %v1343
        %v1352 = vcombine.high %v1327, %v1343
        %v1353 = vcombine.low %v1334, %v1350
        %v1354 = vcombine.high %v1334, %v1350
        %v1355 = vpack.c.bf16 %v1351, %v1283
        %v1356 = vpack.c.bf16 %v1352, %v1284
        %v1357 = vpack.c.bf16 %v1353, %v1285
        %v1358 = vpack.c.bf16 %v1354, %v1286
        %1361 = vrot.lane.b32.xlu0 %v1014, 96
        %v1362 = vpop.permute.xlu0 %1361
        %1363 = vrot.lane.b32.xlu0 %v1018, 96
        %v1364 = vpop.permute.xlu0 %1363
        %1367 = vrot.lane.b32.xlu0 %v1014, 64
        %v1368 = vpop.permute.xlu0 %1367
        %1369 = vrot.lane.b32.xlu0 %v1018, 64
        %v1370 = vpop.permute.xlu0 %1369
        %1373 = vrot.lane.b32.xlu0 %v1014, 32
        %v1374 = vpop.permute.xlu0 %1373
        %1375 = vrot.lane.b32.xlu0 %v1018, 32
        %v1376 = vpop.permute.xlu0 %1375
        %v1379 = vcombine.low %v1014, %v1368
        %v1380 = vcombine.high %v1014, %v1368
        %v1382 = vunpack.c.l.s4 1983009808
        %v1383 = vunpack.c.0.s8 %v1382
        %v1384 = vlaneseq
        %v1385 = vshrl.u32 %v1384, 7
        %v1386 = vsub.s32 %v1383, %v1385
        %v1387 = vrot.slane %v1379, %v1386
        %v1389 = vunpack.c.l.s4 1983009808
        %v1390 = vunpack.c.0.s8 %v1389
        %v1391 = vlaneseq
        %v1392 = vshrl.u32 %v1391, 7
        %v1393 = vsub.s32 %v1390, %v1392
        %v1394 = vrot.slane %v1380, %v1393
        %v1395 = vcombine.low %v1362, %v1374
        %v1396 = vcombine.high %v1362, %v1374
        %v1398 = vunpack.c.l.s4 1983009808
        %v1399 = vunpack.c.0.s8 %v1398
        %v1400 = vlaneseq
        %v1401 = vshrl.u32 %v1400, 7
        %v1402 = vsub.s32 %v1399, %v1401
        %v1403 = vrot.slane %v1395, %v1402
        %v1405 = vunpack.c.l.s4 1983009808
        %v1406 = vunpack.c.0.s8 %v1405
        %v1407 = vlaneseq
        %v1408 = vshrl.u32 %v1407, 7
        %v1409 = vsub.s32 %v1406, %v1408
        %v1410 = vrot.slane %v1396, %v1409
        %v1411 = vcombine.low %v1387, %v1403
        %v1412 = vcombine.high %v1387, %v1403
        %v1414 = vunpack.c.l.s4 1934713408
        %v1415 = vunpack.c.0.s8 %v1414
        %v1416 = vlaneseq
        %v1417 = vshrl.u32 %v1416, 7
        %v1418 = vsub.s32 %v1415, %v1417
        %v1419 = vrot.slane %v1411, %v1418
        %v1421 = vunpack.c.l.s4 1934713408
        %v1422 = vunpack.c.0.s8 %v1421
        %v1423 = vlaneseq
        %v1424 = vshrl.u32 %v1423, 7
        %v1425 = vsub.s32 %v1422, %v1424
        %v1426 = vrot.slane %v1412, %v1425
        %v1427 = vcombine.low %v1394, %v1410
        %v1428 = vcombine.high %v1394, %v1410
        %v1430 = vunpack.c.l.s4 1934713408
        %v1431 = vunpack.c.0.s8 %v1430
        %v1432 = vlaneseq
        %v1433 = vshrl.u32 %v1432, 7
        %v1434 = vsub.s32 %v1431, %v1433
        %v1435 = vrot.slane %v1427, %v1434
        %v1437 = vunpack.c.l.s4 1934713408
        %v1438 = vunpack.c.0.s8 %v1437
        %v1439 = vlaneseq
        %v1440 = vshrl.u32 %v1439, 7
        %v1441 = vsub.s32 %v1438, %v1440
        %v1442 = vrot.slane %v1428, %v1441
        %v1443 = vcombine.high %v1419, 0.0
        %v1444 = vcombine.high %v1426, 0.0
        %v1445 = vcombine.high %v1435, 0.0
        %v1446 = vcombine.high %v1442, 0.0
        %v1447 = vcombine.low %v1018, %v1370
        %v1448 = vcombine.high %v1018, %v1370
        %v1450 = vunpack.c.l.s4 1983009808
        %v1451 = vunpack.c.0.s8 %v1450
        %v1452 = vlaneseq
        %v1453 = vshrl.u32 %v1452, 7
        %v1454 = vsub.s32 %v1451, %v1453
        %v1455 = vrot.slane %v1447, %v1454
        %v1457 = vunpack.c.l.s4 1983009808
        %v1458 = vunpack.c.0.s8 %v1457
        %v1459 = vlaneseq
        %v1460 = vshrl.u32 %v1459, 7
        %v1461 = vsub.s32 %v1458, %v1460
        %v1462 = vrot.slane %v1448, %v1461
        %v1463 = vcombine.low %v1364, %v1376
        %v1464 = vcombine.high %v1364, %v1376
        %v1466 = vunpack.c.l.s4 1983009808
        %v1467 = vunpack.c.0.s8 %v1466
        %v1468 = vlaneseq
        %v1469 = vshrl.u32 %v1468, 7
        %v1470 = vsub.s32 %v1467, %v1469
        %v1471 = vrot.slane %v1463, %v1470
        %v1473 = vunpack.c.l.s4 1983009808
        %v1474 = vunpack.c.0.s8 %v1473
        %v1475 = vlaneseq
        %v1476 = vshrl.u32 %v1475, 7
        %v1477 = vsub.s32 %v1474, %v1476
        %v1478 = vrot.slane %v1464, %v1477
        %v1479 = vcombine.low %v1455, %v1471
        %v1480 = vcombine.high %v1455, %v1471
        %v1482 = vunpack.c.l.s4 1934713408
        %v1483 = vunpack.c.0.s8 %v1482
        %v1484 = vlaneseq
        %v1485 = vshrl.u32 %v1484, 7
        %v1486 = vsub.s32 %v1483, %v1485
        %v1487 = vrot.slane %v1479, %v1486
        %v1489 = vunpack.c.l.s4 1934713408
        %v1490 = vunpack.c.0.s8 %v1489
        %v1491 = vlaneseq
        %v1492 = vshrl.u32 %v1491, 7
        %v1493 = vsub.s32 %v1490, %v1492
        %v1494 = vrot.slane %v1480, %v1493
        %v1495 = vcombine.low %v1462, %v1478
        %v1496 = vcombine.high %v1462, %v1478
        %v1498 = vunpack.c.l.s4 1934713408
        %v1499 = vunpack.c.0.s8 %v1498
        %v1500 = vlaneseq
        %v1501 = vshrl.u32 %v1500, 7
        %v1502 = vsub.s32 %v1499, %v1501
        %v1503 = vrot.slane %v1495, %v1502
        %v1505 = vunpack.c.l.s4 1934713408
        %v1506 = vunpack.c.0.s8 %v1505
        %v1507 = vlaneseq
        %v1508 = vshrl.u32 %v1507, 7
        %v1509 = vsub.s32 %v1506, %v1508
        %v1510 = vrot.slane %v1496, %v1509
        %v1511 = vcombine.high %v1487, 0.0
        %v1512 = vcombine.high %v1494, 0.0
        %v1513 = vcombine.high %v1503, 0.0
        %v1514 = vcombine.high %v1510, 0.0
        %v1515 = vcombine.low %v1419, %v1426
        %v1517 = vunpack.c.l.s4 1983009808
        %v1518 = vunpack.c.0.s8 %v1517
        %v1519 = vlaneseq
        %v1520 = vshrl.u32 %v1519, 7
        %v1521 = vsub.s32 %v1518, %v1520
        %v1522 = vrot.slane %v1515, %v1521
        %v1523 = vcombine.low %v1443, %v1444
        %v1525 = vunpack.c.l.s4 1983009808
        %v1526 = vunpack.c.0.s8 %v1525
        %v1527 = vlaneseq
        %v1528 = vshrl.u32 %v1527, 7
        %v1529 = vsub.s32 %v1526, %v1528
        %v1530 = vrot.slane %v1523, %v1529
        %v1531 = vcombine.low %v1435, %v1442
        %v1533 = vunpack.c.l.s4 1983009808
        %v1534 = vunpack.c.0.s8 %v1533
        %v1535 = vlaneseq
        %v1536 = vshrl.u32 %v1535, 7
        %v1537 = vsub.s32 %v1534, %v1536
        %v1538 = vrot.slane %v1531, %v1537
        %v1539 = vcombine.low %v1445, %v1446
        %v1541 = vunpack.c.l.s4 1983009808
        %v1542 = vunpack.c.0.s8 %v1541
        %v1543 = vlaneseq
        %v1544 = vshrl.u32 %v1543, 7
        %v1545 = vsub.s32 %v1542, %v1544
        %v1546 = vrot.slane %v1539, %v1545
        %v1547 = vcombine.low %v1522, %v1530
        %v1548 = vcombine.high %v1522, %v1530
        %v1550 = vunpack.c.l.s4 1934713408
        %v1551 = vunpack.c.0.s8 %v1550
        %v1552 = vlaneseq
        %v1553 = vshrl.u32 %v1552, 7
        %v1554 = vsub.s32 %v1551, %v1553
        %v1555 = vrot.slane %v1547, %v1554
        %v1557 = vunpack.c.l.s4 1934713408
        %v1558 = vunpack.c.0.s8 %v1557
        %v1559 = vlaneseq
        %v1560 = vshrl.u32 %v1559, 7
        %v1561 = vsub.s32 %v1558, %v1560
        %v1562 = vrot.slane %v1548, %v1561
        %v1563 = vcombine.low %v1538, %v1546
        %v1564 = vcombine.high %v1538, %v1546
        %v1566 = vunpack.c.l.s4 1934713408
        %v1567 = vunpack.c.0.s8 %v1566
        %v1568 = vlaneseq
        %v1569 = vshrl.u32 %v1568, 7
        %v1570 = vsub.s32 %v1567, %v1569
        %v1571 = vrot.slane %v1563, %v1570
        %v1573 = vunpack.c.l.s4 1934713408
        %v1574 = vunpack.c.0.s8 %v1573
        %v1575 = vlaneseq
        %v1576 = vshrl.u32 %v1575, 7
        %v1577 = vsub.s32 %v1574, %v1576
        %v1578 = vrot.slane %v1564, %v1577
        %v1579 = vcombine.low %v1555, %v1571
        %v1580 = vcombine.high %v1555, %v1571
        %v1581 = vcombine.low %v1562, %v1578
        %v1582 = vcombine.high %v1562, %v1578
        %v1583 = vcombine.low %v1487, %v1494
        %v1585 = vunpack.c.l.s4 1983009808
        %v1586 = vunpack.c.0.s8 %v1585
        %v1587 = vlaneseq
        %v1588 = vshrl.u32 %v1587, 7
        %v1589 = vsub.s32 %v1586, %v1588
        %v1590 = vrot.slane %v1583, %v1589
        %v1591 = vcombine.low %v1511, %v1512
        %v1593 = vunpack.c.l.s4 1983009808
        %v1594 = vunpack.c.0.s8 %v1593
        %v1595 = vlaneseq
        %v1596 = vshrl.u32 %v1595, 7
        %v1597 = vsub.s32 %v1594, %v1596
        %v1598 = vrot.slane %v1591, %v1597
        %v1599 = vcombine.low %v1503, %v1510
        %v1601 = vunpack.c.l.s4 1983009808
        %v1602 = vunpack.c.0.s8 %v1601
        %v1603 = vlaneseq
        %v1604 = vshrl.u32 %v1603, 7
        %v1605 = vsub.s32 %v1602, %v1604
        %v1606 = vrot.slane %v1599, %v1605
        %v1607 = vcombine.low %v1513, %v1514
        %v1609 = vunpack.c.l.s4 1983009808
        %v1610 = vunpack.c.0.s8 %v1609
        %v1611 = vlaneseq
        %v1612 = vshrl.u32 %v1611, 7
        %v1613 = vsub.s32 %v1610, %v1612
        %v1614 = vrot.slane %v1607, %v1613
        %v1615 = vcombine.low %v1590, %v1598
        %v1616 = vcombine.high %v1590, %v1598
        %v1618 = vunpack.c.l.s4 1934713408
        %v1619 = vunpack.c.0.s8 %v1618
        %v1620 = vlaneseq
        %v1621 = vshrl.u32 %v1620, 7
        %v1622 = vsub.s32 %v1619, %v1621
        %v1623 = vrot.slane %v1615, %v1622
        %v1625 = vunpack.c.l.s4 1934713408
        %v1626 = vunpack.c.0.s8 %v1625
        %v1627 = vlaneseq
        %v1628 = vshrl.u32 %v1627, 7
        %v1629 = vsub.s32 %v1626, %v1628
        %v1630 = vrot.slane %v1616, %v1629
        %v1631 = vcombine.low %v1606, %v1614
        %v1632 = vcombine.high %v1606, %v1614
        %v1634 = vunpack.c.l.s4 1934713408
        %v1635 = vunpack.c.0.s8 %v1634
        %v1636 = vlaneseq
        %v1637 = vshrl.u32 %v1636, 7
        %v1638 = vsub.s32 %v1635, %v1637
        %v1639 = vrot.slane %v1631, %v1638
        %v1641 = vunpack.c.l.s4 1934713408
        %v1642 = vunpack.c.0.s8 %v1641
        %v1643 = vlaneseq
        %v1644 = vshrl.u32 %v1643, 7
        %v1645 = vsub.s32 %v1642, %v1644
        %v1646 = vrot.slane %v1632, %v1645
        %v1647 = vcombine.low %v1623, %v1639
        %v1648 = vcombine.high %v1623, %v1639
        %v1649 = vcombine.low %v1630, %v1646
        %v1650 = vcombine.high %v1630, %v1646
        %v1651 = vpack.c.bf16 %v1647, %v1579
        %v1652 = vpack.c.bf16 %v1648, %v1580
        %v1653 = vpack.c.bf16 %v1649, %v1581
        %v1654 = vpack.c.bf16 %v1650, %v1582
        %1657 = vrot.lane.b32.xlu0 %v1055, 96
        %v1658 = vpop.permute.xlu0 %1657
        %1659 = vrot.lane.b32.xlu0 %v1058, 96
        %v1660 = vpop.permute.xlu0 %1659
        %1663 = vrot.lane.b32.xlu0 %v1055, 64
        %v1664 = vpop.permute.xlu0 %1663
        %1665 = vrot.lane.b32.xlu0 %v1058, 64
        %v1666 = vpop.permute.xlu0 %1665
        %1669 = vrot.lane.b32.xlu0 %v1055, 32
        %v1670 = vpop.permute.xlu0 %1669
        %1671 = vrot.lane.b32.xlu0 %v1058, 32
        %v1672 = vpop.permute.xlu0 %1671
        %v1675 = vcombine.low %v1055, %v1664
        %v1676 = vcombine.high %v1055, %v1664
        %v1678 = vunpack.c.l.s4 1983009808
        %v1679 = vunpack.c.0.s8 %v1678
        %v1680 = vlaneseq
        %v1681 = vshrl.u32 %v1680, 7
        %v1682 = vsub.s32 %v1679, %v1681
        %v1683 = vrot.slane %v1675, %v1682
        %v1685 = vunpack.c.l.s4 1983009808
        %v1686 = vunpack.c.0.s8 %v1685
        %v1687 = vlaneseq
        %v1688 = vshrl.u32 %v1687, 7
        %v1689 = vsub.s32 %v1686, %v1688
        %v1690 = vrot.slane %v1676, %v1689
        %v1691 = vcombine.low %v1658, %v1670
        %v1692 = vcombine.high %v1658, %v1670
        %v1694 = vunpack.c.l.s4 1983009808
        %v1695 = vunpack.c.0.s8 %v1694
        %v1696 = vlaneseq
        %v1697 = vshrl.u32 %v1696, 7
        %v1698 = vsub.s32 %v1695, %v1697
        %v1699 = vrot.slane %v1691, %v1698
        %v1701 = vunpack.c.l.s4 1983009808
        %v1702 = vunpack.c.0.s8 %v1701
        %v1703 = vlaneseq
        %v1704 = vshrl.u32 %v1703, 7
        %v1705 = vsub.s32 %v1702, %v1704
        %v1706 = vrot.slane %v1692, %v1705
        %v1707 = vcombine.low %v1683, %v1699
        %v1708 = vcombine.high %v1683, %v1699
        %v1710 = vunpack.c.l.s4 1934713408
        %v1711 = vunpack.c.0.s8 %v1710
        %v1712 = vlaneseq
        %v1713 = vshrl.u32 %v1712, 7
        %v1714 = vsub.s32 %v1711, %v1713
        %v1715 = vrot.slane %v1707, %v1714
        %v1717 = vunpack.c.l.s4 1934713408
        %v1718 = vunpack.c.0.s8 %v1717
        %v1719 = vlaneseq
        %v1720 = vshrl.u32 %v1719, 7
        %v1721 = vsub.s32 %v1718, %v1720
        %v1722 = vrot.slane %v1708, %v1721
        %v1723 = vcombine.low %v1690, %v1706
        %v1724 = vcombine.high %v1690, %v1706
        %v1726 = vunpack.c.l.s4 1934713408
        %v1727 = vunpack.c.0.s8 %v1726
        %v1728 = vlaneseq
        %v1729 = vshrl.u32 %v1728, 7
        %v1730 = vsub.s32 %v1727, %v1729
        %v1731 = vrot.slane %v1723, %v1730
        %v1733 = vunpack.c.l.s4 1934713408
        %v1734 = vunpack.c.0.s8 %v1733
        %v1735 = vlaneseq
        %v1736 = vshrl.u32 %v1735, 7
        %v1737 = vsub.s32 %v1734, %v1736
        %v1738 = vrot.slane %v1724, %v1737
        %v1739 = vcombine.high %v1715, 0.0
        %v1740 = vcombine.high %v1722, 0.0
        %v1741 = vcombine.high %v1731, 0.0
        %v1742 = vcombine.high %v1738, 0.0
        %v1743 = vcombine.low %v1058, %v1666
        %v1744 = vcombine.high %v1058, %v1666
        %v1746 = vunpack.c.l.s4 1983009808
        %v1747 = vunpack.c.0.s8 %v1746
        %v1748 = vlaneseq
        %v1749 = vshrl.u32 %v1748, 7
        %v1750 = vsub.s32 %v1747, %v1749
        %v1751 = vrot.slane %v1743, %v1750
        %v1753 = vunpack.c.l.s4 1983009808
        %v1754 = vunpack.c.0.s8 %v1753
        %v1755 = vlaneseq
        %v1756 = vshrl.u32 %v1755, 7
        %v1757 = vsub.s32 %v1754, %v1756
        %v1758 = vrot.slane %v1744, %v1757
        %v1759 = vcombine.low %v1660, %v1672
        %v1760 = vcombine.high %v1660, %v1672
        %v1762 = vunpack.c.l.s4 1983009808
        %v1763 = vunpack.c.0.s8 %v1762
        %v1764 = vlaneseq
        %v1765 = vshrl.u32 %v1764, 7
        %v1766 = vsub.s32 %v1763, %v1765
        %v1767 = vrot.slane %v1759, %v1766
        %v1769 = vunpack.c.l.s4 1983009808
        %v1770 = vunpack.c.0.s8 %v1769
        %v1771 = vlaneseq
        %v1772 = vshrl.u32 %v1771, 7
        %v1773 = vsub.s32 %v1770, %v1772
        %v1774 = vrot.slane %v1760, %v1773
        %v1775 = vcombine.low %v1751, %v1767
        %v1776 = vcombine.high %v1751, %v1767
        %v1778 = vunpack.c.l.s4 1934713408
        %v1779 = vunpack.c.0.s8 %v1778
        %v1780 = vlaneseq
        %v1781 = vshrl.u32 %v1780, 7
        %v1782 = vsub.s32 %v1779, %v1781
        %v1783 = vrot.slane %v1775, %v1782
        %v1785 = vunpack.c.l.s4 1934713408
        %v1786 = vunpack.c.0.s8 %v1785
        %v1787 = vlaneseq
        %v1788 = vshrl.u32 %v1787, 7
        %v1789 = vsub.s32 %v1786, %v1788
        %v1790 = vrot.slane %v1776, %v1789
        %v1791 = vcombine.low %v1758, %v1774
        %v1792 = vcombine.high %v1758, %v1774
        %v1794 = vunpack.c.l.s4 1934713408
        %v1795 = vunpack.c.0.s8 %v1794
        %v1796 = vlaneseq
        %v1797 = vshrl.u32 %v1796, 7
        %v1798 = vsub.s32 %v1795, %v1797
        %v1799 = vrot.slane %v1791, %v1798
        %v1801 = vunpack.c.l.s4 1934713408
        %v1802 = vunpack.c.0.s8 %v1801
        %v1803 = vlaneseq
        %v1804 = vshrl.u32 %v1803, 7
        %v1805 = vsub.s32 %v1802, %v1804
        %v1806 = vrot.slane %v1792, %v1805
        %v1807 = vcombine.high %v1783, 0.0
        %v1808 = vcombine.high %v1790, 0.0
        %v1809 = vcombine.high %v1799, 0.0
        %v1810 = vcombine.high %v1806, 0.0
        %v1811 = vcombine.low %v1715, %v1722
        %v1813 = vunpack.c.l.s4 1983009808
        %v1814 = vunpack.c.0.s8 %v1813
        %v1815 = vlaneseq
        %v1816 = vshrl.u32 %v1815, 7
        %v1817 = vsub.s32 %v1814, %v1816
        %v1818 = vrot.slane %v1811, %v1817
        %v1819 = vcombine.low %v1739, %v1740
        %v1821 = vunpack.c.l.s4 1983009808
        %v1822 = vunpack.c.0.s8 %v1821
        %v1823 = vlaneseq
        %v1824 = vshrl.u32 %v1823, 7
        %v1825 = vsub.s32 %v1822, %v1824
        %v1826 = vrot.slane %v1819, %v1825
        %v1827 = vcombine.low %v1731, %v1738
        %v1829 = vunpack.c.l.s4 1983009808
        %v1830 = vunpack.c.0.s8 %v1829
        %v1831 = vlaneseq
        %v1832 = vshrl.u32 %v1831, 7
        %v1833 = vsub.s32 %v1830, %v1832
        %v1834 = vrot.slane %v1827, %v1833
        %v1835 = vcombine.low %v1741, %v1742
        %v1837 = vunpack.c.l.s4 1983009808
        %v1838 = vunpack.c.0.s8 %v1837
        %v1839 = vlaneseq
        %v1840 = vshrl.u32 %v1839, 7
        %v1841 = vsub.s32 %v1838, %v1840
        %v1842 = vrot.slane %v1835, %v1841
        %v1843 = vcombine.low %v1818, %v1826
        %v1844 = vcombine.high %v1818, %v1826
        %v1846 = vunpack.c.l.s4 1934713408
        %v1847 = vunpack.c.0.s8 %v1846
        %v1848 = vlaneseq
        %v1849 = vshrl.u32 %v1848, 7
        %v1850 = vsub.s32 %v1847, %v1849
        %v1851 = vrot.slane %v1843, %v1850
        %v1853 = vunpack.c.l.s4 1934713408
        %v1854 = vunpack.c.0.s8 %v1853
        %v1855 = vlaneseq
        %v1856 = vshrl.u32 %v1855, 7
        %v1857 = vsub.s32 %v1854, %v1856
        %v1858 = vrot.slane %v1844, %v1857
        %v1859 = vcombine.low %v1834, %v1842
        %v1860 = vcombine.high %v1834, %v1842
        %v1862 = vunpack.c.l.s4 1934713408
        %v1863 = vunpack.c.0.s8 %v1862
        %v1864 = vlaneseq
        %v1865 = vshrl.u32 %v1864, 7
        %v1866 = vsub.s32 %v1863, %v1865
        %v1867 = vrot.slane %v1859, %v1866
        %v1869 = vunpack.c.l.s4 1934713408
        %v1870 = vunpack.c.0.s8 %v1869
        %v1871 = vlaneseq
        %v1872 = vshrl.u32 %v1871, 7
        %v1873 = vsub.s32 %v1870, %v1872
        %v1874 = vrot.slane %v1860, %v1873
        %v1875 = vcombine.low %v1851, %v1867
        %v1876 = vcombine.high %v1851, %v1867
        %v1877 = vcombine.low %v1858, %v1874
        %v1878 = vcombine.high %v1858, %v1874
        %v1879 = vcombine.low %v1783, %v1790
        %v1881 = vunpack.c.l.s4 1983009808
        %v1882 = vunpack.c.0.s8 %v1881
        %v1883 = vlaneseq
        %v1884 = vshrl.u32 %v1883, 7
        %v1885 = vsub.s32 %v1882, %v1884
        %v1886 = vrot.slane %v1879, %v1885
        %v1887 = vcombine.low %v1807, %v1808
        %v1889 = vunpack.c.l.s4 1983009808
        %v1890 = vunpack.c.0.s8 %v1889
        %v1891 = vlaneseq
        %v1892 = vshrl.u32 %v1891, 7
        %v1893 = vsub.s32 %v1890, %v1892
        %v1894 = vrot.slane %v1887, %v1893
        %v1895 = vcombine.low %v1799, %v1806
        %v1897 = vunpack.c.l.s4 1983009808
        %v1898 = vunpack.c.0.s8 %v1897
        %v1899 = vlaneseq
        %v1900 = vshrl.u32 %v1899, 7
        %v1901 = vsub.s32 %v1898, %v1900
        %v1902 = vrot.slane %v1895, %v1901
        %v1903 = vcombine.low %v1809, %v1810
        %v1905 = vunpack.c.l.s4 1983009808
        %v1906 = vunpack.c.0.s8 %v1905
        %v1907 = vlaneseq
        %v1908 = vshrl.u32 %v1907, 7
        %v1909 = vsub.s32 %v1906, %v1908
        %v1910 = vrot.slane %v1903, %v1909
        %v1911 = vcombine.low %v1886, %v1894
        %v1912 = vcombine.high %v1886, %v1894
        %v1914 = vunpack.c.l.s4 1934713408
        %v1915 = vunpack.c.0.s8 %v1914
        %v1916 = vlaneseq
        %v1917 = vshrl.u32 %v1916, 7
        %v1918 = vsub.s32 %v1915, %v1917
        %v1919 = vrot.slane %v1911, %v1918
        %v1921 = vunpack.c.l.s4 1934713408
        %v1922 = vunpack.c.0.s8 %v1921
        %v1923 = vlaneseq
        %v1924 = vshrl.u32 %v1923, 7
        %v1925 = vsub.s32 %v1922, %v1924
        %v1926 = vrot.slane %v1912, %v1925
        %v1927 = vcombine.low %v1902, %v1910
        %v1928 = vcombine.high %v1902, %v1910
        %v1930 = vunpack.c.l.s4 1934713408
        %v1931 = vunpack.c.0.s8 %v1930
        %v1932 = vlaneseq
        %v1933 = vshrl.u32 %v1932, 7
        %v1934 = vsub.s32 %v1931, %v1933
        %v1935 = vrot.slane %v1927, %v1934
        %v1937 = vunpack.c.l.s4 1934713408
        %v1938 = vunpack.c.0.s8 %v1937
        %v1939 = vlaneseq
        %v1940 = vshrl.u32 %v1939, 7
        %v1941 = vsub.s32 %v1938, %v1940
        %v1942 = vrot.slane %v1928, %v1941
        %v1943 = vcombine.low %v1919, %v1935
        %v1944 = vcombine.high %v1919, %v1935
        %v1945 = vcombine.low %v1926, %v1942
        %v1946 = vcombine.high %v1926, %v1942
        %v1947 = vpack.c.bf16 %v1943, %v1875
        %v1948 = vpack.c.bf16 %v1944, %v1876
        %v1949 = vpack.c.bf16 %v1945, %v1877
        %v1950 = vpack.c.bf16 %v1946, %v1878
        %v1951 = vld [vmem:[%s1] sm:$0xff]
        %v1952 = vld [vmem:[%s1 + $0x8] sm:$0xff]
        %vm1953 = vcmask 261120
        %v1955 = vsel %vm1953, %v1355, 0
        %v1958 = vsel %vm1953, %v1651, 0
        %1960 = vmatprep.subr.bf16.mxu0 0
        %1961 = vmatpush1.bf16.xpose.msra.mxu0 %v1958
        %1962 = vmatprep.subr.bf16.mxu0 0
        %1963 = vmatpush1.bf16.xpose.msra.mxu0 0
        %1964 = vmatprep.subr.bf16.mxu0 0
        %1965 = vmatpush1.bf16.xpose.msra.mxu0 0
        %1966 = vmatprep.subr.bf16.mxu0 0
        %1967 = vmatpush1.bf16.xpose.msra.mxu0 0
        %1968 = vmatprep.subr.bf16.mxu0 0
        %1969 = vmatpush1.bf16.xpose.msra.mxu0 0
        %1970 = vmatprep.subr.bf16.mxu0 0
        %1971 = vmatpush1.bf16.xpose.msra.mxu0 0
        %1972 = vmatprep.subr.bf16.mxu0 0
        %1973 = vmatpush1.bf16.xpose.msra.mxu0 0
        %1974 = vmatprep.subr.bf16.mxu0 0
        %1975 = vmatpush1.bf16.xpose.msra.mxu0 0
        %1976 = vmatprep.subr.bf16.mxu0 0
        %1977 = vmatpush1.bf16.xpose.msra.mxu0 0
        %1978 = vmatprep.subr.bf16.mxu0 0
        %1979 = vmatpush1.bf16.xpose.msra.mxu0 0
        %1980 = vmatprep.subr.bf16.mxu0 0
        %1981 = vmatpush1.bf16.xpose.msra.mxu0 0
        %1982 = vmatprep.subr.bf16.mxu0 0
        %1983 = vmatpush1.bf16.xpose.msra.mxu0 0
        %1984 = vmatprep.subr.bf16.mxu0 0
        %1985 = vmatpush1.bf16.xpose.msra.mxu0 0
        %1986 = vmatprep.subr.bf16.mxu0 0
        %1987 = vmatpush1.bf16.xpose.msra.mxu0 0
        %1988 = vmatprep.subr.bf16.mxu0 0
        %1989 = vmatpush1.bf16.xpose.msra.mxu0 0
        %1990 = vmatprep.subr.bf16.mxu0 0
        %1991 = vmatpush1.bf16.xpose.msra.mxu0 0
        %1992 = vmatprep.mubr.bf16.mxu0 0
        %1993 = vmatmul.mubr.bf16.gmra.mrb[0].mxu0 %v1955
        %v1994 = vpop.f32.mrb[0].mxu0
        %v1995 = vadd.f32 %v1951, %v1994
        %v1996 = vpop.f32.mrb[0].mxu0
        %v1997 = vpop.f32.mrb[0].mxu0
        %v1998 = vadd.f32 %v1952, %v1997
        %v1999 = vpop.f32.mrb[0].mxu0
        %2000 = vdwg.mxu0
        %v2002 = vsel %vm1953, %v1356, 0
        %v2005 = vsel %vm1953, %v1652, 0
        %2007 = vmatprep.subr.bf16.mxu0 0
        %2008 = vmatpush1.bf16.xpose.msra.mxu0 %v2005
        %2009 = vmatprep.subr.bf16.mxu0 0
        %2010 = vmatpush1.bf16.xpose.msra.mxu0 0
        %2011 = vmatprep.subr.bf16.mxu0 0
        %2012 = vmatpush1.bf16.xpose.msra.mxu0 0
        %2013 = vmatprep.subr.bf16.mxu0 0
        %2014 = vmatpush1.bf16.xpose.msra.mxu0 0
        %2015 = vmatprep.subr.bf16.mxu0 0
        %2016 = vmatpush1.bf16.xpose.msra.mxu0 0
        %2017 = vmatprep.subr.bf16.mxu0 0
        %2018 = vmatpush1.bf16.xpose.msra.mxu0 0
        %2019 = vmatprep.subr.bf16.mxu0 0
        %2020 = vmatpush1.bf16.xpose.msra.mxu0 0
        %2021 = vmatprep.subr.bf16.mxu0 0
        %2022 = vmatpush1.bf16.xpose.msra.mxu0 0
        %2023 = vmatprep.subr.bf16.mxu0 0
        %2024 = vmatpush1.bf16.xpose.msra.mxu0 0
        %2025 = vmatprep.subr.bf16.mxu0 0
        %2026 = vmatpush1.bf16.xpose.msra.mxu0 0
        %2027 = vmatprep.subr.bf16.mxu0 0
        %2028 = vmatpush1.bf16.xpose.msra.mxu0 0
        %2029 = vmatprep.subr.bf16.mxu0 0
        %2030 = vmatpush1.bf16.xpose.msra.mxu0 0
        %2031 = vmatprep.subr.bf16.mxu0 0
        %2032 = vmatpush1.bf16.xpose.msra.mxu0 0
        %2033 = vmatprep.subr.bf16.mxu0 0
        %2034 = vmatpush1.bf16.xpose.msra.mxu0 0
        %2035 = vmatprep.subr.bf16.mxu0 0
        %2036 = vmatpush1.bf16.xpose.msra.mxu0 0
        %2037 = vmatprep.subr.bf16.mxu0 0
        %2038 = vmatpush1.bf16.xpose.msra.mxu0 0
        %2039 = vmatprep.mubr.bf16.mxu0 0
        %2040 = vmatmul.mubr.bf16.gmra.mrb[0].mxu0 %v2002
        %v2041 = vpop.f32.mrb[0].mxu0
        %v2042 = vadd.f32 %v1951, %v2041
        %v2043 = vpop.f32.mrb[0].mxu0
        %v2044 = vpop.f32.mrb[0].mxu0
        %v2045 = vadd.f32 %v1952, %v2044
        %v2046 = vpop.f32.mrb[0].mxu0
        %2047 = vdwg.mxu0
        %v2049 = vsel %vm1953, %v1357, 0
        %v2052 = vsel %vm1953, %v1653, 0
        %2054 = vmatprep.subr.bf16.mxu0 0
        %2055 = vmatpush1.bf16.xpose.msra.mxu0 %v2052
        %2056 = vmatprep.subr.bf16.mxu0 0
        %2057 = vmatpush1.bf16.xpose.msra.mxu0 0
        %2058 = vmatprep.subr.bf16.mxu0 0
        %2059 = vmatpush1.bf16.xpose.msra.mxu0 0
        %2060 = vmatprep.subr.bf16.mxu0 0
        %2061 = vmatpush1.bf16.xpose.msra.mxu0 0
        %2062 = vmatprep.subr.bf16.mxu0 0
        %2063 = vmatpush1.bf16.xpose.msra.mxu0 0
        %2064 = vmatprep.subr.bf16.mxu0 0
        %2065 = vmatpush1.bf16.xpose.msra.mxu0 0
        %2066 = vmatprep.subr.bf16.mxu0 0
        %2067 = vmatpush1.bf16.xpose.msra.mxu0 0
        %2068 = vmatprep.subr.bf16.mxu0 0
        %2069 = vmatpush1.bf16.xpose.msra.mxu0 0
        %2070 = vmatprep.subr.bf16.mxu0 0
        %2071 = vmatpush1.bf16.xpose.msra.mxu0 0
        %2072 = vmatprep.subr.bf16.mxu0 0
        %2073 = vmatpush1.bf16.xpose.msra.mxu0 0
        %2074 = vmatprep.subr.bf16.mxu0 0
        %2075 = vmatpush1.bf16.xpose.msra.mxu0 0
        %2076 = vmatprep.subr.bf16.mxu0 0
        %2077 = vmatpush1.bf16.xpose.msra.mxu0 0
        %2078 = vmatprep.subr.bf16.mxu0 0
        %2079 = vmatpush1.bf16.xpose.msra.mxu0 0
        %2080 = vmatprep.subr.bf16.mxu0 0
        %2081 = vmatpush1.bf16.xpose.msra.mxu0 0
        %2082 = vmatprep.subr.bf16.mxu0 0
        %2083 = vmatpush1.bf16.xpose.msra.mxu0 0
        %2084 = vmatprep.subr.bf16.mxu0 0
        %2085 = vmatpush1.bf16.xpose.msra.mxu0 0
        %2086 = vmatprep.mubr.bf16.mxu0 0
        %2087 = vmatmul.mubr.bf16.gmra.mrb[0].mxu0 %v2049
        %v2088 = vpop.f32.mrb[0].mxu0
        %v2089 = vadd.f32 %v1951, %v2088
        %v2090 = vpop.f32.mrb[0].mxu0
        %v2091 = vpop.f32.mrb[0].mxu0
        %v2092 = vadd.f32 %v1952, %v2091
        %v2093 = vpop.f32.mrb[0].mxu0
        %2094 = vdwg.mxu0
        %v2096 = vsel %vm1953, %v1358, 0
        %v2099 = vsel %vm1953, %v1654, 0
        %2101 = vmatprep.subr.bf16.mxu0 0
        %2102 = vmatpush1.bf16.xpose.msra.mxu0 %v2099
        %2103 = vmatprep.subr.bf16.mxu0 0
        %2104 = vmatpush1.bf16.xpose.msra.mxu0 0
        %2105 = vmatprep.subr.bf16.mxu0 0
        %2106 = vmatpush1.bf16.xpose.msra.mxu0 0
        %2107 = vmatprep.subr.bf16.mxu0 0
        %2108 = vmatpush1.bf16.xpose.msra.mxu0 0
        %2109 = vmatprep.subr.bf16.mxu0 0
        %2110 = vmatpush1.bf16.xpose.msra.mxu0 0
        %2111 = vmatprep.subr.bf16.mxu0 0
        %2112 = vmatpush1.bf16.xpose.msra.mxu0 0
        %2113 = vmatprep.subr.bf16.mxu0 0
        %2114 = vmatpush1.bf16.xpose.msra.mxu0 0
        %2115 = vmatprep.subr.bf16.mxu0 0
        %2116 = vmatpush1.bf16.xpose.msra.mxu0 0
        %2117 = vmatprep.subr.bf16.mxu0 0
        %2118 = vmatpush1.bf16.xpose.msra.mxu0 0
        %2119 = vmatprep.subr.bf16.mxu0 0
        %2120 = vmatpush1.bf16.xpose.msra.mxu0 0
        %2121 = vmatprep.subr.bf16.mxu0 0
        %2122 = vmatpush1.bf16.xpose.msra.mxu0 0
        %2123 = vmatprep.subr.bf16.mxu0 0
        %2124 = vmatpush1.bf16.xpose.msra.mxu0 0
        %2125 = vmatprep.subr.bf16.mxu0 0
        %2126 = vmatpush1.bf16.xpose.msra.mxu0 0
        %2127 = vmatprep.subr.bf16.mxu0 0
        %2128 = vmatpush1.bf16.xpose.msra.mxu0 0
        %2129 = vmatprep.subr.bf16.mxu0 0
        %2130 = vmatpush1.bf16.xpose.msra.mxu0 0
        %2131 = vmatprep.subr.bf16.mxu0 0
        %2132 = vmatpush1.bf16.xpose.msra.mxu0 0
        %2133 = vmatprep.mubr.bf16.mxu0 0
        %2134 = vmatmul.mubr.bf16.gmra.mrb[0].mxu0 %v2096
        %v2135 = vpop.f32.mrb[0].mxu0
        %v2136 = vadd.f32 %v1951, %v2135
        %v2137 = vpop.f32.mrb[0].mxu0
        %v2138 = vpop.f32.mrb[0].mxu0
        %v2139 = vadd.f32 %v1952, %v2138
        %v2140 = vpop.f32.mrb[0].mxu0
        %2141 = vdwg.mxu0
        %vm2142 = vcmask 130048
        %v2143 = vsel %vm2142, %v1995, -inf
        %2144 = vmax.xlane.f32.xlu0 %v2143
        %v2145 = vpop.xlane.xlu0 %2144
        %v2146 = vsel %vm2142, %v1998, -inf
        %2147 = vmax.xlane.f32.xlu0 %v2146
        %v2148 = vpop.xlane.xlu0 %2147
        %v2149 = vsel %vm2142, %v2042, -inf
        %2150 = vmax.xlane.f32.xlu0 %v2149
        %v2151 = vpop.xlane.xlu0 %2150
        %v2152 = vsel %vm2142, %v2045, -inf
        %2153 = vmax.xlane.f32.xlu0 %v2152
        %v2154 = vpop.xlane.xlu0 %2153
        %v2155 = vsel %vm2142, %v2089, -inf
        %2156 = vmax.xlane.f32.xlu0 %v2155
        %v2157 = vpop.xlane.xlu0 %2156
        %v2158 = vsel %vm2142, %v2092, -inf
        %2159 = vmax.xlane.f32.xlu0 %v2158
        %v2160 = vpop.xlane.xlu0 %2159
        %v2161 = vsel %vm2142, %v2136, -inf
        %2162 = vmax.xlane.f32.xlu0 %v2161
        %v2163 = vpop.xlane.xlu0 %2162
        %v2164 = vsel %vm2142, %v2139, -inf
        %2165 = vmax.xlane.f32.xlu0 %v2164
        %v2166 = vpop.xlane.xlu0 %2165
        %v2167 = vsub.f32 %v1995, %v2145
        %v2168 = vsub.f32 %v1998, %v2148
        %v2169 = vsub.f32 %v2042, %v2151
        %v2170 = vsub.f32 %v2045, %v2154
        %v2171 = vsub.f32 %v2089, %v2157
        %v2172 = vsub.f32 %v2092, %v2160
        %v2173 = vsub.f32 %v2136, %v2163
        %v2174 = vsub.f32 %v2139, %v2166
        %v2175 = vmul.f32 %v2167, 1.442695
        %v2176 = vpow.pop %v2175
        %v2177 = vmul.f32 %v2168, 1.442695
        %v2178 = vpow.pop %v2177
        %v2179 = vmul.f32 %v2169, 1.442695
        %v2180 = vpow.pop %v2179
        %v2181 = vmul.f32 %v2170, 1.442695
        %v2182 = vpow.pop %v2181
        %v2183 = vmul.f32 %v2171, 1.442695
        %v2184 = vpow.pop %v2183
        %v2185 = vmul.f32 %v2172, 1.442695
        %v2186 = vpow.pop %v2185
        %v2187 = vmul.f32 %v2173, 1.442695
        %v2188 = vpow.pop %v2187
        %v2189 = vmul.f32 %v2174, 1.442695
        %v2190 = vpow.pop %v2189
        %v2191 = vsel %vm2142, %v2176, 0.0
        %2192 = vadd.xlane.f32.xlu0 %v2191
        %v2193 = vpop.xlane.xlu0 %2192
        %v2194 = vsel %vm2142, %v2178, 0.0
        %2195 = vadd.xlane.f32.xlu0 %v2194
        %v2196 = vpop.xlane.xlu0 %2195
        %v2197 = vsel %vm2142, %v2180, 0.0
        %2198 = vadd.xlane.f32.xlu0 %v2197
        %v2199 = vpop.xlane.xlu0 %2198
        %v2200 = vsel %vm2142, %v2182, 0.0
        %2201 = vadd.xlane.f32.xlu0 %v2200
        %v2202 = vpop.xlane.xlu0 %2201
        %v2203 = vsel %vm2142, %v2184, 0.0
        %2204 = vadd.xlane.f32.xlu0 %v2203
        %v2205 = vpop.xlane.xlu0 %2204
        %v2206 = vsel %vm2142, %v2186, 0.0
        %2207 = vadd.xlane.f32.xlu0 %v2206
        %v2208 = vpop.xlane.xlu0 %2207
        %v2209 = vsel %vm2142, %v2188, 0.0
        %2210 = vadd.xlane.f32.xlu0 %v2209
        %v2211 = vpop.xlane.xlu0 %2210
        %v2212 = vsel %vm2142, %v2190, 0.0
        %2213 = vadd.xlane.f32.xlu0 %v2212
        %v2214 = vpop.xlane.xlu0 %2213
        %v2215 = vrcp.pop %v2193
        %v2216 = vrcp.pop %v2196
        %v2217 = vrcp.pop %v2199
        %v2218 = vrcp.pop %v2202
        %v2219 = vrcp.pop %v2205
        %v2220 = vrcp.pop %v2208
        %v2221 = vrcp.pop %v2211
        %v2222 = vrcp.pop %v2214
        %v2223 = vmul.f32 %v2176, %v2215
        %v2224 = vmul.f32 %v2178, %v2216
        %v2225 = vmul.f32 %v2180, %v2217
        %v2226 = vmul.f32 %v2182, %v2218
        %v2227 = vmul.f32 %v2184, %v2219
        %v2228 = vmul.f32 %v2186, %v2220
        %v2229 = vmul.f32 %v2188, %v2221
        %v2230 = vmul.f32 %v2190, %v2222
        %v2231 = vpack.c.bf16 %v2224, %v2223
        %v2232 = vpack.c.bf16 %v2226, %v2225
        %v2233 = vpack.c.bf16 %v2228, %v2227
        %v2234 = vpack.c.bf16 %v2230, %v2229
        %v2236 = vsel %vm2142, %v2231, 0
        %2238 = vmatprep.subr.bf16.mxu0 0
        %2239 = vmatpush1.bf16.msra.mxu0 %v1947
        %2240 = vmatprep.subr.bf16.mxu0 0
        %2241 = vmatpush1.bf16.msra.mxu0 0
        %2242 = vmatprep.subr.bf16.mxu0 0
        %2243 = vmatpush1.bf16.msra.mxu0 0
        %2244 = vmatprep.subr.bf16.mxu0 0
        %2245 = vmatpush1.bf16.msra.mxu0 0
        %2246 = vmatprep.subr.bf16.mxu0 0
        %2247 = vmatpush1.bf16.msra.mxu0 0
        %2248 = vmatprep.subr.bf16.mxu0 0
        %2249 = vmatpush1.bf16.msra.mxu0 0
        %2250 = vmatprep.subr.bf16.mxu0 0
        %2251 = vmatpush1.bf16.msra.mxu0 0
        %2252 = vmatprep.subr.bf16.mxu0 0
        %2253 = vmatpush1.bf16.msra.mxu0 0
        %2254 = vmatprep.subr.bf16.mxu0 0
        %2255 = vmatpush1.bf16.msra.mxu0 0
        %2256 = vmatprep.subr.bf16.mxu0 0
        %2257 = vmatpush1.bf16.msra.mxu0 0
        %2258 = vmatprep.subr.bf16.mxu0 0
        %2259 = vmatpush1.bf16.msra.mxu0 0
        %2260 = vmatprep.subr.bf16.mxu0 0
        %2261 = vmatpush1.bf16.msra.mxu0 0
        %2262 = vmatprep.subr.bf16.mxu0 0
        %2263 = vmatpush1.bf16.msra.mxu0 0
        %2264 = vmatprep.subr.bf16.mxu0 0
        %2265 = vmatpush1.bf16.msra.mxu0 0
        %2266 = vmatprep.subr.bf16.mxu0 0
        %2267 = vmatpush1.bf16.msra.mxu0 0
        %2268 = vmatprep.subr.bf16.mxu0 0
        %2269 = vmatpush1.bf16.msra.mxu0 0
        %2270 = vmatprep.mubr.bf16.mxu0 0
        %2271 = vmatmul.mubr.bf16.gmra.mrb[0].mxu0 %v2236
        %v2272 = vpop.f32.mrb[0].mxu0
        %v2273 = vadd.f32 0.0, %v2272
        %v2274 = vpop.f32.mrb[0].mxu0
        %v2275 = vpop.f32.mrb[0].mxu0
        %v2276 = vadd.f32 0.0, %v2275
        %v2277 = vpop.f32.mrb[0].mxu0
        %2278 = vdwg.mxu0
        %v2280 = vsel %vm2142, %v2232, 0
        %2282 = vmatprep.subr.bf16.mxu0 0
        %2283 = vmatpush1.bf16.msra.mxu0 %v1948
        %2284 = vmatprep.subr.bf16.mxu0 0
        %2285 = vmatpush1.bf16.msra.mxu0 0
        %2286 = vmatprep.subr.bf16.mxu0 0
        %2287 = vmatpush1.bf16.msra.mxu0 0
        %2288 = vmatprep.subr.bf16.mxu0 0
        %2289 = vmatpush1.bf16.msra.mxu0 0
        %2290 = vmatprep.subr.bf16.mxu0 0
        %2291 = vmatpush1.bf16.msra.mxu0 0
        %2292 = vmatprep.subr.bf16.mxu0 0
        %2293 = vmatpush1.bf16.msra.mxu0 0
        %2294 = vmatprep.subr.bf16.mxu0 0
        %2295 = vmatpush1.bf16.msra.mxu0 0
        %2296 = vmatprep.subr.bf16.mxu0 0
        %2297 = vmatpush1.bf16.msra.mxu0 0
        %2298 = vmatprep.subr.bf16.mxu0 0
        %2299 = vmatpush1.bf16.msra.mxu0 0
        %2300 = vmatprep.subr.bf16.mxu0 0
        %2301 = vmatpush1.bf16.msra.mxu0 0
        %2302 = vmatprep.subr.bf16.mxu0 0
        %2303 = vmatpush1.bf16.msra.mxu0 0
        %2304 = vmatprep.subr.bf16.mxu0 0
        %2305 = vmatpush1.bf16.msra.mxu0 0
        %2306 = vmatprep.subr.bf16.mxu0 0
        %2307 = vmatpush1.bf16.msra.mxu0 0
        %2308 = vmatprep.subr.bf16.mxu0 0
        %2309 = vmatpush1.bf16.msra.mxu0 0
        %2310 = vmatprep.subr.bf16.mxu0 0
        %2311 = vmatpush1.bf16.msra.mxu0 0
        %2312 = vmatprep.subr.bf16.mxu0 0
        %2313 = vmatpush1.bf16.msra.mxu0 0
        %2314 = vmatprep.mubr.bf16.mxu0 0
        %2315 = vmatmul.mubr.bf16.gmra.mrb[0].mxu0 %v2280
        %v2316 = vpop.f32.mrb[0].mxu0
        %v2317 = vadd.f32 0.0, %v2316
        %v2318 = vpop.f32.mrb[0].mxu0
        %v2319 = vpop.f32.mrb[0].mxu0
        %v2320 = vadd.f32 0.0, %v2319
        %v2321 = vpop.f32.mrb[0].mxu0
        %2322 = vdwg.mxu0
        %v2324 = vsel %vm2142, %v2233, 0
        %2326 = vmatprep.subr.bf16.mxu0 0
        %2327 = vmatpush1.bf16.msra.mxu0 %v1949
        %2328 = vmatprep.subr.bf16.mxu0 0
        %2329 = vmatpush1.bf16.msra.mxu0 0
        %2330 = vmatprep.subr.bf16.mxu0 0
        %2331 = vmatpush1.bf16.msra.mxu0 0
        %2332 = vmatprep.subr.bf16.mxu0 0
        %2333 = vmatpush1.bf16.msra.mxu0 0
        %2334 = vmatprep.subr.bf16.mxu0 0
        %2335 = vmatpush1.bf16.msra.mxu0 0
        %2336 = vmatprep.subr.bf16.mxu0 0
        %2337 = vmatpush1.bf16.msra.mxu0 0
        %2338 = vmatprep.subr.bf16.mxu0 0
        %2339 = vmatpush1.bf16.msra.mxu0 0
        %2340 = vmatprep.subr.bf16.mxu0 0
        %2341 = vmatpush1.bf16.msra.mxu0 0
        %2342 = vmatprep.subr.bf16.mxu0 0
        %2343 = vmatpush1.bf16.msra.mxu0 0
        %2344 = vmatprep.subr.bf16.mxu0 0
        %2345 = vmatpush1.bf16.msra.mxu0 0
        %2346 = vmatprep.subr.bf16.mxu0 0
        %2347 = vmatpush1.bf16.msra.mxu0 0
        %2348 = vmatprep.subr.bf16.mxu0 0
        %2349 = vmatpush1.bf16.msra.mxu0 0
        %2350 = vmatprep.subr.bf16.mxu0 0
        %2351 = vmatpush1.bf16.msra.mxu0 0
        %2352 = vmatprep.subr.bf16.mxu0 0
        %2353 = vmatpush1.bf16.msra.mxu0 0
        %2354 = vmatprep.subr.bf16.mxu0 0
        %2355 = vmatpush1.bf16.msra.mxu0 0
        %2356 = vmatprep.subr.bf16.mxu0 0
        %2357 = vmatpush1.bf16.msra.mxu0 0
        %2358 = vmatprep.mubr.bf16.mxu0 0
        %2359 = vmatmul.mubr.bf16.gmra.mrb[0].mxu0 %v2324
        %v2360 = vpop.f32.mrb[0].mxu0
        %v2361 = vadd.f32 0.0, %v2360
        %v2362 = vpop.f32.mrb[0].mxu0
        %v2363 = vpop.f32.mrb[0].mxu0
        %v2364 = vadd.f32 0.0, %v2363
        %v2365 = vpop.f32.mrb[0].mxu0
        %2366 = vdwg.mxu0
        %v2368 = vsel %vm2142, %v2234, 0
        %2370 = vmatprep.subr.bf16.mxu0 0
        %2371 = vmatpush1.bf16.msra.mxu0 %v1950
        %2372 = vmatprep.subr.bf16.mxu0 0
        %2373 = vmatpush1.bf16.msra.mxu0 0
        %2374 = vmatprep.subr.bf16.mxu0 0
        %2375 = vmatpush1.bf16.msra.mxu0 0
        %2376 = vmatprep.subr.bf16.mxu0 0
        %2377 = vmatpush1.bf16.msra.mxu0 0
        %2378 = vmatprep.subr.bf16.mxu0 0
        %2379 = vmatpush1.bf16.msra.mxu0 0
        %2380 = vmatprep.subr.bf16.mxu0 0
        %2381 = vmatpush1.bf16.msra.mxu0 0
        %2382 = vmatprep.subr.bf16.mxu0 0
        %2383 = vmatpush1.bf16.msra.mxu0 0
        %2384 = vmatprep.subr.bf16.mxu0 0
        %2385 = vmatpush1.bf16.msra.mxu0 0
        %2386 = vmatprep.subr.bf16.mxu0 0
        %2387 = vmatpush1.bf16.msra.mxu0 0
        %2388 = vmatprep.subr.bf16.mxu0 0
        %2389 = vmatpush1.bf16.msra.mxu0 0
        %2390 = vmatprep.subr.bf16.mxu0 0
        %2391 = vmatpush1.bf16.msra.mxu0 0
        %2392 = vmatprep.subr.bf16.mxu0 0
        %2393 = vmatpush1.bf16.msra.mxu0 0
        %2394 = vmatprep.subr.bf16.mxu0 0
        %2395 = vmatpush1.bf16.msra.mxu0 0
        %2396 = vmatprep.subr.bf16.mxu0 0
        %2397 = vmatpush1.bf16.msra.mxu0 0
        %2398 = vmatprep.subr.bf16.mxu0 0
        %2399 = vmatpush1.bf16.msra.mxu0 0
        %2400 = vmatprep.subr.bf16.mxu0 0
        %2401 = vmatpush1.bf16.msra.mxu0 0
        %2402 = vmatprep.mubr.bf16.mxu0 0
        %2403 = vmatmul.mubr.bf16.gmra.mrb[0].mxu0 %v2368
        %v2404 = vpop.f32.mrb[0].mxu0
        %v2405 = vadd.f32 0.0, %v2404
        %v2406 = vpop.f32.mrb[0].mxu0
        %v2407 = vpop.f32.mrb[0].mxu0
        %v2408 = vadd.f32 0.0, %v2407
        %v2409 = vpop.f32.mrb[0].mxu0
        %2410 = vdwg.mxu0
        %v2411 = vcombine.low %v2273, %v2361
        %v2412 = vcombine.high %v2273, %v2361
        %v2414 = vunpack.c.l.s4 1983009808
        %v2415 = vunpack.c.0.s8 %v2414
        %v2416 = vlaneseq
        %v2417 = vshrl.u32 %v2416, 7
        %v2418 = vsub.s32 %v2415, %v2417
        %v2419 = vrot.slane %v2411, %v2418
        %v2421 = vunpack.c.l.s4 1983009808
        %v2422 = vunpack.c.0.s8 %v2421
        %v2423 = vlaneseq
        %v2424 = vshrl.u32 %v2423, 7
        %v2425 = vsub.s32 %v2422, %v2424
        %v2426 = vrot.slane %v2412, %v2425
        %v2427 = vcombine.low %v2317, %v2405
        %v2428 = vcombine.high %v2317, %v2405
        %v2430 = vunpack.c.l.s4 1983009808
        %v2431 = vunpack.c.0.s8 %v2430
        %v2432 = vlaneseq
        %v2433 = vshrl.u32 %v2432, 7
        %v2434 = vsub.s32 %v2431, %v2433
        %v2435 = vrot.slane %v2427, %v2434
        %v2437 = vunpack.c.l.s4 1983009808
        %v2438 = vunpack.c.0.s8 %v2437
        %v2439 = vlaneseq
        %v2440 = vshrl.u32 %v2439, 7
        %v2441 = vsub.s32 %v2438, %v2440
        %v2442 = vrot.slane %v2428, %v2441
        %v2443 = vcombine.low %v2419, %v2435
        %v2444 = vcombine.high %v2419, %v2435
        %v2446 = vunpack.c.l.s4 1934713408
        %v2447 = vunpack.c.0.s8 %v2446
        %v2448 = vlaneseq
        %v2449 = vshrl.u32 %v2448, 7
        %v2450 = vsub.s32 %v2447, %v2449
        %v2451 = vrot.slane %v2443, %v2450
        %v2453 = vunpack.c.l.s4 1934713408
        %v2454 = vunpack.c.0.s8 %v2453
        %v2455 = vlaneseq
        %v2456 = vshrl.u32 %v2455, 7
        %v2457 = vsub.s32 %v2454, %v2456
        %v2458 = vrot.slane %v2444, %v2457
        %v2459 = vcombine.low %v2426, %v2442
        %v2460 = vcombine.high %v2426, %v2442
        %v2462 = vunpack.c.l.s4 1934713408
        %v2463 = vunpack.c.0.s8 %v2462
        %v2464 = vlaneseq
        %v2465 = vshrl.u32 %v2464, 7
        %v2466 = vsub.s32 %v2463, %v2465
        %v2467 = vrot.slane %v2459, %v2466
        %v2469 = vunpack.c.l.s4 1934713408
        %v2470 = vunpack.c.0.s8 %v2469
        %v2471 = vlaneseq
        %v2472 = vshrl.u32 %v2471, 7
        %v2473 = vsub.s32 %v2470, %v2472
        %v2474 = vrot.slane %v2460, %v2473
        %v2475 = vcombine.high %v2451, 0.0
        %v2476 = vcombine.high %v2458, 0.0
        %v2477 = vcombine.high %v2467, 0.0
        %v2478 = vcombine.high %v2474, 0.0
        %v2479 = vcombine.low %v2276, %v2364
        %v2480 = vcombine.high %v2276, %v2364
        %v2482 = vunpack.c.l.s4 1983009808
        %v2483 = vunpack.c.0.s8 %v2482
        %v2484 = vlaneseq
        %v2485 = vshrl.u32 %v2484, 7
        %v2486 = vsub.s32 %v2483, %v2485
        %v2487 = vrot.slane %v2479, %v2486
        %v2489 = vunpack.c.l.s4 1983009808
        %v2490 = vunpack.c.0.s8 %v2489
        %v2491 = vlaneseq
        %v2492 = vshrl.u32 %v2491, 7
        %v2493 = vsub.s32 %v2490, %v2492
        %v2494 = vrot.slane %v2480, %v2493
        %v2495 = vcombine.low %v2320, %v2408
        %v2496 = vcombine.high %v2320, %v2408
        %v2498 = vunpack.c.l.s4 1983009808
        %v2499 = vunpack.c.0.s8 %v2498
        %v2500 = vlaneseq
        %v2501 = vshrl.u32 %v2500, 7
        %v2502 = vsub.s32 %v2499, %v2501
        %v2503 = vrot.slane %v2495, %v2502
        %v2505 = vunpack.c.l.s4 1983009808
        %v2506 = vunpack.c.0.s8 %v2505
        %v2507 = vlaneseq
        %v2508 = vshrl.u32 %v2507, 7
        %v2509 = vsub.s32 %v2506, %v2508
        %v2510 = vrot.slane %v2496, %v2509
        %v2511 = vcombine.low %v2487, %v2503
        %v2512 = vcombine.high %v2487, %v2503
        %v2514 = vunpack.c.l.s4 1934713408
        %v2515 = vunpack.c.0.s8 %v2514
        %v2516 = vlaneseq
        %v2517 = vshrl.u32 %v2516, 7
        %v2518 = vsub.s32 %v2515, %v2517
        %v2519 = vrot.slane %v2511, %v2518
        %v2521 = vunpack.c.l.s4 1934713408
        %v2522 = vunpack.c.0.s8 %v2521
        %v2523 = vlaneseq
        %v2524 = vshrl.u32 %v2523, 7
        %v2525 = vsub.s32 %v2522, %v2524
        %v2526 = vrot.slane %v2512, %v2525
        %v2527 = vcombine.low %v2494, %v2510
        %v2528 = vcombine.high %v2494, %v2510
        %v2530 = vunpack.c.l.s4 1934713408
        %v2531 = vunpack.c.0.s8 %v2530
        %v2532 = vlaneseq
        %v2533 = vshrl.u32 %v2532, 7
        %v2534 = vsub.s32 %v2531, %v2533
        %v2535 = vrot.slane %v2527, %v2534
        %v2537 = vunpack.c.l.s4 1934713408
        %v2538 = vunpack.c.0.s8 %v2537
        %v2539 = vlaneseq
        %v2540 = vshrl.u32 %v2539, 7
        %v2541 = vsub.s32 %v2538, %v2540
        %v2542 = vrot.slane %v2528, %v2541
        %v2543 = vcombine.high %v2519, 0.0
        %v2544 = vcombine.high %v2526, 0.0
        %v2545 = vcombine.high %v2535, 0.0
        %v2546 = vcombine.high %v2542, 0.0
        %v2547 = vcombine.low %v2451, %v2458
        %v2549 = vunpack.c.l.s4 1983009808
        %v2550 = vunpack.c.0.s8 %v2549
        %v2551 = vlaneseq
        %v2552 = vshrl.u32 %v2551, 7
        %v2553 = vsub.s32 %v2550, %v2552
        %v2554 = vrot.slane %v2547, %v2553
        %v2555 = vcombine.low %v2475, %v2476
        %v2557 = vunpack.c.l.s4 1983009808
        %v2558 = vunpack.c.0.s8 %v2557
        %v2559 = vlaneseq
        %v2560 = vshrl.u32 %v2559, 7
        %v2561 = vsub.s32 %v2558, %v2560
        %v2562 = vrot.slane %v2555, %v2561
        %v2563 = vcombine.low %v2467, %v2474
        %v2565 = vunpack.c.l.s4 1983009808
        %v2566 = vunpack.c.0.s8 %v2565
        %v2567 = vlaneseq
        %v2568 = vshrl.u32 %v2567, 7
        %v2569 = vsub.s32 %v2566, %v2568
        %v2570 = vrot.slane %v2563, %v2569
        %v2571 = vcombine.low %v2477, %v2478
        %v2573 = vunpack.c.l.s4 1983009808
        %v2574 = vunpack.c.0.s8 %v2573
        %v2575 = vlaneseq
        %v2576 = vshrl.u32 %v2575, 7
        %v2577 = vsub.s32 %v2574, %v2576
        %v2578 = vrot.slane %v2571, %v2577
        %v2579 = vcombine.low %v2554, %v2562
        %v2580 = vcombine.high %v2554, %v2562
        %v2582 = vunpack.c.l.s4 1934713408
        %v2583 = vunpack.c.0.s8 %v2582
        %v2584 = vlaneseq
        %v2585 = vshrl.u32 %v2584, 7
        %v2586 = vsub.s32 %v2583, %v2585
        %v2587 = vrot.slane %v2579, %v2586
        %v2589 = vunpack.c.l.s4 1934713408
        %v2590 = vunpack.c.0.s8 %v2589
        %v2591 = vlaneseq
        %v2592 = vshrl.u32 %v2591, 7
        %v2593 = vsub.s32 %v2590, %v2592
        %v2594 = vrot.slane %v2580, %v2593
        %v2595 = vcombine.low %v2570, %v2578
        %v2596 = vcombine.high %v2570, %v2578
        %v2598 = vunpack.c.l.s4 1934713408
        %v2599 = vunpack.c.0.s8 %v2598
        %v2600 = vlaneseq
        %v2601 = vshrl.u32 %v2600, 7
        %v2602 = vsub.s32 %v2599, %v2601
        %v2603 = vrot.slane %v2595, %v2602
        %v2605 = vunpack.c.l.s4 1934713408
        %v2606 = vunpack.c.0.s8 %v2605
        %v2607 = vlaneseq
        %v2608 = vshrl.u32 %v2607, 7
        %v2609 = vsub.s32 %v2606, %v2608
        %v2610 = vrot.slane %v2596, %v2609
        %v2611 = vcombine.low %v2587, %v2603
        %v2612 = vcombine.high %v2587, %v2603
        %v2613 = vcombine.low %v2594, %v2610
        %v2614 = vcombine.high %v2594, %v2610
        %v2615 = vcombine.low %v2519, %v2526
        %v2617 = vunpack.c.l.s4 1983009808
        %v2618 = vunpack.c.0.s8 %v2617
        %v2619 = vlaneseq
        %v2620 = vshrl.u32 %v2619, 7
        %v2621 = vsub.s32 %v2618, %v2620
        %v2622 = vrot.slane %v2615, %v2621
        %v2623 = vcombine.low %v2543, %v2544
        %v2625 = vunpack.c.l.s4 1983009808
        %v2626 = vunpack.c.0.s8 %v2625
        %v2627 = vlaneseq
        %v2628 = vshrl.u32 %v2627, 7
        %v2629 = vsub.s32 %v2626, %v2628
        %v2630 = vrot.slane %v2623, %v2629
        %v2631 = vcombine.low %v2535, %v2542
        %v2633 = vunpack.c.l.s4 1983009808
        %v2634 = vunpack.c.0.s8 %v2633
        %v2635 = vlaneseq
        %v2636 = vshrl.u32 %v2635, 7
        %v2637 = vsub.s32 %v2634, %v2636
        %v2638 = vrot.slane %v2631, %v2637
        %v2639 = vcombine.low %v2545, %v2546
        %v2641 = vunpack.c.l.s4 1983009808
        %v2642 = vunpack.c.0.s8 %v2641
        %v2643 = vlaneseq
        %v2644 = vshrl.u32 %v2643, 7
        %v2645 = vsub.s32 %v2642, %v2644
        %v2646 = vrot.slane %v2639, %v2645
        %v2647 = vcombine.low %v2622, %v2630
        %v2648 = vcombine.high %v2622, %v2630
        %v2650 = vunpack.c.l.s4 1934713408
        %v2651 = vunpack.c.0.s8 %v2650
        %v2652 = vlaneseq
        %v2653 = vshrl.u32 %v2652, 7
        %v2654 = vsub.s32 %v2651, %v2653
        %v2655 = vrot.slane %v2647, %v2654
        %v2657 = vunpack.c.l.s4 1934713408
        %v2658 = vunpack.c.0.s8 %v2657
        %v2659 = vlaneseq
        %v2660 = vshrl.u32 %v2659, 7
        %v2661 = vsub.s32 %v2658, %v2660
        %v2662 = vrot.slane %v2648, %v2661
        %v2663 = vcombine.low %v2638, %v2646
        %v2664 = vcombine.high %v2638, %v2646
        %v2666 = vunpack.c.l.s4 1934713408
        %v2667 = vunpack.c.0.s8 %v2666
        %v2668 = vlaneseq
        %v2669 = vshrl.u32 %v2668, 7
        %v2670 = vsub.s32 %v2667, %v2669
        %v2671 = vrot.slane %v2663, %v2670
        %v2673 = vunpack.c.l.s4 1934713408
        %v2674 = vunpack.c.0.s8 %v2673
        %v2675 = vlaneseq
        %v2676 = vshrl.u32 %v2675, 7
        %v2677 = vsub.s32 %v2674, %v2676
        %v2678 = vrot.slane %v2664, %v2677
        %v2679 = vcombine.low %v2655, %v2671
        %v2680 = vcombine.high %v2655, %v2671
        %v2681 = vcombine.low %v2662, %v2678
        %v2682 = vcombine.high %v2662, %v2678
        %2685 = vrot.lane.b32.xlu0 %v2612, 32
        %v2686 = vpop.permute.xlu0 %2685
        %2687 = vrot.lane.b32.xlu0 %v2680, 32
        %v2688 = vpop.permute.xlu0 %2687
        %2693 = vrot.lane.b32.xlu0 %v2613, 64
        %v2694 = vpop.permute.xlu0 %2693
        %2695 = vrot.lane.b32.xlu0 %v2681, 64
        %v2696 = vpop.permute.xlu0 %2695
        %2701 = vrot.lane.b32.xlu0 %v2614, 96
        %v2702 = vpop.permute.xlu0 %2701
        %2703 = vrot.lane.b32.xlu0 %v2682, 96
        %v2704 = vpop.permute.xlu0 %2703
        %v2707 = vsel %vm1953, %v2611, %v2686
        %v2708 = vsel %vm1953, %v2679, %v2688
        %vm2709 = vcmask 523264
        %v2710 = vsel %vm2709, %v2707, %v2694
        %v2711 = vsel %vm2709, %v2708, %v2696
        %vm2712 = vcmask 785408
        %v2713 = vsel %vm2712, %v2710, %v2702
        %v2714 = vsel %vm2712, %v2711, %v2704
        %v2715 = vpack.c.bf16 %v2714, %v2713
        %v2716 = vld [vmem:[%s726] sm:$0xf]
        %v2717 = vld [vmem:[%s726 + $0x4] sm:$0xf]
        %v2718 = vld [vmem:[%s726 + $0x8] sm:$0xf]
        %v2719 = vld [vmem:[%s726 + $0xc] sm:$0xf]
        %v2720 = vld [vmem:[%s726 + $0x10] sm:$0xf]
        %v2721 = vld [vmem:[%s726 + $0x14] sm:$0xf]
        %v2722 = vld [vmem:[%s726 + $0x18] sm:$0xf]
        %v2723 = vld [vmem:[%s726 + $0x1c] sm:$0xf]
        %v2724 = vld [vmem:[%s726 + $0x20] sm:$0xf]
        %v2725 = vld [vmem:[%s726 + $0x24] sm:$0xf]
        %v2726 = vld [vmem:[%s726 + $0x28] sm:$0xf]
        %v2727 = vld [vmem:[%s726 + $0x2c] sm:$0xf]
        %v2728 = vld [vmem:[%s726 + $0x30] sm:$0xf]
        %v2729 = vld [vmem:[%s726 + $0x34] sm:$0xf]
        %v2730 = vld [vmem:[%s726 + $0x38] sm:$0xf]
        %v2731 = vld [vmem:[%s726 + $0x3c] sm:$0xf]
        %v2732 = vld [vmem:[%s729] sm:$0x1]
        %v2734 = vlaneseq
        %v2735 = vshrl.u32 %v2734, 7
        %v2736 = vsub.s32 0, %v2735
        %v2737 = vrot.slane %v2732, %v2736
        %v2755 = vunpack.c.l.b16 %v2716
        %v2756 = vunpack.c.l.b16 %v2717
        %v2757 = vunpack.c.l.b16 %v2718
        %v2758 = vunpack.c.l.b16 %v2719
        %v2759 = vunpack.c.l.b16 %v2720
        %v2760 = vunpack.c.l.b16 %v2721
        %v2761 = vunpack.c.l.b16 %v2722
        %v2762 = vunpack.c.l.b16 %v2723
        %v2763 = vunpack.c.l.b16 %v2724
        %v2764 = vunpack.c.l.b16 %v2725
        %v2765 = vunpack.c.l.b16 %v2726
        %v2766 = vunpack.c.l.b16 %v2727
        %v2767 = vunpack.c.l.b16 %v2728
        %v2768 = vunpack.c.l.b16 %v2729
        %v2769 = vunpack.c.l.b16 %v2730
        %v2770 = vunpack.c.l.b16 %v2731
        %v2771 = vpack.c.b16 %v2756, %v2755
        %v2772 = vpack.c.b16 %v2758, %v2757
        %v2773 = vpack.c.b16 %v2760, %v2759
        %v2774 = vpack.c.b16 %v2762, %v2761
        %v2775 = vpack.c.b16 %v2764, %v2763
        %v2776 = vpack.c.b16 %v2766, %v2765
        %v2777 = vpack.c.b16 %v2768, %v2767
        %v2778 = vpack.c.b16 %v2770, %v2769
        %2787 = vmatprep.subr.bf16.mxu0 0
        %2788 = vmatpush1.bf16.msra.mxu0 %v2771
        %2789 = vmatprep.subr.bf16.mxu0 0
        %2790 = vmatpush1.bf16.msra.mxu0 %v2772
        %2791 = vmatprep.subr.bf16.mxu0 0
        %2792 = vmatpush1.bf16.msra.mxu0 %v2773
        %2793 = vmatprep.subr.bf16.mxu0 0
        %2794 = vmatpush1.bf16.msra.mxu0 %v2774
        %2795 = vmatprep.subr.bf16.mxu0 0
        %2796 = vmatpush1.bf16.msra.mxu0 %v2775
        %2797 = vmatprep.subr.bf16.mxu0 0
        %2798 = vmatpush1.bf16.msra.mxu0 %v2776
        %2799 = vmatprep.subr.bf16.mxu0 0
        %2800 = vmatpush1.bf16.msra.mxu0 %v2777
        %2801 = vmatprep.subr.bf16.mxu0 0
        %2802 = vmatpush1.bf16.msra.mxu0 %v2778
        %2803 = vmatprep.subr.bf16.mxu0 0
        %2804 = vmatpush1.bf16.msra.mxu0 0
        %2805 = vmatprep.subr.bf16.mxu0 0
        %2806 = vmatpush1.bf16.msra.mxu0 0
        %2807 = vmatprep.subr.bf16.mxu0 0
        %2808 = vmatpush1.bf16.msra.mxu0 0
        %2809 = vmatprep.subr.bf16.mxu0 0
        %2810 = vmatpush1.bf16.msra.mxu0 0
        %2811 = vmatprep.subr.bf16.mxu0 0
        %2812 = vmatpush1.bf16.msra.mxu0 0
        %2813 = vmatprep.subr.bf16.mxu0 0
        %2814 = vmatpush1.bf16.msra.mxu0 0
        %2815 = vmatprep.subr.bf16.mxu0 0
        %2816 = vmatpush1.bf16.msra.mxu0 0
        %2817 = vmatprep.subr.bf16.mxu0 0
        %2818 = vmatpush1.bf16.msra.mxu0 0
        %2819 = vmatprep.mubr.bf16.mxu0 0
        %2820 = vmatmul.mubr.bf16.gmra.mrb[0].mxu0 %v2715
        %v2821 = vpop.f32.mrb[0].mxu0
        %v2822 = vadd.f32 %v2737, %v2821
        %v2823 = vpop.f32.mrb[0].mxu0
        %v2824 = vpop.f32.mrb[0].mxu0
        %v2825 = vadd.f32 %v2737, %v2824
        %v2826 = vpop.f32.mrb[0].mxu0
        %2827 = vdwg.mxu0
        %v2828 = vadd.f32 %v752, %v2822
        %v2829 = vadd.f32 %v753, %v2825
        %v2830 = vld [vmem:[%s732] sm:$0x1]
        %v2831 = vld [vmem:[%s735] sm:$0x1]
        %2832 = vadd.xlane.f32.xlu0 %v2828
        %v2833 = vpop.xlane.xlu0 %2832
        %2834 = vadd.xlane.f32.xlu0 %v2829
        %v2835 = vpop.xlane.xlu0 %2834
        %v2836 = vmul.f32 %v2833, %v760
        %v2837 = vmul.f32 %v2835, %v760
        %v2838 = vmul.f32 %v2828, %v2828
        %v2839 = vmul.f32 %v2829, %v2829
        %2840 = vadd.xlane.f32.xlu0 %v2838
        %v2841 = vpop.xlane.xlu0 %2840
        %2842 = vadd.xlane.f32.xlu0 %v2839
        %v2843 = vpop.xlane.xlu0 %2842
        %v2844 = vmul.f32 %v2841, %v760
        %v2845 = vmul.f32 %v2843, %v760
        %v2846 = vmul.f32 %v2836, %v2836
        %v2847 = vmul.f32 %v2837, %v2837
        %v2848 = vsub.f32 %v2844, %v2846
        %v2849 = vsub.f32 %v2845, %v2847
        %v2850 = vsub.f32 %v2828, %v2836
        %v2851 = vsub.f32 %v2829, %v2837
        %v2852 = vadd.f32 %v2848, 1e-05
        %v2853 = vadd.f32 %v2849, 1e-05
        %v2854 = vrsqrt.pop %v2852
        %v2855 = vrsqrt.pop %v2853
        %v2856 = vmul.f32 %v2850, %v2854
        %v2857 = vmul.f32 %v2851, %v2855
        %v2859 = vlaneseq
        %v2860 = vshrl.u32 %v2859, 7
        %v2861 = vsub.s32 0, %v2860
        %v2862 = vrot.slane %v2830, %v2861
        %v2864 = vmul.f32 %v2856, %v2862
        %v2865 = vmul.f32 %v2857, %v2862
        %v2867 = vlaneseq
        %v2868 = vshrl.u32 %v2867, 7
        %v2869 = vsub.s32 0, %v2868
        %v2870 = vrot.slane %v2831, %v2869
        %v2872 = vadd.f32 %v2864, %v2870
        %v2873 = vadd.f32 %v2865, %v2870
        %v2874 = vpack.c.bf16 %v2873, %v2872
        %v2875 = vld [vmem:[%s618] sm:$0xff]
        %v2876 = vld [vmem:[%s618 + $0x8] sm:$0xff]
        %v2877 = vld [vmem:[%s618 + $0x10] sm:$0xff]
        %v2878 = vld [vmem:[%s618 + $0x18] sm:$0xff]
        %v2879 = vld [vmem:[%s618 + $0x20] sm:$0xff]
        %v2880 = vld [vmem:[%s618 + $0x28] sm:$0xff]
        %v2881 = vld [vmem:[%s618 + $0x30] sm:$0xff]
        %v2882 = vld [vmem:[%s618 + $0x38] sm:$0xff]
        %v2883 = vld [vmem:[%s618 + $0x40] sm:$0xff]
        %v2884 = vld [vmem:[%s618 + $0x48] sm:$0xff]
        %v2885 = vld [vmem:[%s618 + $0x50] sm:$0xff]
        %v2886 = vld [vmem:[%s618 + $0x58] sm:$0xff]
        %v2887 = vld [vmem:[%s618 + $0x60] sm:$0xff]
        %v2888 = vld [vmem:[%s618 + $0x68] sm:$0xff]
        %v2889 = vld [vmem:[%s618 + $0x70] sm:$0xff]
        %v2890 = vld [vmem:[%s618 + $0x78] sm:$0xff]
        %v2891 = vld [vmem:[%s618 + $0x80] sm:$0xff]
        %v2892 = vld [vmem:[%s618 + $0x88] sm:$0xff]
        %v2893 = vld [vmem:[%s618 + $0x90] sm:$0xff]
        %v2894 = vld [vmem:[%s618 + $0x98] sm:$0xff]
        %v2895 = vld [vmem:[%s618 + $0xa0] sm:$0xff]
        %v2896 = vld [vmem:[%s618 + $0xa8] sm:$0xff]
        %v2897 = vld [vmem:[%s618 + $0xb0] sm:$0xff]
        %v2898 = vld [vmem:[%s618 + $0xb8] sm:$0xff]
        %v2899 = vld [vmem:[%s618 + $0xc0] sm:$0xff]
        %v2900 = vld [vmem:[%s618 + $0xc8] sm:$0xff]
        %v2901 = vld [vmem:[%s618 + $0xd0] sm:$0xff]
        %v2902 = vld [vmem:[%s618 + $0xd8] sm:$0xff]
        %v2903 = vld [vmem:[%s618 + $0xe0] sm:$0xff]
        %v2904 = vld [vmem:[%s618 + $0xe8] sm:$0xff]
        %v2905 = vld [vmem:[%s618 + $0xf0] sm:$0xff]
        %v2906 = vld [vmem:[%s618 + $0xf8] sm:$0xff]
        %v2907 = vld [vmem:[%s739] sm:$0xf]
        %v2909 = vlaneseq
        %v2910 = vshrl.u32 %v2909, 7
        %v2911 = vsub.s32 0, %v2910
        %v2912 = vrot.slane %v2907, %v2911
        %v2913 = vlaneseq
        %v2914 = vshrl.u32 %v2913, 7
        %v2915 = vsub.s32 1, %v2914
        %v2916 = vrot.slane %v2907, %v2915
        %v2917 = vlaneseq
        %v2918 = vshrl.u32 %v2917, 7
        %v2919 = vsub.s32 2, %v2918
        %v2920 = vrot.slane %v2907, %v2919
        %v2921 = vlaneseq
        %v2922 = vshrl.u32 %v2921, 7
        %v2923 = vsub.s32 3, %v2922
        %v2924 = vrot.slane %v2907, %v2923
        %v2961 = vunpack.c.l.b16 %v2875
        %v2962 = vunpack.c.h.b16 %v2875
        %v2963 = vunpack.c.l.b16 %v2876
        %v2964 = vunpack.c.h.b16 %v2876
        %v2965 = vunpack.c.l.b16 %v2877
        %v2966 = vunpack.c.h.b16 %v2877
        %v2967 = vunpack.c.l.b16 %v2878
        %v2968 = vunpack.c.h.b16 %v2878
        %v2969 = vunpack.c.l.b16 %v2879
        %v2970 = vunpack.c.h.b16 %v2879
        %v2971 = vunpack.c.l.b16 %v2880
        %v2972 = vunpack.c.h.b16 %v2880
        %v2973 = vunpack.c.l.b16 %v2881
        %v2974 = vunpack.c.h.b16 %v2881
        %v2975 = vunpack.c.l.b16 %v2882
        %v2976 = vunpack.c.h.b16 %v2882
        %v2977 = vunpack.c.l.b16 %v2883
        %v2978 = vunpack.c.h.b16 %v2883
        %v2979 = vunpack.c.l.b16 %v2884
        %v2980 = vunpack.c.h.b16 %v2884
        %v2981 = vunpack.c.l.b16 %v2885
        %v2982 = vunpack.c.h.b16 %v2885
        %v2983 = vunpack.c.l.b16 %v2886
        %v2984 = vunpack.c.h.b16 %v2886
        %v2985 = vunpack.c.l.b16 %v2887
        %v2986 = vunpack.c.h.b16 %v2887
        %v2987 = vunpack.c.l.b16 %v2888
        %v2988 = vunpack.c.h.b16 %v2888
        %v2989 = vunpack.c.l.b16 %v2889
        %v2990 = vunpack.c.h.b16 %v2889
        %v2991 = vunpack.c.l.b16 %v2890
        %v2992 = vunpack.c.h.b16 %v2890
        %v2993 = vunpack.c.l.b16 %v2891
        %v2994 = vunpack.c.h.b16 %v2891
        %v2995 = vunpack.c.l.b16 %v2892
        %v2996 = vunpack.c.h.b16 %v2892
        %v2997 = vunpack.c.l.b16 %v2893
        %v2998 = vunpack.c.h.b16 %v2893
        %v2999 = vunpack.c.l.b16 %v2894
        %v3000 = vunpack.c.h.b16 %v2894
        %v3001 = vunpack.c.l.b16 %v2895
        %v3002 = vunpack.c.h.b16 %v2895
        %v3003 = vunpack.c.l.b16 %v2896
        %v3004 = vunpack.c.h.b16 %v2896
        %v3005 = vunpack.c.l.b16 %v2897
        %v3006 = vunpack.c.h.b16 %v2897
        %v3007 = vunpack.c.l.b16 %v2898
        %v3008 = vunpack.c.h.b16 %v2898
        %v3009 = vunpack.c.l.b16 %v2899
        %v3010 = vunpack.c.h.b16 %v2899
        %v3011 = vunpack.c.l.b16 %v2900
        %v3012 = vunpack.c.h.b16 %v2900
        %v3013 = vunpack.c.l.b16 %v2901
        %v3014 = vunpack.c.h.b16 %v2901
        %v3015 = vunpack.c.l.b16 %v2902
        %v3016 = vunpack.c.h.b16 %v2902
        %v3017 = vunpack.c.l.b16 %v2903
        %v3018 = vunpack.c.h.b16 %v2903
        %v3019 = vunpack.c.l.b16 %v2904
        %v3020 = vunpack.c.h.b16 %v2904
        %v3021 = vunpack.c.l.b16 %v2905
        %v3022 = vunpack.c.h.b16 %v2905
        %v3023 = vunpack.c.l.b16 %v2906
        %v3024 = vunpack.c.h.b16 %v2906
        %v3025 = vpack.c.b16 %v2965, %v2961
        %v3026 = vpack.c.b16 %v2966, %v2962
        %v3027 = vpack.c.b16 %v2967, %v2963
        %v3028 = vpack.c.b16 %v2968, %v2964
        %v3029 = vpack.c.b16 %v2973, %v2969
        %v3030 = vpack.c.b16 %v2974, %v2970
        %v3031 = vpack.c.b16 %v2975, %v2971
        %v3032 = vpack.c.b16 %v2976, %v2972
        %v3033 = vpack.c.b16 %v2981, %v2977
        %v3034 = vpack.c.b16 %v2982, %v2978
        %v3035 = vpack.c.b16 %v2983, %v2979
        %v3036 = vpack.c.b16 %v2984, %v2980
        %v3037 = vpack.c.b16 %v2989, %v2985
        %v3038 = vpack.c.b16 %v2990, %v2986
        %v3039 = vpack.c.b16 %v2991, %v2987
        %v3040 = vpack.c.b16 %v2992, %v2988
        %v3041 = vpack.c.b16 %v2997, %v2993
        %v3042 = vpack.c.b16 %v2998, %v2994
        %v3043 = vpack.c.b16 %v2999, %v2995
        %v3044 = vpack.c.b16 %v3000, %v2996
        %v3045 = vpack.c.b16 %v3005, %v3001
        %v3046 = vpack.c.b16 %v3006, %v3002
        %v3047 = vpack.c.b16 %v3007, %v3003
        %v3048 = vpack.c.b16 %v3008, %v3004
        %v3049 = vpack.c.b16 %v3013, %v3009
        %v3050 = vpack.c.b16 %v3014, %v3010
        %v3051 = vpack.c.b16 %v3015, %v3011
        %v3052 = vpack.c.b16 %v3016, %v3012
        %v3053 = vpack.c.b16 %v3021, %v3017
        %v3054 = vpack.c.b16 %v3022, %v3018
        %v3055 = vpack.c.b16 %v3023, %v3019
        %v3056 = vpack.c.b16 %v3024, %v3020
        %3089 = vmatprep.subr.bf16.mxu0 %v3026
        %3090 = vmatpush1.bf16.msra.mxu0 %v3025
        %3091 = vmatprep.subr.bf16.mxu0 %v3030
        %3092 = vmatpush1.bf16.msra.mxu0 %v3029
        %3093 = vmatprep.subr.bf16.mxu0 %v3034
        %3094 = vmatpush1.bf16.msra.mxu0 %v3033
        %3095 = vmatprep.subr.bf16.mxu0 %v3038
        %3096 = vmatpush1.bf16.msra.mxu0 %v3037
        %3097 = vmatprep.subr.bf16.mxu0 %v3042
        %3098 = vmatpush1.bf16.msra.mxu0 %v3041
        %3099 = vmatprep.subr.bf16.mxu0 %v3046
        %3100 = vmatpush1.bf16.msra.mxu0 %v3045
        %3101 = vmatprep.subr.bf16.mxu0 %v3050
        %3102 = vmatpush1.bf16.msra.mxu0 %v3049
        %3103 = vmatprep.subr.bf16.mxu0 %v3054
        %3104 = vmatpush1.bf16.msra.mxu0 %v3053
        %3105 = vmatprep.subr.bf16.mxu0 0
        %3106 = vmatpush1.bf16.msra.mxu0 0
        %3107 = vmatprep.subr.bf16.mxu0 0
        %3108 = vmatpush1.bf16.msra.mxu0 0
        %3109 = vmatprep.subr.bf16.mxu0 0
        %3110 = vmatpush1.bf16.msra.mxu0 0
        %3111 = vmatprep.subr.bf16.mxu0 0
        %3112 = vmatpush1.bf16.msra.mxu0 0
        %3113 = vmatprep.subr.bf16.mxu0 0
        %3114 = vmatpush1.bf16.msra.mxu0 0
        %3115 = vmatprep.subr.bf16.mxu0 0
        %3116 = vmatpush1.bf16.msra.mxu0 0
        %3117 = vmatprep.subr.bf16.mxu0 0
        %3118 = vmatpush1.bf16.msra.mxu0 0
        %3119 = vmatprep.subr.bf16.mxu0 0
        %3120 = vmatpush1.bf16.msra.mxu0 0
        %3121 = vmatprep.mubr.bf16.mxu0 0
        %3122 = vmatmul.mubr.bf16.gmra.mrb[0].mxu0 %v2874
        %v3123 = vpop.f32.mrb[0].mxu0
        %v3124 = vadd.f32 %v2912, %v3123
        %v3125 = vpop.f32.mrb[0].mxu0
        %v3126 = vadd.f32 %v2916, %v3125
        %v3127 = vpop.f32.mrb[0].mxu0
        %v3128 = vadd.f32 %v2912, %v3127
        %v3129 = vpop.f32.mrb[0].mxu0
        %v3130 = vadd.f32 %v2916, %v3129
        %3131 = vdwg.mxu0
        %3132 = vmatprep.subr.bf16.mxu0 %v3028
        %3133 = vmatpush1.bf16.msra.mxu0 %v3027
        %3134 = vmatprep.subr.bf16.mxu0 %v3032
        %3135 = vmatpush1.bf16.msra.mxu0 %v3031
        %3136 = vmatprep.subr.bf16.mxu0 %v3036
        %3137 = vmatpush1.bf16.msra.mxu0 %v3035
        %3138 = vmatprep.subr.bf16.mxu0 %v3040
        %3139 = vmatpush1.bf16.msra.mxu0 %v3039
        %3140 = vmatprep.subr.bf16.mxu0 %v3044
        %3141 = vmatpush1.bf16.msra.mxu0 %v3043
        %3142 = vmatprep.subr.bf16.mxu0 %v3048
        %3143 = vmatpush1.bf16.msra.mxu0 %v3047
        %3144 = vmatprep.subr.bf16.mxu0 %v3052
        %3145 = vmatpush1.bf16.msra.mxu0 %v3051
        %3146 = vmatprep.subr.bf16.mxu0 %v3056
        %3147 = vmatpush1.bf16.msra.mxu0 %v3055
        %3148 = vmatprep.subr.bf16.mxu0 0
        %3149 = vmatpush1.bf16.msra.mxu0 0
        %3150 = vmatprep.subr.bf16.mxu0 0
        %3151 = vmatpush1.bf16.msra.mxu0 0
        %3152 = vmatprep.subr.bf16.mxu0 0
        %3153 = vmatpush1.bf16.msra.mxu0 0
        %3154 = vmatprep.subr.bf16.mxu0 0
        %3155 = vmatpush1.bf16.msra.mxu0 0
        %3156 = vmatprep.subr.bf16.mxu0 0
        %3157 = vmatpush1.bf16.msra.mxu0 0
        %3158 = vmatprep.subr.bf16.mxu0 0
        %3159 = vmatpush1.bf16.msra.mxu0 0
        %3160 = vmatprep.subr.bf16.mxu0 0
        %3161 = vmatpush1.bf16.msra.mxu0 0
        %3162 = vmatprep.subr.bf16.mxu0 0
        %3163 = vmatpush1.bf16.msra.mxu0 0
        %3164 = vmatprep.mubr.bf16.mxu0 0
        %3165 = vmatmul.mubr.bf16.gmra.mrb[0].mxu0 %v2874
        %v3166 = vpop.f32.mrb[0].mxu0
        %v3167 = vadd.f32 %v2920, %v3166
        %v3168 = vpop.f32.mrb[0].mxu0
        %v3169 = vadd.f32 %v2924, %v3168
        %v3170 = vpop.f32.mrb[0].mxu0
        %v3171 = vadd.f32 %v2920, %v3170
        %v3172 = vpop.f32.mrb[0].mxu0
        %v3173 = vadd.f32 %v2924, %v3172
        %3174 = vdwg.mxu0
        %v3175 = vmul.f32 %v3124, 1.702
        %v3176 = vmul.f32 %v3126, 1.702
        %v3177 = vmul.f32 %v3167, 1.702
        %v3178 = vmul.f32 %v3169, 1.702
        %v3179 = vmul.f32 %v3128, 1.702
        %v3180 = vmul.f32 %v3130, 1.702
        %v3181 = vmul.f32 %v3171, 1.702
        %v3182 = vmul.f32 %v3173, 1.702
        %v3183 = vxor.u32 %v3175, 2147483648
        %v3184 = vxor.u32 %v3176, 2147483648
        %v3185 = vxor.u32 %v3177, 2147483648
        %v3186 = vxor.u32 %v3178, 2147483648
        %v3187 = vxor.u32 %v3179, 2147483648
        %v3188 = vxor.u32 %v3180, 2147483648
        %v3189 = vxor.u32 %v3181, 2147483648
        %v3190 = vxor.u32 %v3182, 2147483648
        %v3191 = vmul.f32 %v3183, 1.442695
        %v3192 = vpow.pop %v3191
        %v3193 = vmul.f32 %v3184, 1.442695
        %v3194 = vpow.pop %v3193
        %v3195 = vmul.f32 %v3185, 1.442695
        %v3196 = vpow.pop %v3195
        %v3197 = vmul.f32 %v3186, 1.442695
        %v3198 = vpow.pop %v3197
        %v3199 = vmul.f32 %v3187, 1.442695
        %v3200 = vpow.pop %v3199
        %v3201 = vmul.f32 %v3188, 1.442695
        %v3202 = vpow.pop %v3201
        %v3203 = vmul.f32 %v3189, 1.442695
        %v3204 = vpow.pop %v3203
        %v3205 = vmul.f32 %v3190, 1.442695
        %v3206 = vpow.pop %v3205
        %v3207 = vadd.f32 %v3192, 1.0
        %v3208 = vadd.f32 %v3194, 1.0
        %v3209 = vadd.f32 %v3196, 1.0
        %v3210 = vadd.f32 %v3198, 1.0
        %v3211 = vadd.f32 %v3200, 1.0
        %v3212 = vadd.f32 %v3202, 1.0
        %v3213 = vadd.f32 %v3204, 1.0
        %v3214 = vadd.f32 %v3206, 1.0
        %v3215 = vrcp.pop %v3207
        %v3216 = vmul.f32 1.0, %v3215
        %v3217 = vrcp.pop %v3208
        %v3218 = vmul.f32 1.0, %v3217
        %v3219 = vrcp.pop %v3209
        %v3220 = vmul.f32 1.0, %v3219
        %v3221 = vrcp.pop %v3210
        %v3222 = vmul.f32 1.0, %v3221
        %v3223 = vrcp.pop %v3211
        %v3224 = vmul.f32 1.0, %v3223
        %v3225 = vrcp.pop %v3212
        %v3226 = vmul.f32 1.0, %v3225
        %v3227 = vrcp.pop %v3213
        %v3228 = vmul.f32 1.0, %v3227
        %v3229 = vrcp.pop %v3214
        %v3230 = vmul.f32 1.0, %v3229
        %v3231 = vmul.f32 %v3124, %v3216
        %v3232 = vmul.f32 %v3126, %v3218
        %v3233 = vmul.f32 %v3167, %v3220
        %v3234 = vmul.f32 %v3169, %v3222
        %v3235 = vmul.f32 %v3128, %v3224
        %v3236 = vmul.f32 %v3130, %v3226
        %v3237 = vmul.f32 %v3171, %v3228
        %v3238 = vmul.f32 %v3173, %v3230
        %v3239 = vpack.c.bf16 %v3235, %v3231
        %v3240 = vpack.c.bf16 %v3236, %v3232
        %v3241 = vpack.c.bf16 %v3237, %v3233
        %v3242 = vpack.c.bf16 %v3238, %v3234
        %v3243 = vld [vmem:[%s627] sm:$0xf]
        %v3244 = vld [vmem:[%s627 + $0x4] sm:$0xf]
        %v3245 = vld [vmem:[%s627 + $0x8] sm:$0xf]
        %v3246 = vld [vmem:[%s627 + $0xc] sm:$0xf]
        %v3247 = vld [vmem:[%s627 + $0x10] sm:$0xf]
        %v3248 = vld [vmem:[%s627 + $0x14] sm:$0xf]
        %v3249 = vld [vmem:[%s627 + $0x18] sm:$0xf]
        %v3250 = vld [vmem:[%s627 + $0x1c] sm:$0xf]
        %v3251 = vld [vmem:[%s627 + $0x20] sm:$0xf]
        %v3252 = vld [vmem:[%s627 + $0x24] sm:$0xf]
        %v3253 = vld [vmem:[%s627 + $0x28] sm:$0xf]
        %v3254 = vld [vmem:[%s627 + $0x2c] sm:$0xf]
        %v3255 = vld [vmem:[%s627 + $0x30] sm:$0xf]
        %v3256 = vld [vmem:[%s627 + $0x34] sm:$0xf]
        %v3257 = vld [vmem:[%s627 + $0x38] sm:$0xf]
        %v3258 = vld [vmem:[%s627 + $0x3c] sm:$0xf]
        %v3259 = vld [vmem:[%s627 + $0x40] sm:$0xf]
        %v3260 = vld [vmem:[%s627 + $0x44] sm:$0xf]
        %v3261 = vld [vmem:[%s627 + $0x48] sm:$0xf]
        %v3262 = vld [vmem:[%s627 + $0x4c] sm:$0xf]
        %v3263 = vld [vmem:[%s627 + $0x50] sm:$0xf]
        %v3264 = vld [vmem:[%s627 + $0x54] sm:$0xf]
        %v3265 = vld [vmem:[%s627 + $0x58] sm:$0xf]
        %v3266 = vld [vmem:[%s627 + $0x5c] sm:$0xf]
        %v3267 = vld [vmem:[%s627 + $0x60] sm:$0xf]
        %v3268 = vld [vmem:[%s627 + $0x64] sm:$0xf]
        %v3269 = vld [vmem:[%s627 + $0x68] sm:$0xf]
        %v3270 = vld [vmem:[%s627 + $0x6c] sm:$0xf]
        %v3271 = vld [vmem:[%s627 + $0x70] sm:$0xf]
        %v3272 = vld [vmem:[%s627 + $0x74] sm:$0xf]
        %v3273 = vld [vmem:[%s627 + $0x78] sm:$0xf]
        %v3274 = vld [vmem:[%s627 + $0x7c] sm:$0xf]
        %v3275 = vld [vmem:[%s627 + $0x80] sm:$0xf]
        %v3276 = vld [vmem:[%s627 + $0x84] sm:$0xf]
        %v3277 = vld [vmem:[%s627 + $0x88] sm:$0xf]
        %v3278 = vld [vmem:[%s627 + $0x8c] sm:$0xf]
        %v3279 = vld [vmem:[%s627 + $0x90] sm:$0xf]
        %v3280 = vld [vmem:[%s627 + $0x94] sm:$0xf]
        %v3281 = vld [vmem:[%s627 + $0x98] sm:$0xf]
        %v3282 = vld [vmem:[%s627 + $0x9c] sm:$0xf]
        %v3283 = vld [vmem:[%s627 + $0xa0] sm:$0xf]
        %v3284 = vld [vmem:[%s627 + $0xa4] sm:$0xf]
        %v3285 = vld [vmem:[%s627 + $0xa8] sm:$0xf]
        %v3286 = vld [vmem:[%s627 + $0xac] sm:$0xf]
        %v3287 = vld [vmem:[%s627 + $0xb0] sm:$0xf]
        %v3288 = vld [vmem:[%s627 + $0xb4] sm:$0xf]
        %v3289 = vld [vmem:[%s627 + $0xb8] sm:$0xf]
        %v3290 = vld [vmem:[%s627 + $0xbc] sm:$0xf]
        %v3291 = vld [vmem:[%s627 + $0xc0] sm:$0xf]
        %v3292 = vld [vmem:[%s627 + $0xc4] sm:$0xf]
        %v3293 = vld [vmem:[%s627 + $0xc8] sm:$0xf]
        %v3294 = vld [vmem:[%s627 + $0xcc] sm:$0xf]
        %v3295 = vld [vmem:[%s627 + $0xd0] sm:$0xf]
        %v3296 = vld [vmem:[%s627 + $0xd4] sm:$0xf]
        %v3297 = vld [vmem:[%s627 + $0xd8] sm:$0xf]
        %v3298 = vld [vmem:[%s627 + $0xdc] sm:$0xf]
        %v3299 = vld [vmem:[%s627 + $0xe0] sm:$0xf]
        %v3300 = vld [vmem:[%s627 + $0xe4] sm:$0xf]
        %v3301 = vld [vmem:[%s627 + $0xe8] sm:$0xf]
        %v3302 = vld [vmem:[%s627 + $0xec] sm:$0xf]
        %v3303 = vld [vmem:[%s627 + $0xf0] sm:$0xf]
        %v3304 = vld [vmem:[%s627 + $0xf4] sm:$0xf]
        %v3305 = vld [vmem:[%s627 + $0xf8] sm:$0xf]
        %v3306 = vld [vmem:[%s627 + $0xfc] sm:$0xf]
        %v3307 = vld [vmem:[%s742] sm:$0x1]
        %v3309 = vlaneseq
        %v3310 = vshrl.u32 %v3309, 7
        %v3311 = vsub.s32 0, %v3310
        %v3312 = vrot.slane %v3307, %v3311
        %v3378 = vunpack.c.l.b16 %v3243
        %v3379 = vunpack.c.l.b16 %v3244
        %v3380 = vunpack.c.l.b16 %v3245
        %v3381 = vunpack.c.l.b16 %v3246
        %v3382 = vunpack.c.l.b16 %v3247
        %v3383 = vunpack.c.l.b16 %v3248
        %v3384 = vunpack.c.l.b16 %v3249
        %v3385 = vunpack.c.l.b16 %v3250
        %v3386 = vunpack.c.l.b16 %v3251
        %v3387 = vunpack.c.l.b16 %v3252
        %v3388 = vunpack.c.l.b16 %v3253
        %v3389 = vunpack.c.l.b16 %v3254
        %v3390 = vunpack.c.l.b16 %v3255
        %v3391 = vunpack.c.l.b16 %v3256
        %v3392 = vunpack.c.l.b16 %v3257
        %v3393 = vunpack.c.l.b16 %v3258
        %v3394 = vunpack.c.l.b16 %v3259
        %v3395 = vunpack.c.l.b16 %v3260
        %v3396 = vunpack.c.l.b16 %v3261
        %v3397 = vunpack.c.l.b16 %v3262
        %v3398 = vunpack.c.l.b16 %v3263
        %v3399 = vunpack.c.l.b16 %v3264
        %v3400 = vunpack.c.l.b16 %v3265
        %v3401 = vunpack.c.l.b16 %v3266
        %v3402 = vunpack.c.l.b16 %v3267
        %v3403 = vunpack.c.l.b16 %v3268
        %v3404 = vunpack.c.l.b16 %v3269
        %v3405 = vunpack.c.l.b16 %v3270
        %v3406 = vunpack.c.l.b16 %v3271
        %v3407 = vunpack.c.l.b16 %v3272
        %v3408 = vunpack.c.l.b16 %v3273
        %v3409 = vunpack.c.l.b16 %v3274
        %v3410 = vunpack.c.l.b16 %v3275
        %v3411 = vunpack.c.l.b16 %v3276
        %v3412 = vunpack.c.l.b16 %v3277
        %v3413 = vunpack.c.l.b16 %v3278
        %v3414 = vunpack.c.l.b16 %v3279
        %v3415 = vunpack.c.l.b16 %v3280
        %v3416 = vunpack.c.l.b16 %v3281
        %v3417 = vunpack.c.l.b16 %v3282
        %v3418 = vunpack.c.l.b16 %v3283
        %v3419 = vunpack.c.l.b16 %v3284
        %v3420 = vunpack.c.l.b16 %v3285
        %v3421 = vunpack.c.l.b16 %v3286
        %v3422 = vunpack.c.l.b16 %v3287
        %v3423 = vunpack.c.l.b16 %v3288
        %v3424 = vunpack.c.l.b16 %v3289
        %v3425 = vunpack.c.l.b16 %v3290
        %v3426 = vunpack.c.l.b16 %v3291
        %v3427 = vunpack.c.l.b16 %v3292
        %v3428 = vunpack.c.l.b16 %v3293
        %v3429 = vunpack.c.l.b16 %v3294
        %v3430 = vunpack.c.l.b16 %v3295
        %v3431 = vunpack.c.l.b16 %v3296
        %v3432 = vunpack.c.l.b16 %v3297
        %v3433 = vunpack.c.l.b16 %v3298
        %v3434 = vunpack.c.l.b16 %v3299
        %v3435 = vunpack.c.l.b16 %v3300
        %v3436 = vunpack.c.l.b16 %v3301
        %v3437 = vunpack.c.l.b16 %v3302
        %v3438 = vunpack.c.l.b16 %v3303
        %v3439 = vunpack.c.l.b16 %v3304
        %v3440 = vunpack.c.l.b16 %v3305
        %v3441 = vunpack.c.l.b16 %v3306
        %v3442 = vpack.c.b16 %v3379, %v3378
        %v3443 = vpack.c.b16 %v3381, %v3380
        %v3444 = vpack.c.b16 %v3383, %v3382
        %v3445 = vpack.c.b16 %v3385, %v3384
        %v3446 = vpack.c.b16 %v3387, %v3386
        %v3447 = vpack.c.b16 %v3389, %v3388
        %v3448 = vpack.c.b16 %v3391, %v3390
        %v3449 = vpack.c.b16 %v3393, %v3392
        %v3450 = vpack.c.b16 %v3395, %v3394
        %v3451 = vpack.c.b16 %v3397, %v3396
        %v3452 = vpack.c.b16 %v3399, %v3398
        %v3453 = vpack.c.b16 %v3401, %v3400
        %v3454 = vpack.c.b16 %v3403, %v3402
        %v3455 = vpack.c.b16 %v3405, %v3404
        %v3456 = vpack.c.b16 %v3407, %v3406
        %v3457 = vpack.c.b16 %v3409, %v3408
        %v3458 = vpack.c.b16 %v3411, %v3410
        %v3459 = vpack.c.b16 %v3413, %v3412
        %v3460 = vpack.c.b16 %v3415, %v3414
        %v3461 = vpack.c.b16 %v3417, %v3416
        %v3462 = vpack.c.b16 %v3419, %v3418
        %v3463 = vpack.c.b16 %v3421, %v3420
        %v3464 = vpack.c.b16 %v3423, %v3422
        %v3465 = vpack.c.b16 %v3425, %v3424
        %v3466 = vpack.c.b16 %v3427, %v3426
        %v3467 = vpack.c.b16 %v3429, %v3428
        %v3468 = vpack.c.b16 %v3431, %v3430
        %v3469 = vpack.c.b16 %v3433, %v3432
        %v3470 = vpack.c.b16 %v3435, %v3434
        %v3471 = vpack.c.b16 %v3437, %v3436
        %v3472 = vpack.c.b16 %v3439, %v3438
        %v3473 = vpack.c.b16 %v3441, %v3440
        %3506 = vmatprep.subr.bf16.mxu0 0
        %3507 = vmatpush1.bf16.msra.mxu0 %v3442
        %3508 = vmatprep.subr.bf16.mxu0 0
        %3509 = vmatpush1.bf16.msra.mxu0 %v3443
        %3510 = vmatprep.subr.bf16.mxu0 0
        %3511 = vmatpush1.bf16.msra.mxu0 %v3444
        %3512 = vmatprep.subr.bf16.mxu0 0
        %3513 = vmatpush1.bf16.msra.mxu0 %v3445
        %3514 = vmatprep.subr.bf16.mxu0 0
        %3515 = vmatpush1.bf16.msra.mxu0 %v3446
        %3516 = vmatprep.subr.bf16.mxu0 0
        %3517 = vmatpush1.bf16.msra.mxu0 %v3447
        %3518 = vmatprep.subr.bf16.mxu0 0
        %3519 = vmatpush1.bf16.msra.mxu0 %v3448
        %3520 = vmatprep.subr.bf16.mxu0 0
        %3521 = vmatpush1.bf16.msra.mxu0 %v3449
        %3522 = vmatprep.subr.bf16.mxu0 0
        %3523 = vmatpush1.bf16.msra.mxu0 %v3450
        %3524 = vmatprep.subr.bf16.mxu0 0
        %3525 = vmatpush1.bf16.msra.mxu0 %v3451
        %3526 = vmatprep.subr.bf16.mxu0 0
        %3527 = vmatpush1.bf16.msra.mxu0 %v3452
        %3528 = vmatprep.subr.bf16.mxu0 0
        %3529 = vmatpush1.bf16.msra.mxu0 %v3453
        %3530 = vmatprep.subr.bf16.mxu0 0
        %3531 = vmatpush1.bf16.msra.mxu0 %v3454
        %3532 = vmatprep.subr.bf16.mxu0 0
        %3533 = vmatpush1.bf16.msra.mxu0 %v3455
        %3534 = vmatprep.subr.bf16.mxu0 0
        %3535 = vmatpush1.bf16.msra.mxu0 %v3456
        %3536 = vmatprep.subr.bf16.mxu0 0
        %3537 = vmatpush1.bf16.msra.mxu0 %v3457
        %3538 = vmatprep.mubr.bf16.mxu0 %v3240
        %3539 = vmatmul.mubr.bf16.gmra.mrb[0].mxu0 %v3239
        %v3540 = vpop.f32.mrb[0].mxu0
        %v3541 = vadd.f32 %v3312, %v3540
        %v3542 = vpop.f32.mrb[0].mxu0
        %v3543 = vpop.f32.mrb[0].mxu0
        %v3544 = vadd.f32 %v3312, %v3543
        %v3545 = vpop.f32.mrb[0].mxu0
        %3546 = vdwg.mxu0
        %3547 = vmatprep.subr.bf16.mxu0 0
        %3548 = vmatpush1.bf16.msra.mxu0 %v3458
        %3549 = vmatprep.subr.bf16.mxu0 0
        %3550 = vmatpush1.bf16.msra.mxu0 %v3459
        %3551 = vmatprep.subr.bf16.mxu0 0
        %3552 = vmatpush1.bf16.msra.mxu0 %v3460
        %3553 = vmatprep.subr.bf16.mxu0 0
        %3554 = vmatpush1.bf16.msra.mxu0 %v3461
        %3555 = vmatprep.subr.bf16.mxu0 0
        %3556 = vmatpush1.bf16.msra.mxu0 %v3462
        %3557 = vmatprep.subr.bf16.mxu0 0
        %3558 = vmatpush1.bf16.msra.mxu0 %v3463
        %3559 = vmatprep.subr.bf16.mxu0 0
        %3560 = vmatpush1.bf16.msra.mxu0 %v3464
        %3561 = vmatprep.subr.bf16.mxu0 0
        %3562 = vmatpush1.bf16.msra.mxu0 %v3465
        %3563 = vmatprep.subr.bf16.mxu0 0
        %3564 = vmatpush1.bf16.msra.mxu0 %v3466
        %3565 = vmatprep.subr.bf16.mxu0 0
        %3566 = vmatpush1.bf16.msra.mxu0 %v3467
        %3567 = vmatprep.subr.bf16.mxu0 0
        %3568 = vmatpush1.bf16.msra.mxu0 %v3468
        %3569 = vmatprep.subr.bf16.mxu0 0
        %3570 = vmatpush1.bf16.msra.mxu0 %v3469
        %3571 = vmatprep.subr.bf16.mxu0 0
        %3572 = vmatpush1.bf16.msra.mxu0 %v3470
        %3573 = vmatprep.subr.bf16.mxu0 0
        %3574 = vmatpush1.bf16.msra.mxu0 %v3471
        %3575 = vmatprep.subr.bf16.mxu0 0
        %3576 = vmatpush1.bf16.msra.mxu0 %v3472
        %3577 = vmatprep.subr.bf16.mxu0 0
        %3578 = vmatpush1.bf16.msra.mxu0 %v3473
        %3579 = vmatprep.mubr.bf16.mxu0 %v3242
        %3580 = vmatmul.mubr.bf16.gmra.mrb[0].mxu0 %v3241
        %v3581 = vpop.f32.mrb[0].mxu0
        %v3582 = vadd.f32 %v3541, %v3581
        %v3583 = vpop.f32.mrb[0].mxu0
        %v3584 = vpop.f32.mrb[0].mxu0
        %v3585 = vadd.f32 %v3544, %v3584
        %v3586 = vpop.f32.mrb[0].mxu0
        %3587 = vdwg.mxu0
        %v3588 = vadd.f32 %v2828, %v3582
        %v3589 = vadd.f32 %v2829, %v3585
        %3590 = vst [vmem:[#allocation2] sm:$0xff] %v3588
        %3591 = vst [vmem:[#allocation2 + $0x8] sm:$0xff] %v3589
        %p3592 = scmp.eq.s32.totalorder %s34, 1
        // Predicated region
        $region101: #{frozen_clip_embedder_forward.1} parent=83 // pred_check
          %p3593 = pneg %p3592
        $region102: #{frozen_clip_embedder_forward.1} parent=83 // pred_check_branch
          %3595 = sbr.rel (%p3593) target = $region104
        $region103: #{frozen_clip_embedder_forward.1} parent=83 // pred_region
          %v3596 = vld [vmem:[%s14] sm:$0x1]
          %v3597 = vld [vmem:[%s15] sm:$0x1]
          %3598 = vadd.xlane.f32.xlu0 %v3588
          %v3599 = vpop.xlane.xlu0 %3598
          %3600 = vadd.xlane.f32.xlu0 %v3589
          %v3601 = vpop.xlane.xlu0 %3600
          %v3602 = vmul.f32 %v3599, %v760
          %v3603 = vmul.f32 %v3601, %v760
          %v3604 = vmul.f32 %v3588, %v3588
          %v3605 = vmul.f32 %v3589, %v3589
          %3606 = vadd.xlane.f32.xlu0 %v3604
          %v3607 = vpop.xlane.xlu0 %3606
          %3608 = vadd.xlane.f32.xlu0 %v3605
          %v3609 = vpop.xlane.xlu0 %3608
          %v3610 = vmul.f32 %v3607, %v760
          %v3611 = vmul.f32 %v3609, %v760
          %v3612 = vmul.f32 %v3602, %v3602
          %v3613 = vmul.f32 %v3603, %v3603
          %v3614 = vsub.f32 %v3610, %v3612
          %v3615 = vsub.f32 %v3611, %v3613
          %v3616 = vsub.f32 %v3588, %v3602
          %v3617 = vsub.f32 %v3589, %v3603
          %v3618 = vadd.f32 %v3614, 1e-05
          %v3619 = vadd.f32 %v3615, 1e-05
          %v3620 = vrsqrt.pop %v3618
          %v3621 = vrsqrt.pop %v3619
          %v3622 = vmul.f32 %v3616, %v3620
          %v3623 = vmul.f32 %v3617, %v3621
          %v3625 = vlaneseq
          %v3626 = vshrl.u32 %v3625, 7
          %v3627 = vsub.s32 0, %v3626
          %v3628 = vrot.slane %v3596, %v3627
          %v3630 = vmul.f32 %v3622, %v3628
          %v3631 = vmul.f32 %v3623, %v3628
          %v3633 = vlaneseq
          %v3634 = vshrl.u32 %v3633, 7
          %v3635 = vsub.s32 0, %v3634
          %v3636 = vrot.slane %v3597, %v3635
          %v3638 = vadd.f32 %v3630, %v3636
          %v3639 = vadd.f32 %v3631, %v3636
          %3640 = vst [vmem:[#allocation9] sm:$0xff] %v3638
          %3641 = vst [vmem:[#allocation9 + $0x8] sm:$0xff] %v3639
        $region104: #{frozen_clip_embedder_forward.1} parent=83 // pred_fallthru
          _
        // Predicated region
        $region105: #{frozen_clip_embedder_forward.1} parent=83 // pred_check
          %p3642 = pneg %p443
        $region106: #{frozen_clip_embedder_forward.1} parent=83 // pred_check_branch
          %3644 = sbr.rel (%p3642) target = $region108
        $region107: #{frozen_clip_embedder_forward.1} parent=83 // pred_region
          %s3646 = ssub.s32 256, 256
          %3647 = vsyncadd [#allocation5], %s3646
          %s3648 = sshll.u32 [#allocation9], 4
          %s3649 = int_to_ptr.vmem [resolvable:$true] %s3648
          %3654 = dma.vmem_to_hbm [thread:$0]  %s3649, 256, %s16, [#allocation5], 128, 128, 8
        $region108: #{frozen_clip_embedder_forward.1} parent=83 // pred_fallthru
          _
        // Predicated region
        $region109: #{frozen_clip_embedder_forward.1} parent=83 // pred_check
          %p3655 = pneg %p443
        $region110: #{frozen_clip_embedder_forward.1} parent=83 // pred_check_branch
          %3657 = sbr.rel (%p3655) target = $region112
        $region111: #{frozen_clip_embedder_forward.1} parent=83 // pred_region
          %3658 = dma.done [#allocation5], 256
        $region112: #{frozen_clip_embedder_forward.1} parent=83 // pred_fallthru
          _
      $region84: #{frozen_clip_embedder_forward.1} parent=5 // pred_fallthru
        _
      %p3659 = scmp.le.s32.totalorder 2, %s29
      // Predicated region
      $region113: #{frozen_clip_embedder_forward.1} parent=5 // pred_check
        %p3660 = pneg %p3659
      $region114: #{frozen_clip_embedder_forward.1} parent=5 // pred_check_branch
        %3662 = sbr.rel (%p3660) target = $region116
      $region115: #{frozen_clip_embedder_forward.1} parent=5 // pred_region
        %s3663 = ssub.s32 %s29, 2
      $region116: #{frozen_clip_embedder_forward.1} parent=5 // pred_fallthru
        _
    $region6: #{frozen_clip_embedder_forward.1} parent=1 // loop_footer
      %s33 = sadd.s32 1, %s29
    $region7: #{frozen_clip_embedder_forward.1} parent=1 // loop_footer_branch
      %28 = sbr.rel target = $region3
    $region8: #{frozen_clip_embedder_forward.1} parent=1 // loop_exit
      _
    %3664 = vsyncpa [#allocation4], 1
    %s3665 = scalar_lea.sflag [#allocation4], 1
    %3666 = vsyncpa %s3665, 1
    %3667 = vsyncpa [#allocation7], 1
    %s3668 = scalar_lea.sflag [#allocation7], 1
    %3669 = vsyncpa %s3668, 1
    %3670 = vsyncpa [#allocation5], 1
    %s3671 = scalar_lea.sflag [#allocation5], 1
    %3672 = vsyncpa %s3671, 1

</llo_original>
